<compile_context>
chip_gen: v7x
topology: tpu7x:2x2x1
jax: 0.10.0
libtpu: 0.0.40
codegen_flags: <defaults>
</compile_context>

<pallas_src>
import jax
import jax.numpy as jnp
import numpy as np
from jax.experimental import pallas as pl
from jax.experimental.pallas import tpu as pltpu

SEQ_LEN = 8      # L  (lay1 in_features = 64 * seq_len  =>  input length == seq_len)
CHANNEL = 4      # C
BATCH   = 2      # B  (acts as the LSTM's time axis, see note above)
HID     = 64     # LSTM hidden size


# --------------------------------------------------------------------------
# Pallas kernel
# --------------------------------------------------------------------------
def lstm1_kernel(x_ref, w1_ref, w2_ref, wl_ref, w1l_ref, w2l_ref, b_ref, out_ref):
    f32 = jnp.float32
    xf = x_ref[...]                            # (N, C), rows ordered b*L + l
    N = xf.shape[0]
    L, H = w1l_ref.shape[0], w1l_ref.shape[1]  # L = seq_len, H = 64
    B = N // L
    IN = wl_ref.shape[1] - H                   # LSTM input size (128)

    def mm(a, bmat):
        return jnp.dot(a, bmat, preferred_element_type=f32)

    # 0/1 shift operators acting within each length-L segment (zero padding at
    # segment boundaries).  Exact f32 selection matmuls on the MXU.
    row = jax.lax.broadcasted_iota(jnp.int32, (N, N), 0)
    col = jax.lax.broadcasted_iota(jnp.int32, (N, N), 1)
    pos = row % L
    s_prev = jnp.where((col == row - 1) & (pos != 0), 1.0, 0.0).astype(f32)
    s_next = jnp.where((col == row + 1) & (pos != L - 1), 1.0, 0.0).astype(f32)

    # ---- stage 1: A1_1 (k=1) and A1_2 (k=3, pad=1), channel -> 120 each ----
    xp = mm(s_prev, xf)                        # x[l-1] (0 at l==0)
    xn = mm(s_next, xf)                        # x[l+1] (0 at l==L-1)
    y1 = mm(xf, w1_ref[0]) + b_ref[0, 0:120]
    y2 = (mm(xp, w1_ref[1]) + mm(xf, w1_ref[2]) + mm(xn, w1_ref[3])
          + b_ref[1, 0:120])

    # ---- stage 2: [A2_1 (k=1) | A2_2 (k=3)] fused into one 128-lane output ----
    y1p, y1n = mm(s_prev, y1), mm(s_next, y1)
    y2p, y2n = mm(s_prev, y2), mm(s_next, y2)
    seq = (mm(y1p, w2_ref[0]) + mm(y1, w2_ref[1]) + mm(y1n, w2_ref[2]) +
           mm(y2p, w2_ref[3]) + mm(y2, w2_ref[4]) + mm(y2n, w2_ref[5]) +
           b_ref[2, 0:IN])                     # (N, 128) == LSTM input, pre-concatenated

    # ---- LSTM: time axis = B (batch_first=False quirk), batch = L ----------
    h_t = jnp.zeros((L, H), f32)
    c_t = jnp.zeros((L, H), f32)
    hs = []
    for t in range(B):                         # tiny static time loop
        xt = seq[t * L:(t + 1) * L, :]         # (L, 128), sublane-aligned slice
        pre = []
        for g in range(4):                     # gate order: i, f, g, o
            w_g = wl_ref[g]                    # (IN + H, H), per-gate aligned block
            pre.append(mm(xt, w_g[0:IN, :]) + mm(h_t, w_g[IN:IN + H, :])
                       + b_ref[3 + g, 0:H])
        i_g = jax.nn.sigmoid(pre[0])
        f_g = jax.nn.sigmoid(pre[1])
        g_g = jnp.tanh(pre[2])
        o_g = jax.nn.sigmoid(pre[3])
        c_t = f_g * c_t + i_g * g_g
        h_t = o_g * jnp.tanh(c_t)
        hs.append(h_t)
    lstm_out = jnp.stack(hs, axis=0)           # (B, L, H)

    # ---- lay1 (Linear(H*L, 32) over the (l, h) flattening) -> lay2 -> softmax
    acc = jnp.zeros((B, 32), f32)
    for l in range(L):
        acc = acc + mm(lstm_out[:, l, :], w1l_ref[l])   # (B,H) x (H,32)
    z = acc + b_ref[7, 0:32]
    z = mm(z, w2l_ref[...]) + b_ref[8, 0:2]             # (B, 2)
    m = jnp.max(z, axis=1, keepdims=True)
    e = jnp.exp(z - m)
    out_ref[...] = e / jnp.sum(e, axis=1, keepdims=True)


# --------------------------------------------------------------------------
# Host-side parameter packing (done once at init, not per call)
# --------------------------------------------------------------------------
def pack_params(p):
    f32 = jnp.float32
    H = HID

    # stage 1: (4, C, 120) = [A1_1 center, A1_2 tap0(prev), tap1(center), tap2(next)]
    w1_pack = jnp.stack([
        p["a11w"][:, :, 0].T,
        p["a12w"][:, :, 0].T,
        p["a12w"][:, :, 1].T,
        p["a12w"][:, :, 2].T,
    ], axis=0).astype(f32)

    # stage 2: fused [A2_1 | A2_2] output (128 lanes), split by input stream
    # (a = first 120 channels = y1, b = last 120 channels = y2).
    zeros64 = jnp.zeros((120, 64), f32)
    def tap(w, k, lo, hi):                     # (64, 240, K) -> (120, 64)
        return w[:, lo:hi, k].T
    wa_prev = jnp.concatenate([zeros64, tap(p["a22w"], 0, 0, 120)], axis=1)
    wa_ctr  = jnp.concatenate([tap(p["a21w"], 0, 0, 120), tap(p["a22w"], 1, 0, 120)], axis=1)
    wa_next = jnp.concatenate([zeros64, tap(p["a22w"], 2, 0, 120)], axis=1)
    wb_prev = jnp.concatenate([zeros64, tap(p["a22w"], 0, 120, 240)], axis=1)
    wb_ctr  = jnp.concatenate([tap(p["a21w"], 0, 120, 240), tap(p["a22w"], 1, 120, 240)], axis=1)
    wb_next = jnp.concatenate([zeros64, tap(p["a22w"], 2, 120, 240)], axis=1)
    w2_pack = jnp.stack([wa_prev, wa_ctr, wa_next,
                         wb_prev, wb_ctr, wb_next], axis=0).astype(f32)   # (6,120,128)

    # LSTM per-gate blocks: (4, 128+64, 64), rows 0:128 = Wih_g^T, 128:192 = Whh_g^T
    wl = []
    for g in range(4):
        wih_g = p["wih"][g * H:(g + 1) * H, :].T       # (128, 64)
        whh_g = p["whh"][g * H:(g + 1) * H, :].T       # (64, 64)
        wl.append(jnp.concatenate([wih_g, whh_g], axis=0))
    wl_pack = jnp.stack(wl, axis=0).astype(f32)        # (4, 192, 64)

    # lay1 weight re-laid-out to (L, H, 32) so lay1 is L aligned matmuls.
    L = p["l1w"].shape[1] // H
    w1lay = p["l1w"].reshape(32, L, H).transpose(1, 2, 0).astype(f32)     # (L, H, 32)
    w2lay = p["l2w"].T.astype(f32)                                        # (32, 2)

    # bias pack (9, 128): rows = [a11b, a12b, a21b|a22b, bias_i, bias_f,
    #                             bias_g, bias_o, l1b, l2b]
    def pad128(v):
        return jnp.pad(v, (0, 128 - v.shape[0]))
    rows = [pad128(p["a11b"]), pad128(p["a12b"]),
            jnp.concatenate([p["a21b"], p["a22b"]])]
    for g in range(4):
        rows.append(pad128(p["bih"][g * H:(g + 1) * H] + p["bhh"][g * H:(g + 1) * H]))
    rows.append(pad128(p["l1b"]))
    rows.append(pad128(p["l2b"]))
    b_pack = jnp.stack(rows, axis=0).astype(f32)        # (9, 128)

    return dict(w1=w1_pack, w2=w2_pack, wl=wl_pack,
                w1lay=w1lay, w2lay=w2lay, b=b_pack)


# --------------------------------------------------------------------------
# Wrapper
# --------------------------------------------------------------------------
@jax.jit
def lstm1_forward(x_ncl, packed):
    """x_ncl: (B, C, L) float32 NCL input (L must equal seq_len)."""
    B, C, L = x_ncl.shape
    xf = jnp.transpose(x_ncl.astype(jnp.float32), (0, 2, 1)).reshape(B * L, C)
    flat = [xf, packed["w1"], packed["w2"], packed["wl"],
            packed["w1lay"], packed["w2lay"], packed["b"]]
    return pl.pallas_call(
        lstm1_kernel,
        out_shape=jax.ShapeDtypeStruct((B, 2), jnp.float32),
        in_specs=[pl.BlockSpec(memory_space=pltpu.MemorySpace.VMEM)] * len(flat),
        out_specs=pl.BlockSpec(memory_space=pltpu.MemorySpace.VMEM),
    )(*flat)


# --------------------------------------------------------------------------
# Pure-JAX reference (independent code path through XLA, mirrors PyTorch)
# --------------------------------------------------------------------------
def _ref_forward(x, p):
    def conv1d(inp, w, b, pad):
        out = jax.lax.conv_general_dilated(
            inp, w, window_strides=(1,), padding=[(pad, pad)],
            dimension_numbers=("NCH", "OIH", "NCH"))
        return out + b[None, :, None]

    x1 = conv1d(x, p["a11w"], p["a11b"], 0)
    x2 = conv1d(x, p["a12w"], p["a12b"], 1)
    xc = jnp.concatenate([x1, x2], axis=1)           # (B, 240, L)
    y1 = conv1d(xc, p["a21w"], p["a21b"], 0)
    y2 = conv1d(xc, p["a22w"], p["a22b"], 1)
    yc = jnp.concatenate([y1, y2], axis=1)           # (B, 128, L)
    seq = jnp.transpose(yc, (0, 2, 1))               # LSTM sees (time=B, batch=L, 128)

    H = HID
    h = jnp.zeros((seq.shape[1], H), jnp.float32)
    c = jnp.zeros((seq.shape[1], H), jnp.float32)
    outs = []
    for t in range(seq.shape[0]):
        g = seq[t] @ p["wih"].T + p["bih"] + h @ p["whh"].T + p["bhh"]
        i = jax.nn.sigmoid(g[:, 0:H]); f = jax.nn.sigmoid(g[:, H:2 * H])
        gg = jnp.tanh(g[:, 2 * H:3 * H]); o = jax.nn.sigmoid(g[:, 3 * H:4 * H])
        c = f * c + i * gg
        h = o * jnp.tanh(c)
        outs.append(h)
    lstm_out = jnp.stack(outs, axis=0)               # (B, L, H)
    flat = lstm_out.reshape(lstm_out.shape[0], -1)   # (B, L*H)
    z = flat @ p["l1w"].T + p["l1b"]
    z = z @ p["l2w"].T + p["l2b"]
    return jax.nn.softmax(z, axis=1)


# --------------------------------------------------------------------------
# Parameter init + test
# --------------------------------------------------------------------------
def init_params(key, seq_len, channel):
    ks = jax.random.split(key, 16)

    def w(k, shape, scale=0.1):
        return jax.random.normal(k, shape, jnp.float32) * scale

    p = {}
    p["a11w"] = w(ks[0], (120, channel, 1)); p["a11b"] = w(ks[1], (120,))
    p["a12w"] = w(ks[2], (120, channel, 3)); p["a12b"] = w(ks[3], (120,))
    p["a21w"] = w(ks[4], (64, 240, 1));      p["a21b"] = w(ks[5], (64,))
    p["a22w"] = w(ks[6], (64, 240, 3));      p["a22b"] = w(ks[7], (64,))
    p["wih"] = w(ks[8], (4 * HID, 128));     p["whh"] = w(ks[9], (4 * HID, HID))
    p["bih"] = w(ks[10], (4 * HID,));        p["bhh"] = w(ks[11], (4 * HID,))
    p["l1w"] = w(ks[12], (32, HID * seq_len)); p["l1b"] = w(ks[13], (32,))
    p["l2w"] = w(ks[14], (2, 32));           p["l2b"] = w(ks[15], (2,))
    return p


if __name__ == "__main__":
    key = jax.random.PRNGKey(0)
    k_x, k_p = jax.random.split(key, 2)

    x = jax.random.normal(k_x, (BATCH, CHANNEL, SEQ_LEN), jnp.float32)   # NCL
    params = init_params(k_p, SEQ_LEN, CHANNEL)
    packed = pack_params(params)          # built once, outside the forward call

    out = jax.block_until_ready(lstm1_forward(x, packed))
    ref = jax.block_until_ready(_ref_forward(x, params))

    assert out.shape == (BATCH, 2)
    np.testing.assert_allclose(np.asarray(out), np.asarray(ref), rtol=1e-3, atol=1e-3)
    assert np.all(np.isfinite(np.asarray(out)))

    print("KERNEL_OK")
</pallas_src>

<mosaic_0001>
module attributes {stable_mosaic.version = 11 : i64} {
  func.func @lstm1_kernel(%arg0: memref<16x4xf32, #tpu.memory_space<vmem>>, %arg1: memref<4x4x120xf32, #tpu.memory_space<vmem>>, %arg2: memref<6x120x128xf32, #tpu.memory_space<vmem>>, %arg3: memref<4x192x64xf32, #tpu.memory_space<vmem>>, %arg4: memref<8x64x32xf32, #tpu.memory_space<vmem>>, %arg5: memref<32x2xf32, #tpu.memory_space<vmem>>, %arg6: memref<9x128xf32, #tpu.memory_space<vmem>>, %arg7: memref<2x2xf32, #tpu.memory_space<vmem>>) attributes {dimension_semantics = [], scalar_prefetch = 0 : i64, scratch_operands = 0 : i64, tpu.core_type = #tpu.core_type<tc>} {
    %c0 = arith.constant 0 : index
    %c0_0 = arith.constant 0 : index
    %0 = vector.load %arg0[%c0, %c0_0] : memref<16x4xf32, #tpu.memory_space<vmem>>, vector<16x4xf32>
    %1 = tpu.iota {dimensions = array<i32: 0>} : vector<16x16xi32>
    %2 = tpu.iota {dimensions = array<i32: 1>} : vector<16x16xi32>
    %c8_i32 = arith.constant 8 : i32
    %c0_i32 = arith.constant 0 : i32
    %3 = arith.cmpi eq, %c8_i32, %c0_i32 : i32
    %c1_i32 = arith.constant 1 : i32
    %4 = arith.select %3, %c1_i32, %c8_i32 : i32
    %5 = vector.broadcast %4 : i32 to vector<16x16xi32>
    %6 = arith.remsi %1, %5 : vector<16x16xi32>
    %c0_i32_1 = arith.constant 0 : i32
    %7 = vector.broadcast %c0_i32_1 : i32 to vector<16x16xi32>
    %8 = arith.cmpi ne, %6, %7 : vector<16x16xi32>
    %c0_i32_2 = arith.constant 0 : i32
    %9 = vector.broadcast %c0_i32_2 : i32 to vector<16x16xi32>
    %10 = arith.cmpi slt, %6, %9 : vector<16x16xi32>
    %c0_i32_3 = arith.constant 0 : i32
    %11 = arith.cmpi slt, %4, %c0_i32_3 : i32
    %12 = vector.broadcast %11 : i1 to vector<16x16xi1>
    %13 = vector.broadcast %12 : vector<16x16xi1> to vector<16x16xi1>
    %14 = arith.xori %10, %13 : vector<16x16xi1>
    %15 = arith.andi %14, %8 : vector<16x16xi1>
    %16 = vector.broadcast %4 : i32 to vector<16x16xi32>
    %17 = arith.addi %6, %16 : vector<16x16xi32>
    %18 = arith.select %15, %17, %6 : vector<16x16xi1>, vector<16x16xi32>
    %c1_i32_4 = arith.constant 1 : i32
    %19 = vector.broadcast %c1_i32_4 : i32 to vector<16x16xi32>
    %20 = arith.subi %1, %19 : vector<16x16xi32>
    %21 = arith.cmpi eq, %2, %20 : vector<16x16xi32>
    %c0_i32_5 = arith.constant 0 : i32
    %22 = vector.broadcast %c0_i32_5 : i32 to vector<16x16xi32>
    %23 = arith.cmpi ne, %18, %22 : vector<16x16xi32>
    %24 = arith.andi %21, %23 : vector<16x16xi1>
    %cst = arith.constant 1.000000e+00 : f32
    %cst_6 = arith.constant 0.000000e+00 : f32
    %25 = vector.broadcast %cst : f32 to vector<16x16xf32>
    %26 = vector.broadcast %cst_6 : f32 to vector<16x16xf32>
    %27 = arith.select %24, %25, %26 : vector<16x16xi1>, vector<16x16xf32>
    %c1_i32_7 = arith.constant 1 : i32
    %28 = vector.broadcast %c1_i32_7 : i32 to vector<16x16xi32>
    %29 = arith.addi %1, %28 : vector<16x16xi32>
    %30 = arith.cmpi eq, %2, %29 : vector<16x16xi32>
    %c7_i32 = arith.constant 7 : i32
    %31 = vector.broadcast %c7_i32 : i32 to vector<16x16xi32>
    %32 = arith.cmpi ne, %18, %31 : vector<16x16xi32>
    %33 = arith.andi %30, %32 : vector<16x16xi1>
    %cst_8 = arith.constant 1.000000e+00 : f32
    %cst_9 = arith.constant 0.000000e+00 : f32
    %34 = vector.broadcast %cst_8 : f32 to vector<16x16xf32>
    %35 = vector.broadcast %cst_9 : f32 to vector<16x16xf32>
    %36 = arith.select %33, %34, %35 : vector<16x16xi1>, vector<16x16xf32>
    %cst_10 = arith.constant dense<0.000000e+00> : vector<16x4xf32>
    %37 = tpu.matmul %27, %0, %cst_10 {dimension_numbers = #tpu.dot_dimension_numbers<[1], [0], [0], [1], [0, 0, 1, 1], [], []>} : vector<16x16xf32>, vector<16x4xf32>, vector<16x4xf32> -> vector<16x4xf32>
    %cst_11 = arith.constant dense<0.000000e+00> : vector<16x4xf32>
    %38 = tpu.matmul %36, %0, %cst_11 {dimension_numbers = #tpu.dot_dimension_numbers<[1], [0], [0], [1], [0, 0, 1, 1], [], []>} : vector<16x16xf32>, vector<16x4xf32>, vector<16x4xf32> -> vector<16x4xf32>
    %c0_12 = arith.constant 0 : index
    %c0_13 = arith.constant 0 : index
    %c0_14 = arith.constant 0 : index
    %39 = vector.load %arg1[%c0_12, %c0_13, %c0_14] : memref<4x4x120xf32, #tpu.memory_space<vmem>>, vector<1x4x120xf32>
    %40 = vector.shape_cast %39 : vector<1x4x120xf32> to vector<4x120xf32>
    %cst_15 = arith.constant dense<0.000000e+00> : vector<16x120xf32>
    %41 = tpu.matmul %0, %40, %cst_15 {dimension_numbers = #tpu.dot_dimension_numbers<[1], [0], [0], [1], [0, 0, 1, 1], [], []>} : vector<16x4xf32>, vector<4x120xf32>, vector<16x120xf32> -> vector<16x120xf32>
    %c0_16 = arith.constant 0 : index
    %c0_17 = arith.constant 0 : index
    %42 = vector.load %arg6[%c0_16, %c0_17] : memref<9x128xf32, #tpu.memory_space<vmem>>, vector<1x120xf32>
    %43 = vector.shape_cast %42 : vector<1x120xf32> to vector<120xf32>
    %44 = vector.shape_cast %43 : vector<120xf32> to vector<1x120xf32>
    %45 = vector.broadcast %44 : vector<1x120xf32> to vector<16x120xf32>
    %46 = arith.addf %41, %45 : vector<16x120xf32>
    %c1 = arith.constant 1 : index
    %c0_18 = arith.constant 0 : index
    %c0_19 = arith.constant 0 : index
    %47 = vector.load %arg1[%c1, %c0_18, %c0_19] : memref<4x4x120xf32, #tpu.memory_space<vmem>>, vector<1x4x120xf32>
    %48 = vector.shape_cast %47 : vector<1x4x120xf32> to vector<4x120xf32>
    %cst_20 = arith.constant dense<0.000000e+00> : vector<16x120xf32>
    %49 = tpu.matmul %37, %48, %cst_20 {dimension_numbers = #tpu.dot_dimension_numbers<[1], [0], [0], [1], [0, 0, 1, 1], [], []>} : vector<16x4xf32>, vector<4x120xf32>, vector<16x120xf32> -> vector<16x120xf32>
    %c2 = arith.constant 2 : index
    %c0_21 = arith.constant 0 : index
    %c0_22 = arith.constant 0 : index
    %50 = vector.load %arg1[%c2, %c0_21, %c0_22] : memref<4x4x120xf32, #tpu.memory_space<vmem>>, vector<1x4x120xf32>
    %51 = vector.shape_cast %50 : vector<1x4x120xf32> to vector<4x120xf32>
    %cst_23 = arith.constant dense<0.000000e+00> : vector<16x120xf32>
    %52 = tpu.matmul %0, %51, %cst_23 {dimension_numbers = #tpu.dot_dimension_numbers<[1], [0], [0], [1], [0, 0, 1, 1], [], []>} : vector<16x4xf32>, vector<4x120xf32>, vector<16x120xf32> -> vector<16x120xf32>
    %53 = arith.addf %49, %52 : vector<16x120xf32>
    %c3 = arith.constant 3 : index
    %c0_24 = arith.constant 0 : index
    %c0_25 = arith.constant 0 : index
    %54 = vector.load %arg1[%c3, %c0_24, %c0_25] : memref<4x4x120xf32, #tpu.memory_space<vmem>>, vector<1x4x120xf32>
    %55 = vector.shape_cast %54 : vector<1x4x120xf32> to vector<4x120xf32>
    %cst_26 = arith.constant dense<0.000000e+00> : vector<16x120xf32>
    %56 = tpu.matmul %38, %55, %cst_26 {dimension_numbers = #tpu.dot_dimension_numbers<[1], [0], [0], [1], [0, 0, 1, 1], [], []>} : vector<16x4xf32>, vector<4x120xf32>, vector<16x120xf32> -> vector<16x120xf32>
    %57 = arith.addf %53, %56 : vector<16x120xf32>
    %c1_27 = arith.constant 1 : index
    %c0_28 = arith.constant 0 : index
    %58 = vector.load %arg6[%c1_27, %c0_28] : memref<9x128xf32, #tpu.memory_space<vmem>>, vector<1x120xf32>
    %59 = vector.shape_cast %58 : vector<1x120xf32> to vector<120xf32>
    %60 = vector.shape_cast %59 : vector<120xf32> to vector<1x120xf32>
    %61 = vector.broadcast %60 : vector<1x120xf32> to vector<16x120xf32>
    %62 = arith.addf %57, %61 : vector<16x120xf32>
    %cst_29 = arith.constant dense<0.000000e+00> : vector<16x120xf32>
    %63 = tpu.matmul %27, %46, %cst_29 {dimension_numbers = #tpu.dot_dimension_numbers<[1], [0], [0], [1], [0, 0, 1, 1], [], []>} : vector<16x16xf32>, vector<16x120xf32>, vector<16x120xf32> -> vector<16x120xf32>
    %cst_30 = arith.constant dense<0.000000e+00> : vector<16x120xf32>
    %64 = tpu.matmul %36, %46, %cst_30 {dimension_numbers = #tpu.dot_dimension_numbers<[1], [0], [0], [1], [0, 0, 1, 1], [], []>} : vector<16x16xf32>, vector<16x120xf32>, vector<16x120xf32> -> vector<16x120xf32>
    %cst_31 = arith.constant dense<0.000000e+00> : vector<16x120xf32>
    %65 = tpu.matmul %27, %62, %cst_31 {dimension_numbers = #tpu.dot_dimension_numbers<[1], [0], [0], [1], [0, 0, 1, 1], [], []>} : vector<16x16xf32>, vector<16x120xf32>, vector<16x120xf32> -> vector<16x120xf32>
    %cst_32 = arith.constant dense<0.000000e+00> : vector<16x120xf32>
    %66 = tpu.matmul %36, %62, %cst_32 {dimension_numbers = #tpu.dot_dimension_numbers<[1], [0], [0], [1], [0, 0, 1, 1], [], []>} : vector<16x16xf32>, vector<16x120xf32>, vector<16x120xf32> -> vector<16x120xf32>
    %c0_33 = arith.constant 0 : index
    %c0_34 = arith.constant 0 : index
    %c0_35 = arith.constant 0 : index
    %67 = vector.load %arg2[%c0_33, %c0_34, %c0_35] : memref<6x120x128xf32, #tpu.memory_space<vmem>>, vector<1x120x128xf32>
    %68 = vector.shape_cast %67 : vector<1x120x128xf32> to vector<120x128xf32>
    %cst_36 = arith.constant dense<0.000000e+00> : vector<16x128xf32>
    %69 = tpu.matmul %63, %68, %cst_36 {dimension_numbers = #tpu.dot_dimension_numbers<[1], [0], [0], [1], [0, 0, 1, 1], [], []>} : vector<16x120xf32>, vector<120x128xf32>, vector<16x128xf32> -> vector<16x128xf32>
    %c1_37 = arith.constant 1 : index
    %c0_38 = arith.constant 0 : index
    %c0_39 = arith.constant 0 : index
    %70 = vector.load %arg2[%c1_37, %c0_38, %c0_39] : memref<6x120x128xf32, #tpu.memory_space<vmem>>, vector<1x120x128xf32>
    %71 = vector.shape_cast %70 : vector<1x120x128xf32> to vector<120x128xf32>
    %cst_40 = arith.constant dense<0.000000e+00> : vector<16x128xf32>
    %72 = tpu.matmul %46, %71, %cst_40 {dimension_numbers = #tpu.dot_dimension_numbers<[1], [0], [0], [1], [0, 0, 1, 1], [], []>} : vector<16x120xf32>, vector<120x128xf32>, vector<16x128xf32> -> vector<16x128xf32>
    %73 = arith.addf %69, %72 : vector<16x128xf32>
    %c2_41 = arith.constant 2 : index
    %c0_42 = arith.constant 0 : index
    %c0_43 = arith.constant 0 : index
    %74 = vector.load %arg2[%c2_41, %c0_42, %c0_43] : memref<6x120x128xf32, #tpu.memory_space<vmem>>, vector<1x120x128xf32>
    %75 = vector.shape_cast %74 : vector<1x120x128xf32> to vector<120x128xf32>
    %cst_44 = arith.constant dense<0.000000e+00> : vector<16x128xf32>
    %76 = tpu.matmul %64, %75, %cst_44 {dimension_numbers = #tpu.dot_dimension_numbers<[1], [0], [0], [1], [0, 0, 1, 1], [], []>} : vector<16x120xf32>, vector<120x128xf32>, vector<16x128xf32> -> vector<16x128xf32>
    %77 = arith.addf %73, %76 : vector<16x128xf32>
    %c3_45 = arith.constant 3 : index
    %c0_46 = arith.constant 0 : index
    %c0_47 = arith.constant 0 : index
    %78 = vector.load %arg2[%c3_45, %c0_46, %c0_47] : memref<6x120x128xf32, #tpu.memory_space<vmem>>, vector<1x120x128xf32>
    %79 = vector.shape_cast %78 : vector<1x120x128xf32> to vector<120x128xf32>
    %cst_48 = arith.constant dense<0.000000e+00> : vector<16x128xf32>
    %80 = tpu.matmul %65, %79, %cst_48 {dimension_numbers = #tpu.dot_dimension_numbers<[1], [0], [0], [1], [0, 0, 1, 1], [], []>} : vector<16x120xf32>, vector<120x128xf32>, vector<16x128xf32> -> vector<16x128xf32>
    %81 = arith.addf %77, %80 : vector<16x128xf32>
    %c4 = arith.constant 4 : index
    %c0_49 = arith.constant 0 : index
    %c0_50 = arith.constant 0 : index
    %82 = vector.load %arg2[%c4, %c0_49, %c0_50] : memref<6x120x128xf32, #tpu.memory_space<vmem>>, vector<1x120x128xf32>
    %83 = vector.shape_cast %82 : vector<1x120x128xf32> to vector<120x128xf32>
    %cst_51 = arith.constant dense<0.000000e+00> : vector<16x128xf32>
    %84 = tpu.matmul %62, %83, %cst_51 {dimension_numbers = #tpu.dot_dimension_numbers<[1], [0], [0], [1], [0, 0, 1, 1], [], []>} : vector<16x120xf32>, vector<120x128xf32>, vector<16x128xf32> -> vector<16x128xf32>
    %85 = arith.addf %81, %84 : vector<16x128xf32>
    %c5 = arith.constant 5 : index
    %c0_52 = arith.constant 0 : index
    %c0_53 = arith.constant 0 : index
    %86 = vector.load %arg2[%c5, %c0_52, %c0_53] : memref<6x120x128xf32, #tpu.memory_space<vmem>>, vector<1x120x128xf32>
    %87 = vector.shape_cast %86 : vector<1x120x128xf32> to vector<120x128xf32>
    %cst_54 = arith.constant dense<0.000000e+00> : vector<16x128xf32>
    %88 = tpu.matmul %66, %87, %cst_54 {dimension_numbers = #tpu.dot_dimension_numbers<[1], [0], [0], [1], [0, 0, 1, 1], [], []>} : vector<16x120xf32>, vector<120x128xf32>, vector<16x128xf32> -> vector<16x128xf32>
    %89 = arith.addf %85, %88 : vector<16x128xf32>
    %c2_55 = arith.constant 2 : index
    %c0_56 = arith.constant 0 : index
    %90 = vector.load %arg6[%c2_55, %c0_56] : memref<9x128xf32, #tpu.memory_space<vmem>>, vector<1x128xf32>
    %91 = vector.shape_cast %90 : vector<1x128xf32> to vector<128xf32>
    %92 = vector.shape_cast %91 : vector<128xf32> to vector<1x128xf32>
    %93 = vector.broadcast %92 : vector<1x128xf32> to vector<16x128xf32>
    %94 = arith.addf %89, %93 : vector<16x128xf32>
    %cst_57 = arith.constant 0.000000e+00 : f32
    %95 = vector.broadcast %cst_57 : f32 to vector<8x64xf32>
    %cst_58 = arith.constant 0.000000e+00 : f32
    %96 = vector.broadcast %cst_58 : f32 to vector<8x64xf32>
    %97 = vector.extract_strided_slice %94 {offsets = [0, 0], sizes = [8, 128], strides = [1, 1]} : vector<16x128xf32> to vector<8x128xf32>
    %c0_59 = arith.constant 0 : index
    %c0_60 = arith.constant 0 : index
    %c0_61 = arith.constant 0 : index
    %98 = vector.load %arg3[%c0_59, %c0_60, %c0_61] : memref<4x192x64xf32, #tpu.memory_space<vmem>>, vector<1x192x64xf32>
    %99 = vector.shape_cast %98 : vector<1x192x64xf32> to vector<192x64xf32>
    %100 = vector.extract_strided_slice %99 {offsets = [0, 0], sizes = [128, 64], strides = [1, 1]} : vector<192x64xf32> to vector<128x64xf32>
    %cst_62 = arith.constant dense<0.000000e+00> : vector<8x64xf32>
    %101 = tpu.matmul %97, %100, %cst_62 {dimension_numbers = #tpu.dot_dimension_numbers<[1], [0], [0], [1], [0, 0, 1, 1], [], []>} : vector<8x128xf32>, vector<128x64xf32>, vector<8x64xf32> -> vector<8x64xf32>
    %102 = vector.extract_strided_slice %99 {offsets = [128, 0], sizes = [64, 64], strides = [1, 1]} : vector<192x64xf32> to vector<64x64xf32>
    %cst_63 = arith.constant dense<0.000000e+00> : vector<8x64xf32>
    %103 = tpu.matmul %95, %102, %cst_63 {dimension_numbers = #tpu.dot_dimension_numbers<[1], [0], [0], [1], [0, 0, 1, 1], [], []>} : vector<8x64xf32>, vector<64x64xf32>, vector<8x64xf32> -> vector<8x64xf32>
    %104 = arith.addf %101, %103 : vector<8x64xf32>
    %c3_64 = arith.constant 3 : index
    %c0_65 = arith.constant 0 : index
    %105 = vector.load %arg6[%c3_64, %c0_65] : memref<9x128xf32, #tpu.memory_space<vmem>>, vector<1x64xf32>
    %106 = vector.shape_cast %105 : vector<1x64xf32> to vector<64xf32>
    %107 = vector.shape_cast %106 : vector<64xf32> to vector<1x64xf32>
    %108 = vector.broadcast %107 : vector<1x64xf32> to vector<8x64xf32>
    %109 = arith.addf %104, %108 : vector<8x64xf32>
    %c1_66 = arith.constant 1 : index
    %c0_67 = arith.constant 0 : index
    %c0_68 = arith.constant 0 : index
    %110 = vector.load %arg3[%c1_66, %c0_67, %c0_68] : memref<4x192x64xf32, #tpu.memory_space<vmem>>, vector<1x192x64xf32>
    %111 = vector.shape_cast %110 : vector<1x192x64xf32> to vector<192x64xf32>
    %112 = vector.extract_strided_slice %111 {offsets = [0, 0], sizes = [128, 64], strides = [1, 1]} : vector<192x64xf32> to vector<128x64xf32>
    %cst_69 = arith.constant dense<0.000000e+00> : vector<8x64xf32>
    %113 = tpu.matmul %97, %112, %cst_69 {dimension_numbers = #tpu.dot_dimension_numbers<[1], [0], [0], [1], [0, 0, 1, 1], [], []>} : vector<8x128xf32>, vector<128x64xf32>, vector<8x64xf32> -> vector<8x64xf32>
    %114 = vector.extract_strided_slice %111 {offsets = [128, 0], sizes = [64, 64], strides = [1, 1]} : vector<192x64xf32> to vector<64x64xf32>
    %cst_70 = arith.constant dense<0.000000e+00> : vector<8x64xf32>
    %115 = tpu.matmul %95, %114, %cst_70 {dimension_numbers = #tpu.dot_dimension_numbers<[1], [0], [0], [1], [0, 0, 1, 1], [], []>} : vector<8x64xf32>, vector<64x64xf32>, vector<8x64xf32> -> vector<8x64xf32>
    %116 = arith.addf %113, %115 : vector<8x64xf32>
    %c4_71 = arith.constant 4 : index
    %c0_72 = arith.constant 0 : index
    %117 = vector.load %arg6[%c4_71, %c0_72] : memref<9x128xf32, #tpu.memory_space<vmem>>, vector<1x64xf32>
    %118 = vector.shape_cast %117 : vector<1x64xf32> to vector<64xf32>
    %119 = vector.shape_cast %118 : vector<64xf32> to vector<1x64xf32>
    %120 = vector.broadcast %119 : vector<1x64xf32> to vector<8x64xf32>
    %121 = arith.addf %116, %120 : vector<8x64xf32>
    %c2_73 = arith.constant 2 : index
    %c0_74 = arith.constant 0 : index
    %c0_75 = arith.constant 0 : index
    %122 = vector.load %arg3[%c2_73, %c0_74, %c0_75] : memref<4x192x64xf32, #tpu.memory_space<vmem>>, vector<1x192x64xf32>
    %123 = vector.shape_cast %122 : vector<1x192x64xf32> to vector<192x64xf32>
    %124 = vector.extract_strided_slice %123 {offsets = [0, 0], sizes = [128, 64], strides = [1, 1]} : vector<192x64xf32> to vector<128x64xf32>
    %cst_76 = arith.constant dense<0.000000e+00> : vector<8x64xf32>
    %125 = tpu.matmul %97, %124, %cst_76 {dimension_numbers = #tpu.dot_dimension_numbers<[1], [0], [0], [1], [0, 0, 1, 1], [], []>} : vector<8x128xf32>, vector<128x64xf32>, vector<8x64xf32> -> vector<8x64xf32>
    %126 = vector.extract_strided_slice %123 {offsets = [128, 0], sizes = [64, 64], strides = [1, 1]} : vector<192x64xf32> to vector<64x64xf32>
    %cst_77 = arith.constant dense<0.000000e+00> : vector<8x64xf32>
    %127 = tpu.matmul %95, %126, %cst_77 {dimension_numbers = #tpu.dot_dimension_numbers<[1], [0], [0], [1], [0, 0, 1, 1], [], []>} : vector<8x64xf32>, vector<64x64xf32>, vector<8x64xf32> -> vector<8x64xf32>
    %128 = arith.addf %125, %127 : vector<8x64xf32>
    %c5_78 = arith.constant 5 : index
    %c0_79 = arith.constant 0 : index
    %129 = vector.load %arg6[%c5_78, %c0_79] : memref<9x128xf32, #tpu.memory_space<vmem>>, vector<1x64xf32>
    %130 = vector.shape_cast %129 : vector<1x64xf32> to vector<64xf32>
    %131 = vector.shape_cast %130 : vector<64xf32> to vector<1x64xf32>
    %132 = vector.broadcast %131 : vector<1x64xf32> to vector<8x64xf32>
    %133 = arith.addf %128, %132 : vector<8x64xf32>
    %c3_80 = arith.constant 3 : index
    %c0_81 = arith.constant 0 : index
    %c0_82 = arith.constant 0 : index
    %134 = vector.load %arg3[%c3_80, %c0_81, %c0_82] : memref<4x192x64xf32, #tpu.memory_space<vmem>>, vector<1x192x64xf32>
    %135 = vector.shape_cast %134 : vector<1x192x64xf32> to vector<192x64xf32>
    %136 = vector.extract_strided_slice %135 {offsets = [0, 0], sizes = [128, 64], strides = [1, 1]} : vector<192x64xf32> to vector<128x64xf32>
    %cst_83 = arith.constant dense<0.000000e+00> : vector<8x64xf32>
    %137 = tpu.matmul %97, %136, %cst_83 {dimension_numbers = #tpu.dot_dimension_numbers<[1], [0], [0], [1], [0, 0, 1, 1], [], []>} : vector<8x128xf32>, vector<128x64xf32>, vector<8x64xf32> -> vector<8x64xf32>
    %138 = vector.extract_strided_slice %135 {offsets = [128, 0], sizes = [64, 64], strides = [1, 1]} : vector<192x64xf32> to vector<64x64xf32>
    %cst_84 = arith.constant dense<0.000000e+00> : vector<8x64xf32>
    %139 = tpu.matmul %95, %138, %cst_84 {dimension_numbers = #tpu.dot_dimension_numbers<[1], [0], [0], [1], [0, 0, 1, 1], [], []>} : vector<8x64xf32>, vector<64x64xf32>, vector<8x64xf32> -> vector<8x64xf32>
    %140 = arith.addf %137, %139 : vector<8x64xf32>
    %c6 = arith.constant 6 : index
    %c0_85 = arith.constant 0 : index
    %141 = vector.load %arg6[%c6, %c0_85] : memref<9x128xf32, #tpu.memory_space<vmem>>, vector<1x64xf32>
    %142 = vector.shape_cast %141 : vector<1x64xf32> to vector<64xf32>
    %143 = vector.shape_cast %142 : vector<64xf32> to vector<1x64xf32>
    %144 = vector.broadcast %143 : vector<1x64xf32> to vector<8x64xf32>
    %145 = arith.addf %140, %144 : vector<8x64xf32>
    %146 = arith.negf %109 : vector<8x64xf32>
    %147 = math.exp %146 : vector<8x64xf32>
    %cst_86 = arith.constant 1.000000e+00 : f32
    %148 = vector.broadcast %cst_86 : f32 to vector<8x64xf32>
    %149 = arith.addf %148, %147 : vector<8x64xf32>
    %150 = arith.divf %148, %149 : vector<8x64xf32>
    %151 = arith.negf %121 : vector<8x64xf32>
    %152 = math.exp %151 : vector<8x64xf32>
    %cst_87 = arith.constant 1.000000e+00 : f32
    %153 = vector.broadcast %cst_87 : f32 to vector<8x64xf32>
    %154 = arith.addf %153, %152 : vector<8x64xf32>
    %155 = arith.divf %153, %154 : vector<8x64xf32>
    %156 = math.tanh %133 : vector<8x64xf32>
    %157 = arith.negf %145 : vector<8x64xf32>
    %158 = math.exp %157 : vector<8x64xf32>
    %cst_88 = arith.constant 1.000000e+00 : f32
    %159 = vector.broadcast %cst_88 : f32 to vector<8x64xf32>
    %160 = arith.addf %159, %158 : vector<8x64xf32>
    %161 = arith.divf %159, %160 : vector<8x64xf32>
    %162 = arith.mulf %155, %96 : vector<8x64xf32>
    %163 = arith.mulf %150, %156 : vector<8x64xf32>
    %164 = arith.addf %162, %163 : vector<8x64xf32>
    %165 = math.tanh %164 : vector<8x64xf32>
    %166 = arith.mulf %161, %165 : vector<8x64xf32>
    %167 = vector.extract_strided_slice %94 {offsets = [8, 0], sizes = [8, 128], strides = [1, 1]} : vector<16x128xf32> to vector<8x128xf32>
    %c0_89 = arith.constant 0 : index
    %c0_90 = arith.constant 0 : index
    %c0_91 = arith.constant 0 : index
    %168 = vector.load %arg3[%c0_89, %c0_90, %c0_91] : memref<4x192x64xf32, #tpu.memory_space<vmem>>, vector<1x192x64xf32>
    %169 = vector.shape_cast %168 : vector<1x192x64xf32> to vector<192x64xf32>
    %170 = vector.extract_strided_slice %169 {offsets = [0, 0], sizes = [128, 64], strides = [1, 1]} : vector<192x64xf32> to vector<128x64xf32>
    %cst_92 = arith.constant dense<0.000000e+00> : vector<8x64xf32>
    %171 = tpu.matmul %167, %170, %cst_92 {dimension_numbers = #tpu.dot_dimension_numbers<[1], [0], [0], [1], [0, 0, 1, 1], [], []>} : vector<8x128xf32>, vector<128x64xf32>, vector<8x64xf32> -> vector<8x64xf32>
    %172 = vector.extract_strided_slice %169 {offsets = [128, 0], sizes = [64, 64], strides = [1, 1]} : vector<192x64xf32> to vector<64x64xf32>
    %cst_93 = arith.constant dense<0.000000e+00> : vector<8x64xf32>
    %173 = tpu.matmul %166, %172, %cst_93 {dimension_numbers = #tpu.dot_dimension_numbers<[1], [0], [0], [1], [0, 0, 1, 1], [], []>} : vector<8x64xf32>, vector<64x64xf32>, vector<8x64xf32> -> vector<8x64xf32>
    %174 = arith.addf %171, %173 : vector<8x64xf32>
    %c3_94 = arith.constant 3 : index
    %c0_95 = arith.constant 0 : index
    %175 = vector.load %arg6[%c3_94, %c0_95] : memref<9x128xf32, #tpu.memory_space<vmem>>, vector<1x64xf32>
    %176 = vector.shape_cast %175 : vector<1x64xf32> to vector<64xf32>
    %177 = vector.shape_cast %176 : vector<64xf32> to vector<1x64xf32>
    %178 = vector.broadcast %177 : vector<1x64xf32> to vector<8x64xf32>
    %179 = arith.addf %174, %178 : vector<8x64xf32>
    %c1_96 = arith.constant 1 : index
    %c0_97 = arith.constant 0 : index
    %c0_98 = arith.constant 0 : index
    %180 = vector.load %arg3[%c1_96, %c0_97, %c0_98] : memref<4x192x64xf32, #tpu.memory_space<vmem>>, vector<1x192x64xf32>
    %181 = vector.shape_cast %180 : vector<1x192x64xf32> to vector<192x64xf32>
    %182 = vector.extract_strided_slice %181 {offsets = [0, 0], sizes = [128, 64], strides = [1, 1]} : vector<192x64xf32> to vector<128x64xf32>
    %cst_99 = arith.constant dense<0.000000e+00> : vector<8x64xf32>
    %183 = tpu.matmul %167, %182, %cst_99 {dimension_numbers = #tpu.dot_dimension_numbers<[1], [0], [0], [1], [0, 0, 1, 1], [], []>} : vector<8x128xf32>, vector<128x64xf32>, vector<8x64xf32> -> vector<8x64xf32>
    %184 = vector.extract_strided_slice %181 {offsets = [128, 0], sizes = [64, 64], strides = [1, 1]} : vector<192x64xf32> to vector<64x64xf32>
    %cst_100 = arith.constant dense<0.000000e+00> : vector<8x64xf32>
    %185 = tpu.matmul %166, %184, %cst_100 {dimension_numbers = #tpu.dot_dimension_numbers<[1], [0], [0], [1], [0, 0, 1, 1], [], []>} : vector<8x64xf32>, vector<64x64xf32>, vector<8x64xf32> -> vector<8x64xf32>
    %186 = arith.addf %183, %185 : vector<8x64xf32>
    %c4_101 = arith.constant 4 : index
    %c0_102 = arith.constant 0 : index
    %187 = vector.load %arg6[%c4_101, %c0_102] : memref<9x128xf32, #tpu.memory_space<vmem>>, vector<1x64xf32>
    %188 = vector.shape_cast %187 : vector<1x64xf32> to vector<64xf32>
    %189 = vector.shape_cast %188 : vector<64xf32> to vector<1x64xf32>
    %190 = vector.broadcast %189 : vector<1x64xf32> to vector<8x64xf32>
    %191 = arith.addf %186, %190 : vector<8x64xf32>
    %c2_103 = arith.constant 2 : index
    %c0_104 = arith.constant 0 : index
    %c0_105 = arith.constant 0 : index
    %192 = vector.load %arg3[%c2_103, %c0_104, %c0_105] : memref<4x192x64xf32, #tpu.memory_space<vmem>>, vector<1x192x64xf32>
    %193 = vector.shape_cast %192 : vector<1x192x64xf32> to vector<192x64xf32>
    %194 = vector.extract_strided_slice %193 {offsets = [0, 0], sizes = [128, 64], strides = [1, 1]} : vector<192x64xf32> to vector<128x64xf32>
    %cst_106 = arith.constant dense<0.000000e+00> : vector<8x64xf32>
    %195 = tpu.matmul %167, %194, %cst_106 {dimension_numbers = #tpu.dot_dimension_numbers<[1], [0], [0], [1], [0, 0, 1, 1], [], []>} : vector<8x128xf32>, vector<128x64xf32>, vector<8x64xf32> -> vector<8x64xf32>
    %196 = vector.extract_strided_slice %193 {offsets = [128, 0], sizes = [64, 64], strides = [1, 1]} : vector<192x64xf32> to vector<64x64xf32>
    %cst_107 = arith.constant dense<0.000000e+00> : vector<8x64xf32>
    %197 = tpu.matmul %166, %196, %cst_107 {dimension_numbers = #tpu.dot_dimension_numbers<[1], [0], [0], [1], [0, 0, 1, 1], [], []>} : vector<8x64xf32>, vector<64x64xf32>, vector<8x64xf32> -> vector<8x64xf32>
    %198 = arith.addf %195, %197 : vector<8x64xf32>
    %c5_108 = arith.constant 5 : index
    %c0_109 = arith.constant 0 : index
    %199 = vector.load %arg6[%c5_108, %c0_109] : memref<9x128xf32, #tpu.memory_space<vmem>>, vector<1x64xf32>
    %200 = vector.shape_cast %199 : vector<1x64xf32> to vector<64xf32>
    %201 = vector.shape_cast %200 : vector<64xf32> to vector<1x64xf32>
    %202 = vector.broadcast %201 : vector<1x64xf32> to vector<8x64xf32>
    %203 = arith.addf %198, %202 : vector<8x64xf32>
    %c3_110 = arith.constant 3 : index
    %c0_111 = arith.constant 0 : index
    %c0_112 = arith.constant 0 : index
    %204 = vector.load %arg3[%c3_110, %c0_111, %c0_112] : memref<4x192x64xf32, #tpu.memory_space<vmem>>, vector<1x192x64xf32>
    %205 = vector.shape_cast %204 : vector<1x192x64xf32> to vector<192x64xf32>
    %206 = vector.extract_strided_slice %205 {offsets = [0, 0], sizes = [128, 64], strides = [1, 1]} : vector<192x64xf32> to vector<128x64xf32>
    %cst_113 = arith.constant dense<0.000000e+00> : vector<8x64xf32>
    %207 = tpu.matmul %167, %206, %cst_113 {dimension_numbers = #tpu.dot_dimension_numbers<[1], [0], [0], [1], [0, 0, 1, 1], [], []>} : vector<8x128xf32>, vector<128x64xf32>, vector<8x64xf32> -> vector<8x64xf32>
    %208 = vector.extract_strided_slice %205 {offsets = [128, 0], sizes = [64, 64], strides = [1, 1]} : vector<192x64xf32> to vector<64x64xf32>
    %cst_114 = arith.constant dense<0.000000e+00> : vector<8x64xf32>
    %209 = tpu.matmul %166, %208, %cst_114 {dimension_numbers = #tpu.dot_dimension_numbers<[1], [0], [0], [1], [0, 0, 1, 1], [], []>} : vector<8x64xf32>, vector<64x64xf32>, vector<8x64xf32> -> vector<8x64xf32>
    %210 = arith.addf %207, %209 : vector<8x64xf32>
    %c6_115 = arith.constant 6 : index
    %c0_116 = arith.constant 0 : index
    %211 = vector.load %arg6[%c6_115, %c0_116] : memref<9x128xf32, #tpu.memory_space<vmem>>, vector<1x64xf32>
    %212 = vector.shape_cast %211 : vector<1x64xf32> to vector<64xf32>
    %213 = vector.shape_cast %212 : vector<64xf32> to vector<1x64xf32>
    %214 = vector.broadcast %213 : vector<1x64xf32> to vector<8x64xf32>
    %215 = arith.addf %210, %214 : vector<8x64xf32>
    %216 = arith.negf %179 : vector<8x64xf32>
    %217 = math.exp %216 : vector<8x64xf32>
    %cst_117 = arith.constant 1.000000e+00 : f32
    %218 = vector.broadcast %cst_117 : f32 to vector<8x64xf32>
    %219 = arith.addf %218, %217 : vector<8x64xf32>
    %220 = arith.divf %218, %219 : vector<8x64xf32>
    %221 = arith.negf %191 : vector<8x64xf32>
    %222 = math.exp %221 : vector<8x64xf32>
    %cst_118 = arith.constant 1.000000e+00 : f32
    %223 = vector.broadcast %cst_118 : f32 to vector<8x64xf32>
    %224 = arith.addf %223, %222 : vector<8x64xf32>
    %225 = arith.divf %223, %224 : vector<8x64xf32>
    %226 = math.tanh %203 : vector<8x64xf32>
    %227 = arith.negf %215 : vector<8x64xf32>
    %228 = math.exp %227 : vector<8x64xf32>
    %cst_119 = arith.constant 1.000000e+00 : f32
    %229 = vector.broadcast %cst_119 : f32 to vector<8x64xf32>
    %230 = arith.addf %229, %228 : vector<8x64xf32>
    %231 = arith.divf %229, %230 : vector<8x64xf32>
    %232 = arith.mulf %225, %164 : vector<8x64xf32>
    %233 = arith.mulf %220, %226 : vector<8x64xf32>
    %234 = arith.addf %232, %233 : vector<8x64xf32>
    %235 = math.tanh %234 : vector<8x64xf32>
    %236 = arith.mulf %231, %235 : vector<8x64xf32>
    %237 = vector.shape_cast %166 : vector<8x64xf32> to vector<1x8x64xf32>
    %238 = vector.shape_cast %236 : vector<8x64xf32> to vector<1x8x64xf32>
    %239 = tpu.concatenate %237, %238 in 0 : vector<1x8x64xf32>, vector<1x8x64xf32> -> vector<2x8x64xf32>
    %cst_120 = arith.constant 0.000000e+00 : f32
    %240 = vector.broadcast %cst_120 : f32 to vector<2x32xf32>
    %241 = vector.extract_strided_slice %239 {offsets = [0, 0, 0], sizes = [2, 1, 64], strides = [1, 1, 1]} : vector<2x8x64xf32> to vector<2x1x64xf32>
    %242 = vector.shape_cast %241 : vector<2x1x64xf32> to vector<2x64xf32>
    %c0_121 = arith.constant 0 : index
    %c0_122 = arith.constant 0 : index
    %c0_123 = arith.constant 0 : index
    %243 = vector.load %arg4[%c0_121, %c0_122, %c0_123] : memref<8x64x32xf32, #tpu.memory_space<vmem>>, vector<1x64x32xf32>
    %244 = vector.shape_cast %243 : vector<1x64x32xf32> to vector<64x32xf32>
    %cst_124 = arith.constant dense<0.000000e+00> : vector<2x32xf32>
    %245 = tpu.matmul %242, %244, %cst_124 {dimension_numbers = #tpu.dot_dimension_numbers<[1], [0], [0], [1], [0, 0, 1, 1], [], []>} : vector<2x64xf32>, vector<64x32xf32>, vector<2x32xf32> -> vector<2x32xf32>
    %246 = arith.addf %240, %245 : vector<2x32xf32>
    %247 = vector.extract_strided_slice %239 {offsets = [0, 1, 0], sizes = [2, 1, 64], strides = [1, 1, 1]} : vector<2x8x64xf32> to vector<2x1x64xf32>
    %248 = vector.shape_cast %247 : vector<2x1x64xf32> to vector<2x64xf32>
    %c1_125 = arith.constant 1 : index
    %c0_126 = arith.constant 0 : index
    %c0_127 = arith.constant 0 : index
    %249 = vector.load %arg4[%c1_125, %c0_126, %c0_127] : memref<8x64x32xf32, #tpu.memory_space<vmem>>, vector<1x64x32xf32>
    %250 = vector.shape_cast %249 : vector<1x64x32xf32> to vector<64x32xf32>
    %cst_128 = arith.constant dense<0.000000e+00> : vector<2x32xf32>
    %251 = tpu.matmul %248, %250, %cst_128 {dimension_numbers = #tpu.dot_dimension_numbers<[1], [0], [0], [1], [0, 0, 1, 1], [], []>} : vector<2x64xf32>, vector<64x32xf32>, vector<2x32xf32> -> vector<2x32xf32>
    %252 = arith.addf %246, %251 : vector<2x32xf32>
    %253 = vector.extract_strided_slice %239 {offsets = [0, 2, 0], sizes = [2, 1, 64], strides = [1, 1, 1]} : vector<2x8x64xf32> to vector<2x1x64xf32>
    %254 = vector.shape_cast %253 : vector<2x1x64xf32> to vector<2x64xf32>
    %c2_129 = arith.constant 2 : index
    %c0_130 = arith.constant 0 : index
    %c0_131 = arith.constant 0 : index
    %255 = vector.load %arg4[%c2_129, %c0_130, %c0_131] : memref<8x64x32xf32, #tpu.memory_space<vmem>>, vector<1x64x32xf32>
    %256 = vector.shape_cast %255 : vector<1x64x32xf32> to vector<64x32xf32>
    %cst_132 = arith.constant dense<0.000000e+00> : vector<2x32xf32>
    %257 = tpu.matmul %254, %256, %cst_132 {dimension_numbers = #tpu.dot_dimension_numbers<[1], [0], [0], [1], [0, 0, 1, 1], [], []>} : vector<2x64xf32>, vector<64x32xf32>, vector<2x32xf32> -> vector<2x32xf32>
    %258 = arith.addf %252, %257 : vector<2x32xf32>
    %259 = vector.extract_strided_slice %239 {offsets = [0, 3, 0], sizes = [2, 1, 64], strides = [1, 1, 1]} : vector<2x8x64xf32> to vector<2x1x64xf32>
    %260 = vector.shape_cast %259 : vector<2x1x64xf32> to vector<2x64xf32>
    %c3_133 = arith.constant 3 : index
    %c0_134 = arith.constant 0 : index
    %c0_135 = arith.constant 0 : index
    %261 = vector.load %arg4[%c3_133, %c0_134, %c0_135] : memref<8x64x32xf32, #tpu.memory_space<vmem>>, vector<1x64x32xf32>
    %262 = vector.shape_cast %261 : vector<1x64x32xf32> to vector<64x32xf32>
    %cst_136 = arith.constant dense<0.000000e+00> : vector<2x32xf32>
    %263 = tpu.matmul %260, %262, %cst_136 {dimension_numbers = #tpu.dot_dimension_numbers<[1], [0], [0], [1], [0, 0, 1, 1], [], []>} : vector<2x64xf32>, vector<64x32xf32>, vector<2x32xf32> -> vector<2x32xf32>
    %264 = arith.addf %258, %263 : vector<2x32xf32>
    %265 = vector.extract_strided_slice %239 {offsets = [0, 4, 0], sizes = [2, 1, 64], strides = [1, 1, 1]} : vector<2x8x64xf32> to vector<2x1x64xf32>
    %266 = vector.shape_cast %265 : vector<2x1x64xf32> to vector<2x64xf32>
    %c4_137 = arith.constant 4 : index
    %c0_138 = arith.constant 0 : index
    %c0_139 = arith.constant 0 : index
    %267 = vector.load %arg4[%c4_137, %c0_138, %c0_139] : memref<8x64x32xf32, #tpu.memory_space<vmem>>, vector<1x64x32xf32>
    %268 = vector.shape_cast %267 : vector<1x64x32xf32> to vector<64x32xf32>
    %cst_140 = arith.constant dense<0.000000e+00> : vector<2x32xf32>
    %269 = tpu.matmul %266, %268, %cst_140 {dimension_numbers = #tpu.dot_dimension_numbers<[1], [0], [0], [1], [0, 0, 1, 1], [], []>} : vector<2x64xf32>, vector<64x32xf32>, vector<2x32xf32> -> vector<2x32xf32>
    %270 = arith.addf %264, %269 : vector<2x32xf32>
    %271 = vector.extract_strided_slice %239 {offsets = [0, 5, 0], sizes = [2, 1, 64], strides = [1, 1, 1]} : vector<2x8x64xf32> to vector<2x1x64xf32>
    %272 = vector.shape_cast %271 : vector<2x1x64xf32> to vector<2x64xf32>
    %c5_141 = arith.constant 5 : index
    %c0_142 = arith.constant 0 : index
    %c0_143 = arith.constant 0 : index
    %273 = vector.load %arg4[%c5_141, %c0_142, %c0_143] : memref<8x64x32xf32, #tpu.memory_space<vmem>>, vector<1x64x32xf32>
    %274 = vector.shape_cast %273 : vector<1x64x32xf32> to vector<64x32xf32>
    %cst_144 = arith.constant dense<0.000000e+00> : vector<2x32xf32>
    %275 = tpu.matmul %272, %274, %cst_144 {dimension_numbers = #tpu.dot_dimension_numbers<[1], [0], [0], [1], [0, 0, 1, 1], [], []>} : vector<2x64xf32>, vector<64x32xf32>, vector<2x32xf32> -> vector<2x32xf32>
    %276 = arith.addf %270, %275 : vector<2x32xf32>
    %277 = vector.extract_strided_slice %239 {offsets = [0, 6, 0], sizes = [2, 1, 64], strides = [1, 1, 1]} : vector<2x8x64xf32> to vector<2x1x64xf32>
    %278 = vector.shape_cast %277 : vector<2x1x64xf32> to vector<2x64xf32>
    %c6_145 = arith.constant 6 : index
    %c0_146 = arith.constant 0 : index
    %c0_147 = arith.constant 0 : index
    %279 = vector.load %arg4[%c6_145, %c0_146, %c0_147] : memref<8x64x32xf32, #tpu.memory_space<vmem>>, vector<1x64x32xf32>
    %280 = vector.shape_cast %279 : vector<1x64x32xf32> to vector<64x32xf32>
    %cst_148 = arith.constant dense<0.000000e+00> : vector<2x32xf32>
    %281 = tpu.matmul %278, %280, %cst_148 {dimension_numbers = #tpu.dot_dimension_numbers<[1], [0], [0], [1], [0, 0, 1, 1], [], []>} : vector<2x64xf32>, vector<64x32xf32>, vector<2x32xf32> -> vector<2x32xf32>
    %282 = arith.addf %276, %281 : vector<2x32xf32>
    %283 = vector.extract_strided_slice %239 {offsets = [0, 7, 0], sizes = [2, 1, 64], strides = [1, 1, 1]} : vector<2x8x64xf32> to vector<2x1x64xf32>
    %284 = vector.shape_cast %283 : vector<2x1x64xf32> to vector<2x64xf32>
    %c7 = arith.constant 7 : index
    %c0_149 = arith.constant 0 : index
    %c0_150 = arith.constant 0 : index
    %285 = vector.load %arg4[%c7, %c0_149, %c0_150] : memref<8x64x32xf32, #tpu.memory_space<vmem>>, vector<1x64x32xf32>
    %286 = vector.shape_cast %285 : vector<1x64x32xf32> to vector<64x32xf32>
    %cst_151 = arith.constant dense<0.000000e+00> : vector<2x32xf32>
    %287 = tpu.matmul %284, %286, %cst_151 {dimension_numbers = #tpu.dot_dimension_numbers<[1], [0], [0], [1], [0, 0, 1, 1], [], []>} : vector<2x64xf32>, vector<64x32xf32>, vector<2x32xf32> -> vector<2x32xf32>
    %288 = arith.addf %282, %287 : vector<2x32xf32>
    %c7_152 = arith.constant 7 : index
    %c0_153 = arith.constant 0 : index
    %289 = vector.load %arg6[%c7_152, %c0_153] : memref<9x128xf32, #tpu.memory_space<vmem>>, vector<1x32xf32>
    %290 = vector.shape_cast %289 : vector<1x32xf32> to vector<32xf32>
    %291 = vector.shape_cast %290 : vector<32xf32> to vector<1x32xf32>
    %292 = vector.broadcast %291 : vector<1x32xf32> to vector<2x32xf32>
    %293 = arith.addf %288, %292 : vector<2x32xf32>
    %c0_154 = arith.constant 0 : index
    %c0_155 = arith.constant 0 : index
    %294 = vector.load %arg5[%c0_154, %c0_155] : memref<32x2xf32, #tpu.memory_space<vmem>>, vector<32x2xf32>
    %cst_156 = arith.constant dense<0.000000e+00> : vector<2x2xf32>
    %295 = tpu.matmul %293, %294, %cst_156 {dimension_numbers = #tpu.dot_dimension_numbers<[1], [0], [0], [1], [0, 0, 1, 1], [], []>} : vector<2x32xf32>, vector<32x2xf32>, vector<2x2xf32> -> vector<2x2xf32>
    %c8 = arith.constant 8 : index
    %c0_157 = arith.constant 0 : index
    %296 = vector.load %arg6[%c8, %c0_157] : memref<9x128xf32, #tpu.memory_space<vmem>>, vector<1x2xf32>
    %297 = vector.shape_cast %296 : vector<1x2xf32> to vector<2xf32>
    %298 = vector.shape_cast %297 : vector<2xf32> to vector<1x2xf32>
    %299 = vector.broadcast %298 : vector<1x2xf32> to vector<2x2xf32>
    %300 = arith.addf %295, %299 : vector<2x2xf32>
    %cst_158 = arith.constant dense<0xFF800000> : vector<2xf32>
    %301 = vector.multi_reduction <maximumf>, %300, %cst_158 [1] : vector<2x2xf32> to vector<2xf32>
    %302 = vector.shape_cast %301 : vector<2xf32> to vector<2x1xf32>
    %303 = vector.broadcast %302 : vector<2x1xf32> to vector<2x2xf32>
    %304 = arith.subf %300, %303 : vector<2x2xf32>
    %305 = math.exp %304 : vector<2x2xf32>
    %cst_159 = arith.constant dense<0.000000e+00> : vector<2xf32>
    %306 = vector.multi_reduction <add>, %305, %cst_159 [1] : vector<2x2xf32> to vector<2xf32>
    %307 = vector.shape_cast %306 : vector<2xf32> to vector<2x1xf32>
    %308 = vector.broadcast %307 : vector<2x1xf32> to vector<2x2xf32>
    %309 = arith.divf %305, %308 : vector<2x2xf32>
    %c0_160 = arith.constant 0 : index
    %c0_161 = arith.constant 0 : index
    %310 = vector.load %arg7[%c0_160, %c0_161] : memref<2x2xf32, #tpu.memory_space<vmem>>, vector<2x2xf32>
    tpu.vector_store %arg7[%c0_160, %c0_161], %309 {strides = array<i32>} : memref<2x2xf32, #tpu.memory_space<vmem>>, vector<2x2xf32>,
    return
  }
}

</mosaic_0001>

<llo_original>
// kernel: lstm1_forward.1
$region0: #{lstm1_forward.1}
  #allocation0 [shape = 'u32[]', space=smem, size = 0x4, offset = 0x4, fixed_abs, tag = 'smem constant byte address 0x4 - core index']
  #allocation1 [shape = 'u32[144,128]{1,0:T(1,128)}', space=vmem, size = 0x12000, scoped, tag = 'internal scratch']
  %s0 = inlined_call_operand.vmem [shape: f32[16,4], index: 0, kind: input, shape index: {}]
  %s1 = inlined_call_operand.vmem [shape: f32[4,4,120], index: 1, kind: input, shape index: {}]
  %s2 = inlined_call_operand.vmem [shape: f32[6,120,128], index: 2, kind: input, shape index: {}]
  %s3 = inlined_call_operand.vmem [shape: f32[4,192,64], index: 3, kind: input, shape index: {}]
  %s4 = inlined_call_operand.vmem [shape: f32[8,64,32], index: 4, kind: input, shape index: {}]
  %s5 = inlined_call_operand.vmem [shape: f32[32,2], index: 5, kind: input, shape index: {}]
  %s6 = inlined_call_operand.vmem [shape: f32[9,128], index: 6, kind: input, shape index: {}]
  %s7 = inlined_call_operand.hbm [shape: f32[2,2], index: 7, kind: output, shape index: {}]
  %s8 = sld [smem:[#allocation0]]
  $region38: #{lstm1_forward.1} parent=0
    _
  %s10 = ssub.s32 1, %s8
  %s11 = scalar_select 0, %s10, %s8
  $region1: #{lstm1_forward.1} parent=0
    #allocation2 [shape = 'u8[1024]{0}', space=vmem, size = 0x400, scoped, tag = 'output window, operand 0, single buffered']
    #allocation3 [shape = 's32[1]{0}', space=sflag, size = 0x4, scoped, tag = 'scoped memory for lstm1_forward.1']
    %12 = vsyncpa [#allocation3], 0
    // Predicated region
    $region2: #{lstm1_forward.1} parent=1 // pred_check
      _
    $region3: #{lstm1_forward.1} parent=1 // pred_check_branch
      %14 = sbr.rel (0) target = $region5
    $region4: #{lstm1_forward.1} parent=1 // pred_region
      _
    $region5: #{lstm1_forward.1} parent=1 // pred_fallthru
      _
    // Predicated region
    $region6: #{lstm1_forward.1} parent=1 // pred_check
      _
    $region7: #{lstm1_forward.1} parent=1 // pred_check_branch
      %16 = sbr.rel (0) target = $region9
    $region8: #{lstm1_forward.1} parent=1 // pred_region
      _
    $region9: #{lstm1_forward.1} parent=1 // pred_fallthru
      _
    // Predicated region
    $region10: #{lstm1_forward.1} parent=1 // pred_check
      _
    $region11: #{lstm1_forward.1} parent=1 // pred_check_branch
      %18 = sbr.rel (0) target = $region13
    $region12: #{lstm1_forward.1} parent=1 // pred_region
      _
    $region13: #{lstm1_forward.1} parent=1 // pred_fallthru
      _
    // Predicated region
    $region14: #{lstm1_forward.1} parent=1 // pred_check
      _
    $region15: #{lstm1_forward.1} parent=1 // pred_check_branch
      %20 = sbr.rel (0) target = $region17
    $region16: #{lstm1_forward.1} parent=1 // pred_region
      _
    $region17: #{lstm1_forward.1} parent=1 // pred_fallthru
      _
    // Predicated region
    $region18: #{lstm1_forward.1} parent=1 // pred_check
      _
    $region19: #{lstm1_forward.1} parent=1 // pred_check_branch
      %22 = sbr.rel (0) target = $region21
    $region20: #{lstm1_forward.1} parent=1 // pred_region
      _
    $region21: #{lstm1_forward.1} parent=1 // pred_fallthru
      _
    // Predicated region
    $region22: #{lstm1_forward.1} parent=1 // pred_check
      _
    $region23: #{lstm1_forward.1} parent=1 // pred_check_branch
      %24 = sbr.rel (0) target = $region25
    $region24: #{lstm1_forward.1} parent=1 // pred_region
      _
    $region25: #{lstm1_forward.1} parent=1 // pred_fallthru
      _
    // Predicated region
    $region26: #{lstm1_forward.1} parent=1 // pred_check
      _
    $region27: #{lstm1_forward.1} parent=1 // pred_check_branch
      %26 = sbr.rel (0) target = $region29
    $region28: #{lstm1_forward.1} parent=1 // pred_region
      _
    $region29: #{lstm1_forward.1} parent=1 // pred_fallthru
      _
    %v27 = vld [vmem:[%s0] sm:$0xff]
    %v28 = vld [vmem:[%s0 + $0x8] sm:$0xff]
    %v29 = vlaneseq
    %v30 = vshrl.u32 %v29, 7
    %v31 = vadd.s32 %v30, 8
    %v32 = vlaneseq
    %v33 = vand.u32 %v32, 127
    %vm34 = vcmp.lt.s32.totalorder %v30, 0
    %v35 = vsub.s32 0, %v30
    %v36 = vsel %vm34, %v35, %v30
    %v37 = vshrl.u32 %v36, 3
    %v38 = vand.u32 %v36, 7
    %v39 = vsub.s32 0, %v38
    %v40 = vsel %vm34, %v39, %v38
    %vm41 = vcmp.lt.s32.totalorder %v31, 0
    %v42 = vsub.s32 0, %v31
    %v43 = vsel %vm41, %v42, %v31
    %v44 = vshrl.u32 %v43, 3
    %v45 = vand.u32 %v43, 7
    %v46 = vsub.s32 0, %v45
    %v47 = vsel %vm41, %v46, %v45
    %vm48 = vcmp.ne.s32.totalorder %v40, 0
    %vm49 = vcmp.ne.s32.totalorder %v47, 0
    %vm50 = vcmp.lt.s32.totalorder %v40, 0
    %vm51 = vcmp.lt.s32.totalorder %v47, 0
    %vm52 = vmand %vm50, %vm48
    %vm53 = vmand %vm51, %vm49
    %v54 = vadd.s32 %v40, 8
    %v55 = vadd.s32 %v47, 8
    %v56 = vsel %vm52, %v54, %v40
    %v57 = vsel %vm53, %v55, %v47
    %v58 = vsub.s32 %v30, 1
    %v59 = vsub.s32 %v31, 1
    %vm60 = vcmp.eq.s32.totalorder %v33, %v58
    %vm61 = vcmp.eq.s32.totalorder %v33, %v59
    %vm62 = vcmp.ne.s32.totalorder %v56, 0
    %vm63 = vcmp.ne.s32.totalorder %v57, 0
    %vm64 = vmand %vm60, %vm62
    %vm65 = vmand %vm61, %vm63
    %v66 = vsel %vm64, 1.0, 0.0
    %v67 = vsel %vm65, 1.0, 0.0
    %v68 = vadd.s32 %v30, 1
    %v69 = vadd.s32 %v31, 1
    %vm70 = vcmp.eq.s32.totalorder %v33, %v68
    %vm71 = vcmp.eq.s32.totalorder %v33, %v69
    %vm72 = vcmp.ne.s32.totalorder %v56, 7
    %vm73 = vcmp.ne.s32.totalorder %v57, 7
    %vm74 = vmand %vm70, %vm72
    %vm75 = vmand %vm71, %vm73
    %v76 = vsel %vm74, 1.0, 0.0
    %v77 = vsel %vm75, 1.0, 0.0
    %vm78 = vcmask 130048
    %v80 = vsel %vm78, %v66, 0
    %v83 = vsel %vm78, %v67, 0
    %85 = vmatprep.subr.mxu0 0.0
    %86 = vmatpush1.msra.mxu0 %v27
    %87 = vmatprep.subr.mxu0 0.0
    %88 = vmatpush1.msra.mxu0 %v28
    %89 = vmatprep.subr.mxu0 0.0
    %90 = vmatpush1.msra.mxu0 0.0
    %91 = vmatprep.subr.mxu0 0.0
    %92 = vmatpush1.msra.mxu0 0.0
    %93 = vmatprep.subr.mxu0 0.0
    %94 = vmatpush1.msra.mxu0 0.0
    %95 = vmatprep.subr.mxu0 0.0
    %96 = vmatpush1.msra.mxu0 0.0
    %97 = vmatprep.subr.mxu0 0.0
    %98 = vmatpush1.msra.mxu0 0.0
    %99 = vmatprep.subr.mxu0 0.0
    %100 = vmatpush1.msra.mxu0 0.0
    %101 = vmatprep.subr.mxu0 0.0
    %102 = vmatpush1.msra.mxu0 0.0
    %103 = vmatprep.subr.mxu0 0.0
    %104 = vmatpush1.msra.mxu0 0.0
    %105 = vmatprep.subr.mxu0 0.0
    %106 = vmatpush1.msra.mxu0 0.0
    %107 = vmatprep.subr.mxu0 0.0
    %108 = vmatpush1.msra.mxu0 0.0
    %109 = vmatprep.subr.mxu0 0.0
    %110 = vmatpush1.msra.mxu0 0.0
    %111 = vmatprep.subr.mxu0 0.0
    %112 = vmatpush1.msra.mxu0 0.0
    %113 = vmatprep.subr.mxu0 0.0
    %114 = vmatpush1.msra.mxu0 0.0
    %115 = vmatprep.subr.mxu0 0.0
    %116 = vmatpush1.msra.mxu0 0.0
    %117 = vmatprep.subr.mxu0 0.0
    %118 = vmatpush1.msra.mxu0 0.0
    %119 = vmatprep.subr.mxu0 0.0
    %120 = vmatpush1.msra.mxu0 0.0
    %121 = vmatprep.subr.mxu0 0.0
    %122 = vmatpush1.msra.mxu0 0.0
    %123 = vmatprep.subr.mxu0 0.0
    %124 = vmatpush1.msra.mxu0 0.0
    %125 = vmatprep.subr.mxu0 0.0
    %126 = vmatpush1.msra.mxu0 0.0
    %127 = vmatprep.subr.mxu0 0.0
    %128 = vmatpush1.msra.mxu0 0.0
    %129 = vmatprep.subr.mxu0 0.0
    %130 = vmatpush1.msra.mxu0 0.0
    %131 = vmatprep.subr.mxu0 0.0
    %132 = vmatpush1.msra.mxu0 0.0
    %133 = vmatprep.subr.mxu0 0.0
    %134 = vmatpush1.msra.mxu0 0.0
    %135 = vmatprep.subr.mxu0 0.0
    %136 = vmatpush1.msra.mxu0 0.0
    %137 = vmatprep.subr.mxu0 0.0
    %138 = vmatpush1.msra.mxu0 0.0
    %139 = vmatprep.subr.mxu0 0.0
    %140 = vmatpush1.msra.mxu0 0.0
    %141 = vmatprep.subr.mxu0 0.0
    %142 = vmatpush1.msra.mxu0 0.0
    %143 = vmatprep.subr.mxu0 0.0
    %144 = vmatpush1.msra.mxu0 0.0
    %145 = vmatprep.subr.mxu0 0.0
    %146 = vmatpush1.msra.mxu0 0.0
    %147 = vmatprep.subr.mxu0 0.0
    %148 = vmatpush1.msra.mxu0 0.0
    %149 = vmatprep.mubr.f32.mxu0 0.0
    %150 = vmatmul.mubr.f32.gmra.mrb[0].mxu0 %v80
    %v151 = vpop.f32.mrb[0].mxu0
    %v152 = vadd.f32 0.0, %v151
    %v153 = vpop.f32.mrb[0].mxu0
    %154 = vmatprep.mubr.f32.mxu0 0.0
    %155 = vmatmul.mubr.f32.gmra.mrb[0].mxu0 %v83
    %v156 = vpop.f32.mrb[0].mxu0
    %v157 = vadd.f32 0.0, %v156
    %v158 = vpop.f32.mrb[0].mxu0
    %159 = vdwg.mxu0
    %v161 = vsel %vm78, %v76, 0
    %v164 = vsel %vm78, %v77, 0
    %166 = vmatprep.subr.mxu0 0.0
    %167 = vmatpush1.msra.mxu0 %v27
    %168 = vmatprep.subr.mxu0 0.0
    %169 = vmatpush1.msra.mxu0 %v28
    %170 = vmatprep.subr.mxu0 0.0
    %171 = vmatpush1.msra.mxu0 0.0
    %172 = vmatprep.subr.mxu0 0.0
    %173 = vmatpush1.msra.mxu0 0.0
    %174 = vmatprep.subr.mxu0 0.0
    %175 = vmatpush1.msra.mxu0 0.0
    %176 = vmatprep.subr.mxu0 0.0
    %177 = vmatpush1.msra.mxu0 0.0
    %178 = vmatprep.subr.mxu0 0.0
    %179 = vmatpush1.msra.mxu0 0.0
    %180 = vmatprep.subr.mxu0 0.0
    %181 = vmatpush1.msra.mxu0 0.0
    %182 = vmatprep.subr.mxu0 0.0
    %183 = vmatpush1.msra.mxu0 0.0
    %184 = vmatprep.subr.mxu0 0.0
    %185 = vmatpush1.msra.mxu0 0.0
    %186 = vmatprep.subr.mxu0 0.0
    %187 = vmatpush1.msra.mxu0 0.0
    %188 = vmatprep.subr.mxu0 0.0
    %189 = vmatpush1.msra.mxu0 0.0
    %190 = vmatprep.subr.mxu0 0.0
    %191 = vmatpush1.msra.mxu0 0.0
    %192 = vmatprep.subr.mxu0 0.0
    %193 = vmatpush1.msra.mxu0 0.0
    %194 = vmatprep.subr.mxu0 0.0
    %195 = vmatpush1.msra.mxu0 0.0
    %196 = vmatprep.subr.mxu0 0.0
    %197 = vmatpush1.msra.mxu0 0.0
    %198 = vmatprep.subr.mxu0 0.0
    %199 = vmatpush1.msra.mxu0 0.0
    %200 = vmatprep.subr.mxu0 0.0
    %201 = vmatpush1.msra.mxu0 0.0
    %202 = vmatprep.subr.mxu0 0.0
    %203 = vmatpush1.msra.mxu0 0.0
    %204 = vmatprep.subr.mxu0 0.0
    %205 = vmatpush1.msra.mxu0 0.0
    %206 = vmatprep.subr.mxu0 0.0
    %207 = vmatpush1.msra.mxu0 0.0
    %208 = vmatprep.subr.mxu0 0.0
    %209 = vmatpush1.msra.mxu0 0.0
    %210 = vmatprep.subr.mxu0 0.0
    %211 = vmatpush1.msra.mxu0 0.0
    %212 = vmatprep.subr.mxu0 0.0
    %213 = vmatpush1.msra.mxu0 0.0
    %214 = vmatprep.subr.mxu0 0.0
    %215 = vmatpush1.msra.mxu0 0.0
    %216 = vmatprep.subr.mxu0 0.0
    %217 = vmatpush1.msra.mxu0 0.0
    %218 = vmatprep.subr.mxu0 0.0
    %219 = vmatpush1.msra.mxu0 0.0
    %220 = vmatprep.subr.mxu0 0.0
    %221 = vmatpush1.msra.mxu0 0.0
    %222 = vmatprep.subr.mxu0 0.0
    %223 = vmatpush1.msra.mxu0 0.0
    %224 = vmatprep.subr.mxu0 0.0
    %225 = vmatpush1.msra.mxu0 0.0
    %226 = vmatprep.subr.mxu0 0.0
    %227 = vmatpush1.msra.mxu0 0.0
    %228 = vmatprep.subr.mxu0 0.0
    %229 = vmatpush1.msra.mxu0 0.0
    %230 = vmatprep.mubr.f32.mxu0 0.0
    %231 = vmatmul.mubr.f32.gmra.mrb[0].mxu0 %v161
    %v232 = vpop.f32.mrb[0].mxu0
    %v233 = vadd.f32 0.0, %v232
    %v234 = vpop.f32.mrb[0].mxu0
    %235 = vmatprep.mubr.f32.mxu0 0.0
    %236 = vmatmul.mubr.f32.gmra.mrb[0].mxu0 %v164
    %v237 = vpop.f32.mrb[0].mxu0
    %v238 = vadd.f32 0.0, %v237
    %v239 = vpop.f32.mrb[0].mxu0
    %240 = vdwg.mxu0
    %v241 = vld [vmem:[%s1] sm:$0xf]
    %v242 = vld [vmem:[%s6] sm:$0x1]
    %v243 = vlaneseq
    %v244 = vshrl.u32 %v243, 7
    %v245 = vsub.s32 0, %v244
    %v246 = vrot.slane %v242, %v245
    %vm247 = vcmask 31744
    %v249 = vsel %vm247, %v27, 0
    %v252 = vsel %vm247, %v28, 0
    %vm254 = vcmask 1043456
    %v256 = vsel %vm254, %v241, 0
    %258 = vmatprep.subr.mxu0 0.0
    %259 = vmatpush1.msra.mxu0 %v256
    %260 = vmatprep.subr.mxu0 0.0
    %261 = vmatpush1.msra.mxu0 0.0
    %262 = vmatprep.subr.mxu0 0.0
    %263 = vmatpush1.msra.mxu0 0.0
    %264 = vmatprep.subr.mxu0 0.0
    %265 = vmatpush1.msra.mxu0 0.0
    %266 = vmatprep.subr.mxu0 0.0
    %267 = vmatpush1.msra.mxu0 0.0
    %268 = vmatprep.subr.mxu0 0.0
    %269 = vmatpush1.msra.mxu0 0.0
    %270 = vmatprep.subr.mxu0 0.0
    %271 = vmatpush1.msra.mxu0 0.0
    %272 = vmatprep.subr.mxu0 0.0
    %273 = vmatpush1.msra.mxu0 0.0
    %274 = vmatprep.subr.mxu0 0.0
    %275 = vmatpush1.msra.mxu0 0.0
    %276 = vmatprep.subr.mxu0 0.0
    %277 = vmatpush1.msra.mxu0 0.0
    %278 = vmatprep.subr.mxu0 0.0
    %279 = vmatpush1.msra.mxu0 0.0
    %280 = vmatprep.subr.mxu0 0.0
    %281 = vmatpush1.msra.mxu0 0.0
    %282 = vmatprep.subr.mxu0 0.0
    %283 = vmatpush1.msra.mxu0 0.0
    %284 = vmatprep.subr.mxu0 0.0
    %285 = vmatpush1.msra.mxu0 0.0
    %286 = vmatprep.subr.mxu0 0.0
    %287 = vmatpush1.msra.mxu0 0.0
    %288 = vmatprep.subr.mxu0 0.0
    %289 = vmatpush1.msra.mxu0 0.0
    %290 = vmatprep.subr.mxu0 0.0
    %291 = vmatpush1.msra.mxu0 0.0
    %292 = vmatprep.subr.mxu0 0.0
    %293 = vmatpush1.msra.mxu0 0.0
    %294 = vmatprep.subr.mxu0 0.0
    %295 = vmatpush1.msra.mxu0 0.0
    %296 = vmatprep.subr.mxu0 0.0
    %297 = vmatpush1.msra.mxu0 0.0
    %298 = vmatprep.subr.mxu0 0.0
    %299 = vmatpush1.msra.mxu0 0.0
    %300 = vmatprep.subr.mxu0 0.0
    %301 = vmatpush1.msra.mxu0 0.0
    %302 = vmatprep.subr.mxu0 0.0
    %303 = vmatpush1.msra.mxu0 0.0
    %304 = vmatprep.subr.mxu0 0.0
    %305 = vmatpush1.msra.mxu0 0.0
    %306 = vmatprep.subr.mxu0 0.0
    %307 = vmatpush1.msra.mxu0 0.0
    %308 = vmatprep.subr.mxu0 0.0
    %309 = vmatpush1.msra.mxu0 0.0
    %310 = vmatprep.subr.mxu0 0.0
    %311 = vmatpush1.msra.mxu0 0.0
    %312 = vmatprep.subr.mxu0 0.0
    %313 = vmatpush1.msra.mxu0 0.0
    %314 = vmatprep.subr.mxu0 0.0
    %315 = vmatpush1.msra.mxu0 0.0
    %316 = vmatprep.subr.mxu0 0.0
    %317 = vmatpush1.msra.mxu0 0.0
    %318 = vmatprep.subr.mxu0 0.0
    %319 = vmatpush1.msra.mxu0 0.0
    %320 = vmatprep.subr.mxu0 0.0
    %321 = vmatpush1.msra.mxu0 0.0
    %322 = vmatprep.mubr.f32.mxu0 0.0
    %323 = vmatmul.mubr.f32.gmra.mrb[0].mxu0 %v249
    %v324 = vpop.f32.mrb[0].mxu0
    %v325 = vadd.f32 %v246, %v324
    %v326 = vpop.f32.mrb[0].mxu0
    %327 = vmatprep.mubr.f32.mxu0 0.0
    %328 = vmatmul.mubr.f32.gmra.mrb[0].mxu0 %v252
    %v329 = vpop.f32.mrb[0].mxu0
    %v330 = vadd.f32 %v246, %v329
    %v331 = vpop.f32.mrb[0].mxu0
    %332 = vdwg.mxu0
    %s333 = scalar_lea.vmem %s1, 4
    %v334 = vld [vmem:[%s333] sm:$0xf]
    %s335 = scalar_lea.vmem %s1, 8
    %v336 = vld [vmem:[%s335] sm:$0xf]
    %v338 = vsel %vm254, %v336, 0
    %340 = vmatprep.subr.mxu0 0.0
    %341 = vmatpush1.msra.mxu0 %v338
    %342 = vmatprep.subr.mxu0 0.0
    %343 = vmatpush1.msra.mxu0 0.0
    %344 = vmatprep.subr.mxu0 0.0
    %345 = vmatpush1.msra.mxu0 0.0
    %346 = vmatprep.subr.mxu0 0.0
    %347 = vmatpush1.msra.mxu0 0.0
    %348 = vmatprep.subr.mxu0 0.0
    %349 = vmatpush1.msra.mxu0 0.0
    %350 = vmatprep.subr.mxu0 0.0
    %351 = vmatpush1.msra.mxu0 0.0
    %352 = vmatprep.subr.mxu0 0.0
    %353 = vmatpush1.msra.mxu0 0.0
    %354 = vmatprep.subr.mxu0 0.0
    %355 = vmatpush1.msra.mxu0 0.0
    %356 = vmatprep.subr.mxu0 0.0
    %357 = vmatpush1.msra.mxu0 0.0
    %358 = vmatprep.subr.mxu0 0.0
    %359 = vmatpush1.msra.mxu0 0.0
    %360 = vmatprep.subr.mxu0 0.0
    %361 = vmatpush1.msra.mxu0 0.0
    %362 = vmatprep.subr.mxu0 0.0
    %363 = vmatpush1.msra.mxu0 0.0
    %364 = vmatprep.subr.mxu0 0.0
    %365 = vmatpush1.msra.mxu0 0.0
    %366 = vmatprep.subr.mxu0 0.0
    %367 = vmatpush1.msra.mxu0 0.0
    %368 = vmatprep.subr.mxu0 0.0
    %369 = vmatpush1.msra.mxu0 0.0
    %370 = vmatprep.subr.mxu0 0.0
    %371 = vmatpush1.msra.mxu0 0.0
    %372 = vmatprep.subr.mxu0 0.0
    %373 = vmatpush1.msra.mxu0 0.0
    %374 = vmatprep.subr.mxu0 0.0
    %375 = vmatpush1.msra.mxu0 0.0
    %376 = vmatprep.subr.mxu0 0.0
    %377 = vmatpush1.msra.mxu0 0.0
    %378 = vmatprep.subr.mxu0 0.0
    %379 = vmatpush1.msra.mxu0 0.0
    %380 = vmatprep.subr.mxu0 0.0
    %381 = vmatpush1.msra.mxu0 0.0
    %382 = vmatprep.subr.mxu0 0.0
    %383 = vmatpush1.msra.mxu0 0.0
    %384 = vmatprep.subr.mxu0 0.0
    %385 = vmatpush1.msra.mxu0 0.0
    %386 = vmatprep.subr.mxu0 0.0
    %387 = vmatpush1.msra.mxu0 0.0
    %388 = vmatprep.subr.mxu0 0.0
    %389 = vmatpush1.msra.mxu0 0.0
    %390 = vmatprep.subr.mxu0 0.0
    %391 = vmatpush1.msra.mxu0 0.0
    %392 = vmatprep.subr.mxu0 0.0
    %393 = vmatpush1.msra.mxu0 0.0
    %394 = vmatprep.subr.mxu0 0.0
    %395 = vmatpush1.msra.mxu0 0.0
    %396 = vmatprep.subr.mxu0 0.0
    %397 = vmatpush1.msra.mxu0 0.0
    %398 = vmatprep.subr.mxu0 0.0
    %399 = vmatpush1.msra.mxu0 0.0
    %400 = vmatprep.subr.mxu0 0.0
    %401 = vmatpush1.msra.mxu0 0.0
    %402 = vmatprep.subr.mxu0 0.0
    %403 = vmatpush1.msra.mxu0 0.0
    %404 = vmatprep.mubr.f32.mxu0 0.0
    %405 = vmatmul.mubr.f32.gmra.mrb[0].mxu0 %v249
    %v406 = vpop.f32.mrb[0].mxu0
    %v407 = vadd.f32 0.0, %v406
    %v408 = vpop.f32.mrb[0].mxu0
    %409 = vmatprep.mubr.f32.mxu0 0.0
    %410 = vmatmul.mubr.f32.gmra.mrb[0].mxu0 %v252
    %v411 = vpop.f32.mrb[0].mxu0
    %v412 = vadd.f32 0.0, %v411
    %v413 = vpop.f32.mrb[0].mxu0
    %414 = vdwg.mxu0
    %v416 = vsel %vm247, %v152, 0
    %v419 = vsel %vm247, %v157, 0
    %v422 = vsel %vm254, %v334, 0
    %424 = vmatprep.subr.mxu0 0.0
    %425 = vmatpush1.msra.mxu0 %v422
    %426 = vmatprep.subr.mxu0 0.0
    %427 = vmatpush1.msra.mxu0 0.0
    %428 = vmatprep.subr.mxu0 0.0
    %429 = vmatpush1.msra.mxu0 0.0
    %430 = vmatprep.subr.mxu0 0.0
    %431 = vmatpush1.msra.mxu0 0.0
    %432 = vmatprep.subr.mxu0 0.0
    %433 = vmatpush1.msra.mxu0 0.0
    %434 = vmatprep.subr.mxu0 0.0
    %435 = vmatpush1.msra.mxu0 0.0
    %436 = vmatprep.subr.mxu0 0.0
    %437 = vmatpush1.msra.mxu0 0.0
    %438 = vmatprep.subr.mxu0 0.0
    %439 = vmatpush1.msra.mxu0 0.0
    %440 = vmatprep.subr.mxu0 0.0
    %441 = vmatpush1.msra.mxu0 0.0
    %442 = vmatprep.subr.mxu0 0.0
    %443 = vmatpush1.msra.mxu0 0.0
    %444 = vmatprep.subr.mxu0 0.0
    %445 = vmatpush1.msra.mxu0 0.0
    %446 = vmatprep.subr.mxu0 0.0
    %447 = vmatpush1.msra.mxu0 0.0
    %448 = vmatprep.subr.mxu0 0.0
    %449 = vmatpush1.msra.mxu0 0.0
    %450 = vmatprep.subr.mxu0 0.0
    %451 = vmatpush1.msra.mxu0 0.0
    %452 = vmatprep.subr.mxu0 0.0
    %453 = vmatpush1.msra.mxu0 0.0
    %454 = vmatprep.subr.mxu0 0.0
    %455 = vmatpush1.msra.mxu0 0.0
    %456 = vmatprep.subr.mxu0 0.0
    %457 = vmatpush1.msra.mxu0 0.0
    %458 = vmatprep.subr.mxu0 0.0
    %459 = vmatpush1.msra.mxu0 0.0
    %460 = vmatprep.subr.mxu0 0.0
    %461 = vmatpush1.msra.mxu0 0.0
    %462 = vmatprep.subr.mxu0 0.0
    %463 = vmatpush1.msra.mxu0 0.0
    %464 = vmatprep.subr.mxu0 0.0
    %465 = vmatpush1.msra.mxu0 0.0
    %466 = vmatprep.subr.mxu0 0.0
    %467 = vmatpush1.msra.mxu0 0.0
    %468 = vmatprep.subr.mxu0 0.0
    %469 = vmatpush1.msra.mxu0 0.0
    %470 = vmatprep.subr.mxu0 0.0
    %471 = vmatpush1.msra.mxu0 0.0
    %472 = vmatprep.subr.mxu0 0.0
    %473 = vmatpush1.msra.mxu0 0.0
    %474 = vmatprep.subr.mxu0 0.0
    %475 = vmatpush1.msra.mxu0 0.0
    %476 = vmatprep.subr.mxu0 0.0
    %477 = vmatpush1.msra.mxu0 0.0
    %478 = vmatprep.subr.mxu0 0.0
    %479 = vmatpush1.msra.mxu0 0.0
    %480 = vmatprep.subr.mxu0 0.0
    %481 = vmatpush1.msra.mxu0 0.0
    %482 = vmatprep.subr.mxu0 0.0
    %483 = vmatpush1.msra.mxu0 0.0
    %484 = vmatprep.subr.mxu0 0.0
    %485 = vmatpush1.msra.mxu0 0.0
    %486 = vmatprep.subr.mxu0 0.0
    %487 = vmatpush1.msra.mxu0 0.0
    %488 = vmatprep.mubr.f32.mxu0 0.0
    %489 = vmatmul.mubr.f32.gmra.mrb[0].mxu0 %v416
    %v490 = vpop.f32.mrb[0].mxu0
    %v491 = vadd.f32 %v407, %v490
    %v492 = vpop.f32.mrb[0].mxu0
    %493 = vmatprep.mubr.f32.mxu0 0.0
    %494 = vmatmul.mubr.f32.gmra.mrb[0].mxu0 %v419
    %v495 = vpop.f32.mrb[0].mxu0
    %v496 = vadd.f32 %v412, %v495
    %v497 = vpop.f32.mrb[0].mxu0
    %498 = vdwg.mxu0
    %s499 = scalar_lea.vmem %s1, 12
    %v500 = vld [vmem:[%s499] sm:$0xf]
    %v502 = vsel %vm247, %v233, 0
    %v505 = vsel %vm247, %v238, 0
    %v508 = vsel %vm254, %v500, 0
    %510 = vmatprep.subr.mxu0 0.0
    %511 = vmatpush1.msra.mxu0 %v508
    %512 = vmatprep.subr.mxu0 0.0
    %513 = vmatpush1.msra.mxu0 0.0
    %514 = vmatprep.subr.mxu0 0.0
    %515 = vmatpush1.msra.mxu0 0.0
    %516 = vmatprep.subr.mxu0 0.0
    %517 = vmatpush1.msra.mxu0 0.0
    %518 = vmatprep.subr.mxu0 0.0
    %519 = vmatpush1.msra.mxu0 0.0
    %520 = vmatprep.subr.mxu0 0.0
    %521 = vmatpush1.msra.mxu0 0.0
    %522 = vmatprep.subr.mxu0 0.0
    %523 = vmatpush1.msra.mxu0 0.0
    %524 = vmatprep.subr.mxu0 0.0
    %525 = vmatpush1.msra.mxu0 0.0
    %526 = vmatprep.subr.mxu0 0.0
    %527 = vmatpush1.msra.mxu0 0.0
    %528 = vmatprep.subr.mxu0 0.0
    %529 = vmatpush1.msra.mxu0 0.0
    %530 = vmatprep.subr.mxu0 0.0
    %531 = vmatpush1.msra.mxu0 0.0
    %532 = vmatprep.subr.mxu0 0.0
    %533 = vmatpush1.msra.mxu0 0.0
    %534 = vmatprep.subr.mxu0 0.0
    %535 = vmatpush1.msra.mxu0 0.0
    %536 = vmatprep.subr.mxu0 0.0
    %537 = vmatpush1.msra.mxu0 0.0
    %538 = vmatprep.subr.mxu0 0.0
    %539 = vmatpush1.msra.mxu0 0.0
    %540 = vmatprep.subr.mxu0 0.0
    %541 = vmatpush1.msra.mxu0 0.0
    %542 = vmatprep.subr.mxu0 0.0
    %543 = vmatpush1.msra.mxu0 0.0
    %544 = vmatprep.subr.mxu0 0.0
    %545 = vmatpush1.msra.mxu0 0.0
    %546 = vmatprep.subr.mxu0 0.0
    %547 = vmatpush1.msra.mxu0 0.0
    %548 = vmatprep.subr.mxu0 0.0
    %549 = vmatpush1.msra.mxu0 0.0
    %550 = vmatprep.subr.mxu0 0.0
    %551 = vmatpush1.msra.mxu0 0.0
    %552 = vmatprep.subr.mxu0 0.0
    %553 = vmatpush1.msra.mxu0 0.0
    %554 = vmatprep.subr.mxu0 0.0
    %555 = vmatpush1.msra.mxu0 0.0
    %556 = vmatprep.subr.mxu0 0.0
    %557 = vmatpush1.msra.mxu0 0.0
    %558 = vmatprep.subr.mxu0 0.0
    %559 = vmatpush1.msra.mxu0 0.0
    %560 = vmatprep.subr.mxu0 0.0
    %561 = vmatpush1.msra.mxu0 0.0
    %562 = vmatprep.subr.mxu0 0.0
    %563 = vmatpush1.msra.mxu0 0.0
    %564 = vmatprep.subr.mxu0 0.0
    %565 = vmatpush1.msra.mxu0 0.0
    %566 = vmatprep.subr.mxu0 0.0
    %567 = vmatpush1.msra.mxu0 0.0
    %568 = vmatprep.subr.mxu0 0.0
    %569 = vmatpush1.msra.mxu0 0.0
    %570 = vmatprep.subr.mxu0 0.0
    %571 = vmatpush1.msra.mxu0 0.0
    %572 = vmatprep.subr.mxu0 0.0
    %573 = vmatpush1.msra.mxu0 0.0
    %574 = vmatprep.mubr.f32.mxu0 0.0
    %575 = vmatmul.mubr.f32.gmra.mrb[0].mxu0 %v502
    %v576 = vpop.f32.mrb[0].mxu0
    %v577 = vadd.f32 0.0, %v576
    %v578 = vpop.f32.mrb[0].mxu0
    %579 = vmatprep.mubr.f32.mxu0 0.0
    %580 = vmatmul.mubr.f32.gmra.mrb[0].mxu0 %v505
    %v581 = vpop.f32.mrb[0].mxu0
    %v582 = vadd.f32 0.0, %v581
    %v583 = vpop.f32.mrb[0].mxu0
    %584 = vdwg.mxu0
    %v585 = vadd.f32 %v491, %v577
    %v586 = vadd.f32 %v496, %v582
    %v587 = vld [vmem:[%s6 + $0x1] sm:$0x1]
    %v588 = vlaneseq
    %v589 = vshrl.u32 %v588, 7
    %v590 = vsub.s32 0, %v589
    %v591 = vrot.slane %v587, %v590
    %v592 = vadd.f32 %v585, %v591
    %v593 = vadd.f32 %v586, %v591
    %594 = vmatprep.subr.mxu0 0.0
    %595 = vmatpush1.msra.mxu0 %v325
    %596 = vmatprep.subr.mxu0 0.0
    %597 = vmatpush1.msra.mxu0 %v330
    %598 = vmatprep.subr.mxu0 0.0
    %599 = vmatpush1.msra.mxu0 0.0
    %600 = vmatprep.subr.mxu0 0.0
    %601 = vmatpush1.msra.mxu0 0.0
    %602 = vmatprep.subr.mxu0 0.0
    %603 = vmatpush1.msra.mxu0 0.0
    %604 = vmatprep.subr.mxu0 0.0
    %605 = vmatpush1.msra.mxu0 0.0
    %606 = vmatprep.subr.mxu0 0.0
    %607 = vmatpush1.msra.mxu0 0.0
    %608 = vmatprep.subr.mxu0 0.0
    %609 = vmatpush1.msra.mxu0 0.0
    %610 = vmatprep.subr.mxu0 0.0
    %611 = vmatpush1.msra.mxu0 0.0
    %612 = vmatprep.subr.mxu0 0.0
    %613 = vmatpush1.msra.mxu0 0.0
    %614 = vmatprep.subr.mxu0 0.0
    %615 = vmatpush1.msra.mxu0 0.0
    %616 = vmatprep.subr.mxu0 0.0
    %617 = vmatpush1.msra.mxu0 0.0
    %618 = vmatprep.subr.mxu0 0.0
    %619 = vmatpush1.msra.mxu0 0.0
    %620 = vmatprep.subr.mxu0 0.0
    %621 = vmatpush1.msra.mxu0 0.0
    %622 = vmatprep.subr.mxu0 0.0
    %623 = vmatpush1.msra.mxu0 0.0
    %624 = vmatprep.subr.mxu0 0.0
    %625 = vmatpush1.msra.mxu0 0.0
    %626 = vmatprep.subr.mxu0 0.0
    %627 = vmatpush1.msra.mxu0 0.0
    %628 = vmatprep.subr.mxu0 0.0
    %629 = vmatpush1.msra.mxu0 0.0
    %630 = vmatprep.subr.mxu0 0.0
    %631 = vmatpush1.msra.mxu0 0.0
    %632 = vmatprep.subr.mxu0 0.0
    %633 = vmatpush1.msra.mxu0 0.0
    %634 = vmatprep.subr.mxu0 0.0
    %635 = vmatpush1.msra.mxu0 0.0
    %636 = vmatprep.subr.mxu0 0.0
    %637 = vmatpush1.msra.mxu0 0.0
    %638 = vmatprep.subr.mxu0 0.0
    %639 = vmatpush1.msra.mxu0 0.0
    %640 = vmatprep.subr.mxu0 0.0
    %641 = vmatpush1.msra.mxu0 0.0
    %642 = vmatprep.subr.mxu0 0.0
    %643 = vmatpush1.msra.mxu0 0.0
    %644 = vmatprep.subr.mxu0 0.0
    %645 = vmatpush1.msra.mxu0 0.0
    %646 = vmatprep.subr.mxu0 0.0
    %647 = vmatpush1.msra.mxu0 0.0
    %648 = vmatprep.subr.mxu0 0.0
    %649 = vmatpush1.msra.mxu0 0.0
    %650 = vmatprep.subr.mxu0 0.0
    %651 = vmatpush1.msra.mxu0 0.0
    %652 = vmatprep.subr.mxu0 0.0
    %653 = vmatpush1.msra.mxu0 0.0
    %654 = vmatprep.subr.mxu0 0.0
    %655 = vmatpush1.msra.mxu0 0.0
    %656 = vmatprep.subr.mxu0 0.0
    %657 = vmatpush1.msra.mxu0 0.0
    %658 = vmatprep.mubr.f32.mxu0 0.0
    %659 = vmatmul.mubr.f32.gmra.mrb[0].mxu0 %v80
    %v660 = vpop.f32.mrb[0].mxu0
    %v661 = vadd.f32 0.0, %v660
    %v662 = vpop.f32.mrb[0].mxu0
    %663 = vmatprep.mubr.f32.mxu0 0.0
    %664 = vmatmul.mubr.f32.gmra.mrb[0].mxu0 %v83
    %v665 = vpop.f32.mrb[0].mxu0
    %v666 = vadd.f32 0.0, %v665
    %v667 = vpop.f32.mrb[0].mxu0
    %668 = vdwg.mxu0
    %669 = vmatprep.subr.mxu0 0.0
    %670 = vmatpush1.msra.mxu0 %v325
    %671 = vmatprep.subr.mxu0 0.0
    %672 = vmatpush1.msra.mxu0 %v330
    %673 = vmatprep.subr.mxu0 0.0
    %674 = vmatpush1.msra.mxu0 0.0
    %675 = vmatprep.subr.mxu0 0.0
    %676 = vmatpush1.msra.mxu0 0.0
    %677 = vmatprep.subr.mxu0 0.0
    %678 = vmatpush1.msra.mxu0 0.0
    %679 = vmatprep.subr.mxu0 0.0
    %680 = vmatpush1.msra.mxu0 0.0
    %681 = vmatprep.subr.mxu0 0.0
    %682 = vmatpush1.msra.mxu0 0.0
    %683 = vmatprep.subr.mxu0 0.0
    %684 = vmatpush1.msra.mxu0 0.0
    %685 = vmatprep.subr.mxu0 0.0
    %686 = vmatpush1.msra.mxu0 0.0
    %687 = vmatprep.subr.mxu0 0.0
    %688 = vmatpush1.msra.mxu0 0.0
    %689 = vmatprep.subr.mxu0 0.0
    %690 = vmatpush1.msra.mxu0 0.0
    %691 = vmatprep.subr.mxu0 0.0
    %692 = vmatpush1.msra.mxu0 0.0
    %693 = vmatprep.subr.mxu0 0.0
    %694 = vmatpush1.msra.mxu0 0.0
    %695 = vmatprep.subr.mxu0 0.0
    %696 = vmatpush1.msra.mxu0 0.0
    %697 = vmatprep.subr.mxu0 0.0
    %698 = vmatpush1.msra.mxu0 0.0
    %699 = vmatprep.subr.mxu0 0.0
    %700 = vmatpush1.msra.mxu0 0.0
    %701 = vmatprep.subr.mxu0 0.0
    %702 = vmatpush1.msra.mxu0 0.0
    %703 = vmatprep.subr.mxu0 0.0
    %704 = vmatpush1.msra.mxu0 0.0
    %705 = vmatprep.subr.mxu0 0.0
    %706 = vmatpush1.msra.mxu0 0.0
    %707 = vmatprep.subr.mxu0 0.0
    %708 = vmatpush1.msra.mxu0 0.0
    %709 = vmatprep.subr.mxu0 0.0
    %710 = vmatpush1.msra.mxu0 0.0
    %711 = vmatprep.subr.mxu0 0.0
    %712 = vmatpush1.msra.mxu0 0.0
    %713 = vmatprep.subr.mxu0 0.0
    %714 = vmatpush1.msra.mxu0 0.0
    %715 = vmatprep.subr.mxu0 0.0
    %716 = vmatpush1.msra.mxu0 0.0
    %717 = vmatprep.subr.mxu0 0.0
    %718 = vmatpush1.msra.mxu0 0.0
    %719 = vmatprep.subr.mxu0 0.0
    %720 = vmatpush1.msra.mxu0 0.0
    %721 = vmatprep.subr.mxu0 0.0
    %722 = vmatpush1.msra.mxu0 0.0
    %723 = vmatprep.subr.mxu0 0.0
    %724 = vmatpush1.msra.mxu0 0.0
    %725 = vmatprep.subr.mxu0 0.0
    %726 = vmatpush1.msra.mxu0 0.0
    %727 = vmatprep.subr.mxu0 0.0
    %728 = vmatpush1.msra.mxu0 0.0
    %729 = vmatprep.subr.mxu0 0.0
    %730 = vmatpush1.msra.mxu0 0.0
    %731 = vmatprep.subr.mxu0 0.0
    %732 = vmatpush1.msra.mxu0 0.0
    %733 = vmatprep.mubr.f32.mxu0 0.0
    %734 = vmatmul.mubr.f32.gmra.mrb[0].mxu0 %v161
    %v735 = vpop.f32.mrb[0].mxu0
    %v736 = vadd.f32 0.0, %v735
    %v737 = vpop.f32.mrb[0].mxu0
    %738 = vmatprep.mubr.f32.mxu0 0.0
    %739 = vmatmul.mubr.f32.gmra.mrb[0].mxu0 %v164
    %v740 = vpop.f32.mrb[0].mxu0
    %v741 = vadd.f32 0.0, %v740
    %v742 = vpop.f32.mrb[0].mxu0
    %743 = vdwg.mxu0
    %744 = vmatprep.subr.mxu0 0.0
    %745 = vmatpush1.msra.mxu0 %v592
    %746 = vmatprep.subr.mxu0 0.0
    %747 = vmatpush1.msra.mxu0 %v593
    %748 = vmatprep.subr.mxu0 0.0
    %749 = vmatpush1.msra.mxu0 0.0
    %750 = vmatprep.subr.mxu0 0.0
    %751 = vmatpush1.msra.mxu0 0.0
    %752 = vmatprep.subr.mxu0 0.0
    %753 = vmatpush1.msra.mxu0 0.0
    %754 = vmatprep.subr.mxu0 0.0
    %755 = vmatpush1.msra.mxu0 0.0
    %756 = vmatprep.subr.mxu0 0.0
    %757 = vmatpush1.msra.mxu0 0.0
    %758 = vmatprep.subr.mxu0 0.0
    %759 = vmatpush1.msra.mxu0 0.0
    %760 = vmatprep.subr.mxu0 0.0
    %761 = vmatpush1.msra.mxu0 0.0
    %762 = vmatprep.subr.mxu0 0.0
    %763 = vmatpush1.msra.mxu0 0.0
    %764 = vmatprep.subr.mxu0 0.0
    %765 = vmatpush1.msra.mxu0 0.0
    %766 = vmatprep.subr.mxu0 0.0
    %767 = vmatpush1.msra.mxu0 0.0
    %768 = vmatprep.subr.mxu0 0.0
    %769 = vmatpush1.msra.mxu0 0.0
    %770 = vmatprep.subr.mxu0 0.0
    %771 = vmatpush1.msra.mxu0 0.0
    %772 = vmatprep.subr.mxu0 0.0
    %773 = vmatpush1.msra.mxu0 0.0
    %774 = vmatprep.subr.mxu0 0.0
    %775 = vmatpush1.msra.mxu0 0.0
    %776 = vmatprep.subr.mxu0 0.0
    %777 = vmatpush1.msra.mxu0 0.0
    %778 = vmatprep.subr.mxu0 0.0
    %779 = vmatpush1.msra.mxu0 0.0
    %780 = vmatprep.subr.mxu0 0.0
    %781 = vmatpush1.msra.mxu0 0.0
    %782 = vmatprep.subr.mxu0 0.0
    %783 = vmatpush1.msra.mxu0 0.0
    %784 = vmatprep.subr.mxu0 0.0
    %785 = vmatpush1.msra.mxu0 0.0
    %786 = vmatprep.subr.mxu0 0.0
    %787 = vmatpush1.msra.mxu0 0.0
    %788 = vmatprep.subr.mxu0 0.0
    %789 = vmatpush1.msra.mxu0 0.0
    %790 = vmatprep.subr.mxu0 0.0
    %791 = vmatpush1.msra.mxu0 0.0
    %792 = vmatprep.subr.mxu0 0.0
    %793 = vmatpush1.msra.mxu0 0.0
    %794 = vmatprep.subr.mxu0 0.0
    %795 = vmatpush1.msra.mxu0 0.0
    %796 = vmatprep.subr.mxu0 0.0
    %797 = vmatpush1.msra.mxu0 0.0
    %798 = vmatprep.subr.mxu0 0.0
    %799 = vmatpush1.msra.mxu0 0.0
    %800 = vmatprep.subr.mxu0 0.0
    %801 = vmatpush1.msra.mxu0 0.0
    %802 = vmatprep.subr.mxu0 0.0
    %803 = vmatpush1.msra.mxu0 0.0
    %804 = vmatprep.subr.mxu0 0.0
    %805 = vmatpush1.msra.mxu0 0.0
    %806 = vmatprep.subr.mxu0 0.0
    %807 = vmatpush1.msra.mxu0 0.0
    %808 = vmatprep.mubr.f32.mxu0 0.0
    %809 = vmatmul.mubr.f32.gmra.mrb[0].mxu0 %v80
    %v810 = vpop.f32.mrb[0].mxu0
    %v811 = vadd.f32 0.0, %v810
    %v812 = vpop.f32.mrb[0].mxu0
    %813 = vmatprep.mubr.f32.mxu0 0.0
    %814 = vmatmul.mubr.f32.gmra.mrb[0].mxu0 %v83
    %v815 = vpop.f32.mrb[0].mxu0
    %v816 = vadd.f32 0.0, %v815
    %v817 = vpop.f32.mrb[0].mxu0
    %818 = vdwg.mxu0
    %819 = vmatprep.subr.mxu0 0.0
    %820 = vmatpush1.msra.mxu0 %v592
    %821 = vmatprep.subr.mxu0 0.0
    %822 = vmatpush1.msra.mxu0 %v593
    %823 = vmatprep.subr.mxu0 0.0
    %824 = vmatpush1.msra.mxu0 0.0
    %825 = vmatprep.subr.mxu0 0.0
    %826 = vmatpush1.msra.mxu0 0.0
    %827 = vmatprep.subr.mxu0 0.0
    %828 = vmatpush1.msra.mxu0 0.0
    %829 = vmatprep.subr.mxu0 0.0
    %830 = vmatpush1.msra.mxu0 0.0
    %831 = vmatprep.subr.mxu0 0.0
    %832 = vmatpush1.msra.mxu0 0.0
    %833 = vmatprep.subr.mxu0 0.0
    %834 = vmatpush1.msra.mxu0 0.0
    %835 = vmatprep.subr.mxu0 0.0
    %836 = vmatpush1.msra.mxu0 0.0
    %837 = vmatprep.subr.mxu0 0.0
    %838 = vmatpush1.msra.mxu0 0.0
    %839 = vmatprep.subr.mxu0 0.0
    %840 = vmatpush1.msra.mxu0 0.0
    %841 = vmatprep.subr.mxu0 0.0
    %842 = vmatpush1.msra.mxu0 0.0
    %843 = vmatprep.subr.mxu0 0.0
    %844 = vmatpush1.msra.mxu0 0.0
    %845 = vmatprep.subr.mxu0 0.0
    %846 = vmatpush1.msra.mxu0 0.0
    %847 = vmatprep.subr.mxu0 0.0
    %848 = vmatpush1.msra.mxu0 0.0
    %849 = vmatprep.subr.mxu0 0.0
    %850 = vmatpush1.msra.mxu0 0.0
    %851 = vmatprep.subr.mxu0 0.0
    %852 = vmatpush1.msra.mxu0 0.0
    %853 = vmatprep.subr.mxu0 0.0
    %854 = vmatpush1.msra.mxu0 0.0
    %855 = vmatprep.subr.mxu0 0.0
    %856 = vmatpush1.msra.mxu0 0.0
    %857 = vmatprep.subr.mxu0 0.0
    %858 = vmatpush1.msra.mxu0 0.0
    %859 = vmatprep.subr.mxu0 0.0
    %860 = vmatpush1.msra.mxu0 0.0
    %861 = vmatprep.subr.mxu0 0.0
    %862 = vmatpush1.msra.mxu0 0.0
    %863 = vmatprep.subr.mxu0 0.0
    %864 = vmatpush1.msra.mxu0 0.0
    %865 = vmatprep.subr.mxu0 0.0
    %866 = vmatpush1.msra.mxu0 0.0
    %867 = vmatprep.subr.mxu0 0.0
    %868 = vmatpush1.msra.mxu0 0.0
    %869 = vmatprep.subr.mxu0 0.0
    %870 = vmatpush1.msra.mxu0 0.0
    %871 = vmatprep.subr.mxu0 0.0
    %872 = vmatpush1.msra.mxu0 0.0
    %873 = vmatprep.subr.mxu0 0.0
    %874 = vmatpush1.msra.mxu0 0.0
    %875 = vmatprep.subr.mxu0 0.0
    %876 = vmatpush1.msra.mxu0 0.0
    %877 = vmatprep.subr.mxu0 0.0
    %878 = vmatpush1.msra.mxu0 0.0
    %879 = vmatprep.subr.mxu0 0.0
    %880 = vmatpush1.msra.mxu0 0.0
    %881 = vmatprep.subr.mxu0 0.0
    %882 = vmatpush1.msra.mxu0 0.0
    %883 = vmatprep.mubr.f32.mxu0 0.0
    %884 = vmatmul.mubr.f32.gmra.mrb[0].mxu0 %v161
    %v885 = vpop.f32.mrb[0].mxu0
    %v886 = vadd.f32 0.0, %v885
    %v887 = vpop.f32.mrb[0].mxu0
    %888 = vmatprep.mubr.f32.mxu0 0.0
    %889 = vmatmul.mubr.f32.gmra.mrb[0].mxu0 %v164
    %v890 = vpop.f32.mrb[0].mxu0
    %v891 = vadd.f32 0.0, %v890
    %v892 = vpop.f32.mrb[0].mxu0
    %893 = vdwg.mxu0
    %v894 = vld [vmem:[%s2] sm:$0xff]
    %v895 = vld [vmem:[%s2 + $0x8] sm:$0xff]
    %v896 = vld [vmem:[%s2 + $0x10] sm:$0xff]
    %v897 = vld [vmem:[%s2 + $0x18] sm:$0xff]
    %v898 = vld [vmem:[%s2 + $0x20] sm:$0xff]
    %v899 = vld [vmem:[%s2 + $0x28] sm:$0xff]
    %v900 = vld [vmem:[%s2 + $0x30] sm:$0xff]
    %v901 = vld [vmem:[%s2 + $0x38] sm:$0xff]
    %v902 = vld [vmem:[%s2 + $0x40] sm:$0xff]
    %v903 = vld [vmem:[%s2 + $0x48] sm:$0xff]
    %v904 = vld [vmem:[%s2 + $0x50] sm:$0xff]
    %v905 = vld [vmem:[%s2 + $0x58] sm:$0xff]
    %v906 = vld [vmem:[%s2 + $0x60] sm:$0xff]
    %v907 = vld [vmem:[%s2 + $0x68] sm:$0xff]
    %v908 = vld [vmem:[%s2 + $0x70] sm:$0xff]
    %s909 = scalar_lea.vmem %s2, 120
    %v910 = vld [vmem:[%s909] sm:$0xff]
    %v911 = vld [vmem:[%s909 + $0x8] sm:$0xff]
    %v912 = vld [vmem:[%s909 + $0x10] sm:$0xff]
    %v913 = vld [vmem:[%s909 + $0x18] sm:$0xff]
    %v914 = vld [vmem:[%s909 + $0x20] sm:$0xff]
    %v915 = vld [vmem:[%s909 + $0x28] sm:$0xff]
    %v916 = vld [vmem:[%s909 + $0x30] sm:$0xff]
    %v917 = vld [vmem:[%s909 + $0x38] sm:$0xff]
    %v918 = vld [vmem:[%s909 + $0x40] sm:$0xff]
    %v919 = vld [vmem:[%s909 + $0x48] sm:$0xff]
    %v920 = vld [vmem:[%s909 + $0x50] sm:$0xff]
    %v921 = vld [vmem:[%s909 + $0x58] sm:$0xff]
    %v922 = vld [vmem:[%s909 + $0x60] sm:$0xff]
    %v923 = vld [vmem:[%s909 + $0x68] sm:$0xff]
    %v924 = vld [vmem:[%s909 + $0x70] sm:$0xff]
    %vm925 = vcmask 982016
    %v927 = vsel %vm925, %v325, 0
    %v930 = vsel %vm925, %v330, 0
    %932 = vmatprep.subr.mxu0 0.0
    %933 = vmatpush1.msra.mxu0 %v910
    %934 = vmatprep.subr.mxu0 0.0
    %935 = vmatpush1.msra.mxu0 %v911
    %936 = vmatprep.subr.mxu0 0.0
    %937 = vmatpush1.msra.mxu0 %v912
    %938 = vmatprep.subr.mxu0 0.0
    %939 = vmatpush1.msra.mxu0 %v913
    %940 = vmatprep.subr.mxu0 0.0
    %941 = vmatpush1.msra.mxu0 %v914
    %942 = vmatprep.subr.mxu0 0.0
    %943 = vmatpush1.msra.mxu0 %v915
    %944 = vmatprep.subr.mxu0 0.0
    %945 = vmatpush1.msra.mxu0 %v916
    %946 = vmatprep.subr.mxu0 0.0
    %947 = vmatpush1.msra.mxu0 %v917
    %948 = vmatprep.subr.mxu0 0.0
    %949 = vmatpush1.msra.mxu0 %v918
    %950 = vmatprep.subr.mxu0 0.0
    %951 = vmatpush1.msra.mxu0 %v919
    %952 = vmatprep.subr.mxu0 0.0
    %953 = vmatpush1.msra.mxu0 %v920
    %954 = vmatprep.subr.mxu0 0.0
    %955 = vmatpush1.msra.mxu0 %v921
    %956 = vmatprep.subr.mxu0 0.0
    %957 = vmatpush1.msra.mxu0 %v922
    %958 = vmatprep.subr.mxu0 0.0
    %959 = vmatpush1.msra.mxu0 %v923
    %960 = vmatprep.subr.mxu0 0.0
    %961 = vmatpush1.msra.mxu0 %v924
    %962 = vmatprep.subr.mxu0 0.0
    %963 = vmatpush1.msra.mxu0 0.0
    %964 = vmatprep.subr.mxu0 0.0
    %965 = vmatpush1.msra.mxu0 0.0
    %966 = vmatprep.subr.mxu0 0.0
    %967 = vmatpush1.msra.mxu0 0.0
    %968 = vmatprep.subr.mxu0 0.0
    %969 = vmatpush1.msra.mxu0 0.0
    %970 = vmatprep.subr.mxu0 0.0
    %971 = vmatpush1.msra.mxu0 0.0
    %972 = vmatprep.subr.mxu0 0.0
    %973 = vmatpush1.msra.mxu0 0.0
    %974 = vmatprep.subr.mxu0 0.0
    %975 = vmatpush1.msra.mxu0 0.0
    %976 = vmatprep.subr.mxu0 0.0
    %977 = vmatpush1.msra.mxu0 0.0
    %978 = vmatprep.subr.mxu0 0.0
    %979 = vmatpush1.msra.mxu0 0.0
    %980 = vmatprep.subr.mxu0 0.0
    %981 = vmatpush1.msra.mxu0 0.0
    %982 = vmatprep.subr.mxu0 0.0
    %983 = vmatpush1.msra.mxu0 0.0
    %984 = vmatprep.subr.mxu0 0.0
    %985 = vmatpush1.msra.mxu0 0.0
    %986 = vmatprep.subr.mxu0 0.0
    %987 = vmatpush1.msra.mxu0 0.0
    %988 = vmatprep.subr.mxu0 0.0
    %989 = vmatpush1.msra.mxu0 0.0
    %990 = vmatprep.subr.mxu0 0.0
    %991 = vmatpush1.msra.mxu0 0.0
    %992 = vmatprep.subr.mxu0 0.0
    %993 = vmatpush1.msra.mxu0 0.0
    %994 = vmatprep.subr.mxu0 0.0
    %995 = vmatpush1.msra.mxu0 0.0
    %996 = vmatprep.mubr.f32.mxu0 0.0
    %997 = vmatmul.mubr.f32.gmra.mrb[0].mxu0 %v927
    %v998 = vpop.f32.mrb[0].mxu0
    %v999 = vadd.f32 0.0, %v998
    %v1000 = vpop.f32.mrb[0].mxu0
    %1001 = vmatprep.mubr.f32.mxu0 0.0
    %1002 = vmatmul.mubr.f32.gmra.mrb[0].mxu0 %v930
    %v1003 = vpop.f32.mrb[0].mxu0
    %v1004 = vadd.f32 0.0, %v1003
    %v1005 = vpop.f32.mrb[0].mxu0
    %1006 = vdwg.mxu0
    %v1008 = vsel %vm925, %v661, 0
    %v1011 = vsel %vm925, %v666, 0
    %1013 = vmatprep.subr.mxu0 0.0
    %1014 = vmatpush1.msra.mxu0 %v894
    %1015 = vmatprep.subr.mxu0 0.0
    %1016 = vmatpush1.msra.mxu0 %v895
    %1017 = vmatprep.subr.mxu0 0.0
    %1018 = vmatpush1.msra.mxu0 %v896
    %1019 = vmatprep.subr.mxu0 0.0
    %1020 = vmatpush1.msra.mxu0 %v897
    %1021 = vmatprep.subr.mxu0 0.0
    %1022 = vmatpush1.msra.mxu0 %v898
    %1023 = vmatprep.subr.mxu0 0.0
    %1024 = vmatpush1.msra.mxu0 %v899
    %1025 = vmatprep.subr.mxu0 0.0
    %1026 = vmatpush1.msra.mxu0 %v900
    %1027 = vmatprep.subr.mxu0 0.0
    %1028 = vmatpush1.msra.mxu0 %v901
    %1029 = vmatprep.subr.mxu0 0.0
    %1030 = vmatpush1.msra.mxu0 %v902
    %1031 = vmatprep.subr.mxu0 0.0
    %1032 = vmatpush1.msra.mxu0 %v903
    %1033 = vmatprep.subr.mxu0 0.0
    %1034 = vmatpush1.msra.mxu0 %v904
    %1035 = vmatprep.subr.mxu0 0.0
    %1036 = vmatpush1.msra.mxu0 %v905
    %1037 = vmatprep.subr.mxu0 0.0
    %1038 = vmatpush1.msra.mxu0 %v906
    %1039 = vmatprep.subr.mxu0 0.0
    %1040 = vmatpush1.msra.mxu0 %v907
    %1041 = vmatprep.subr.mxu0 0.0
    %1042 = vmatpush1.msra.mxu0 %v908
    %1043 = vmatprep.subr.mxu0 0.0
    %1044 = vmatpush1.msra.mxu0 0.0
    %1045 = vmatprep.subr.mxu0 0.0
    %1046 = vmatpush1.msra.mxu0 0.0
    %1047 = vmatprep.subr.mxu0 0.0
    %1048 = vmatpush1.msra.mxu0 0.0
    %1049 = vmatprep.subr.mxu0 0.0
    %1050 = vmatpush1.msra.mxu0 0.0
    %1051 = vmatprep.subr.mxu0 0.0
    %1052 = vmatpush1.msra.mxu0 0.0
    %1053 = vmatprep.subr.mxu0 0.0
    %1054 = vmatpush1.msra.mxu0 0.0
    %1055 = vmatprep.subr.mxu0 0.0
    %1056 = vmatpush1.msra.mxu0 0.0
    %1057 = vmatprep.subr.mxu0 0.0
    %1058 = vmatpush1.msra.mxu0 0.0
    %1059 = vmatprep.subr.mxu0 0.0
    %1060 = vmatpush1.msra.mxu0 0.0
    %1061 = vmatprep.subr.mxu0 0.0
    %1062 = vmatpush1.msra.mxu0 0.0
    %1063 = vmatprep.subr.mxu0 0.0
    %1064 = vmatpush1.msra.mxu0 0.0
    %1065 = vmatprep.subr.mxu0 0.0
    %1066 = vmatpush1.msra.mxu0 0.0
    %1067 = vmatprep.subr.mxu0 0.0
    %1068 = vmatpush1.msra.mxu0 0.0
    %1069 = vmatprep.subr.mxu0 0.0
    %1070 = vmatpush1.msra.mxu0 0.0
    %1071 = vmatprep.subr.mxu0 0.0
    %1072 = vmatpush1.msra.mxu0 0.0
    %1073 = vmatprep.subr.mxu0 0.0
    %1074 = vmatpush1.msra.mxu0 0.0
    %1075 = vmatprep.subr.mxu0 0.0
    %1076 = vmatpush1.msra.mxu0 0.0
    %1077 = vmatprep.mubr.f32.mxu0 0.0
    %1078 = vmatmul.mubr.f32.gmra.mrb[0].mxu0 %v1008
    %v1079 = vpop.f32.mrb[0].mxu0
    %v1080 = vadd.f32 %v999, %v1079
    %v1081 = vpop.f32.mrb[0].mxu0
    %1082 = vmatprep.mubr.f32.mxu0 0.0
    %1083 = vmatmul.mubr.f32.gmra.mrb[0].mxu0 %v1011
    %v1084 = vpop.f32.mrb[0].mxu0
    %v1085 = vadd.f32 %v1004, %v1084
    %v1086 = vpop.f32.mrb[0].mxu0
    %1087 = vdwg.mxu0
    %s1088 = scalar_lea.vmem %s2, 240
    %v1089 = vld [vmem:[%s1088] sm:$0xff]
    %v1090 = vld [vmem:[%s1088 + $0x8] sm:$0xff]
    %v1091 = vld [vmem:[%s1088 + $0x10] sm:$0xff]
    %v1092 = vld [vmem:[%s1088 + $0x18] sm:$0xff]
    %v1093 = vld [vmem:[%s1088 + $0x20] sm:$0xff]
    %v1094 = vld [vmem:[%s1088 + $0x28] sm:$0xff]
    %v1095 = vld [vmem:[%s1088 + $0x30] sm:$0xff]
    %v1096 = vld [vmem:[%s1088 + $0x38] sm:$0xff]
    %v1097 = vld [vmem:[%s1088 + $0x40] sm:$0xff]
    %v1098 = vld [vmem:[%s1088 + $0x48] sm:$0xff]
    %v1099 = vld [vmem:[%s1088 + $0x50] sm:$0xff]
    %v1100 = vld [vmem:[%s1088 + $0x58] sm:$0xff]
    %v1101 = vld [vmem:[%s1088 + $0x60] sm:$0xff]
    %v1102 = vld [vmem:[%s1088 + $0x68] sm:$0xff]
    %v1103 = vld [vmem:[%s1088 + $0x70] sm:$0xff]
    %v1105 = vsel %vm925, %v736, 0
    %v1108 = vsel %vm925, %v741, 0
    %1110 = vmatprep.subr.mxu0 0.0
    %1111 = vmatpush1.msra.mxu0 %v1089
    %1112 = vmatprep.subr.mxu0 0.0
    %1113 = vmatpush1.msra.mxu0 %v1090
    %1114 = vmatprep.subr.mxu0 0.0
    %1115 = vmatpush1.msra.mxu0 %v1091
    %1116 = vmatprep.subr.mxu0 0.0
    %1117 = vmatpush1.msra.mxu0 %v1092
    %1118 = vmatprep.subr.mxu0 0.0
    %1119 = vmatpush1.msra.mxu0 %v1093
    %1120 = vmatprep.subr.mxu0 0.0
    %1121 = vmatpush1.msra.mxu0 %v1094
    %1122 = vmatprep.subr.mxu0 0.0
    %1123 = vmatpush1.msra.mxu0 %v1095
    %1124 = vmatprep.subr.mxu0 0.0
    %1125 = vmatpush1.msra.mxu0 %v1096
    %1126 = vmatprep.subr.mxu0 0.0
    %1127 = vmatpush1.msra.mxu0 %v1097
    %1128 = vmatprep.subr.mxu0 0.0
    %1129 = vmatpush1.msra.mxu0 %v1098
    %1130 = vmatprep.subr.mxu0 0.0
    %1131 = vmatpush1.msra.mxu0 %v1099
    %1132 = vmatprep.subr.mxu0 0.0
    %1133 = vmatpush1.msra.mxu0 %v1100
    %1134 = vmatprep.subr.mxu0 0.0
    %1135 = vmatpush1.msra.mxu0 %v1101
    %1136 = vmatprep.subr.mxu0 0.0
    %1137 = vmatpush1.msra.mxu0 %v1102
    %1138 = vmatprep.subr.mxu0 0.0
    %1139 = vmatpush1.msra.mxu0 %v1103
    %1140 = vmatprep.subr.mxu0 0.0
    %1141 = vmatpush1.msra.mxu0 0.0
    %1142 = vmatprep.subr.mxu0 0.0
    %1143 = vmatpush1.msra.mxu0 0.0
    %1144 = vmatprep.subr.mxu0 0.0
    %1145 = vmatpush1.msra.mxu0 0.0
    %1146 = vmatprep.subr.mxu0 0.0
    %1147 = vmatpush1.msra.mxu0 0.0
    %1148 = vmatprep.subr.mxu0 0.0
    %1149 = vmatpush1.msra.mxu0 0.0
    %1150 = vmatprep.subr.mxu0 0.0
    %1151 = vmatpush1.msra.mxu0 0.0
    %1152 = vmatprep.subr.mxu0 0.0
    %1153 = vmatpush1.msra.mxu0 0.0
    %1154 = vmatprep.subr.mxu0 0.0
    %1155 = vmatpush1.msra.mxu0 0.0
    %1156 = vmatprep.subr.mxu0 0.0
    %1157 = vmatpush1.msra.mxu0 0.0
    %1158 = vmatprep.subr.mxu0 0.0
    %1159 = vmatpush1.msra.mxu0 0.0
    %1160 = vmatprep.subr.mxu0 0.0
    %1161 = vmatpush1.msra.mxu0 0.0
    %1162 = vmatprep.subr.mxu0 0.0
    %1163 = vmatpush1.msra.mxu0 0.0
    %1164 = vmatprep.subr.mxu0 0.0
    %1165 = vmatpush1.msra.mxu0 0.0
    %1166 = vmatprep.subr.mxu0 0.0
    %1167 = vmatpush1.msra.mxu0 0.0
    %1168 = vmatprep.subr.mxu0 0.0
    %1169 = vmatpush1.msra.mxu0 0.0
    %1170 = vmatprep.subr.mxu0 0.0
    %1171 = vmatpush1.msra.mxu0 0.0
    %1172 = vmatprep.subr.mxu0 0.0
    %1173 = vmatpush1.msra.mxu0 0.0
    %1174 = vmatprep.mubr.f32.mxu0 0.0
    %1175 = vmatmul.mubr.f32.gmra.mrb[0].mxu0 %v1105
    %v1176 = vpop.f32.mrb[0].mxu0
    %v1177 = vadd.f32 0.0, %v1176
    %v1178 = vpop.f32.mrb[0].mxu0
    %1179 = vmatprep.mubr.f32.mxu0 0.0
    %1180 = vmatmul.mubr.f32.gmra.mrb[0].mxu0 %v1108
    %v1181 = vpop.f32.mrb[0].mxu0
    %v1182 = vadd.f32 0.0, %v1181
    %v1183 = vpop.f32.mrb[0].mxu0
    %1184 = vdwg.mxu0
    %v1185 = vadd.f32 %v1080, %v1177
    %v1186 = vadd.f32 %v1085, %v1182
    %s1187 = scalar_lea.vmem %s2, 360
    %v1188 = vld [vmem:[%s1187] sm:$0xff]
    %v1189 = vld [vmem:[%s1187 + $0x8] sm:$0xff]
    %v1190 = vld [vmem:[%s1187 + $0x10] sm:$0xff]
    %v1191 = vld [vmem:[%s1187 + $0x18] sm:$0xff]
    %v1192 = vld [vmem:[%s1187 + $0x20] sm:$0xff]
    %v1193 = vld [vmem:[%s1187 + $0x28] sm:$0xff]
    %v1194 = vld [vmem:[%s1187 + $0x30] sm:$0xff]
    %v1195 = vld [vmem:[%s1187 + $0x38] sm:$0xff]
    %v1196 = vld [vmem:[%s1187 + $0x40] sm:$0xff]
    %v1197 = vld [vmem:[%s1187 + $0x48] sm:$0xff]
    %v1198 = vld [vmem:[%s1187 + $0x50] sm:$0xff]
    %v1199 = vld [vmem:[%s1187 + $0x58] sm:$0xff]
    %v1200 = vld [vmem:[%s1187 + $0x60] sm:$0xff]
    %v1201 = vld [vmem:[%s1187 + $0x68] sm:$0xff]
    %v1202 = vld [vmem:[%s1187 + $0x70] sm:$0xff]
    %v1204 = vsel %vm925, %v811, 0
    %v1207 = vsel %vm925, %v816, 0
    %1209 = vmatprep.subr.mxu0 0.0
    %1210 = vmatpush1.msra.mxu0 %v1188
    %1211 = vmatprep.subr.mxu0 0.0
    %1212 = vmatpush1.msra.mxu0 %v1189
    %1213 = vmatprep.subr.mxu0 0.0
    %1214 = vmatpush1.msra.mxu0 %v1190
    %1215 = vmatprep.subr.mxu0 0.0
    %1216 = vmatpush1.msra.mxu0 %v1191
    %1217 = vmatprep.subr.mxu0 0.0
    %1218 = vmatpush1.msra.mxu0 %v1192
    %1219 = vmatprep.subr.mxu0 0.0
    %1220 = vmatpush1.msra.mxu0 %v1193
    %1221 = vmatprep.subr.mxu0 0.0
    %1222 = vmatpush1.msra.mxu0 %v1194
    %1223 = vmatprep.subr.mxu0 0.0
    %1224 = vmatpush1.msra.mxu0 %v1195
    %1225 = vmatprep.subr.mxu0 0.0
    %1226 = vmatpush1.msra.mxu0 %v1196
    %1227 = vmatprep.subr.mxu0 0.0
    %1228 = vmatpush1.msra.mxu0 %v1197
    %1229 = vmatprep.subr.mxu0 0.0
    %1230 = vmatpush1.msra.mxu0 %v1198
    %1231 = vmatprep.subr.mxu0 0.0
    %1232 = vmatpush1.msra.mxu0 %v1199
    %1233 = vmatprep.subr.mxu0 0.0
    %1234 = vmatpush1.msra.mxu0 %v1200
    %1235 = vmatprep.subr.mxu0 0.0
    %1236 = vmatpush1.msra.mxu0 %v1201
    %1237 = vmatprep.subr.mxu0 0.0
    %1238 = vmatpush1.msra.mxu0 %v1202
    %1239 = vmatprep.subr.mxu0 0.0
    %1240 = vmatpush1.msra.mxu0 0.0
    %1241 = vmatprep.subr.mxu0 0.0
    %1242 = vmatpush1.msra.mxu0 0.0
    %1243 = vmatprep.subr.mxu0 0.0
    %1244 = vmatpush1.msra.mxu0 0.0
    %1245 = vmatprep.subr.mxu0 0.0
    %1246 = vmatpush1.msra.mxu0 0.0
    %1247 = vmatprep.subr.mxu0 0.0
    %1248 = vmatpush1.msra.mxu0 0.0
    %1249 = vmatprep.subr.mxu0 0.0
    %1250 = vmatpush1.msra.mxu0 0.0
    %1251 = vmatprep.subr.mxu0 0.0
    %1252 = vmatpush1.msra.mxu0 0.0
    %1253 = vmatprep.subr.mxu0 0.0
    %1254 = vmatpush1.msra.mxu0 0.0
    %1255 = vmatprep.subr.mxu0 0.0
    %1256 = vmatpush1.msra.mxu0 0.0
    %1257 = vmatprep.subr.mxu0 0.0
    %1258 = vmatpush1.msra.mxu0 0.0
    %1259 = vmatprep.subr.mxu0 0.0
    %1260 = vmatpush1.msra.mxu0 0.0
    %1261 = vmatprep.subr.mxu0 0.0
    %1262 = vmatpush1.msra.mxu0 0.0
    %1263 = vmatprep.subr.mxu0 0.0
    %1264 = vmatpush1.msra.mxu0 0.0
    %1265 = vmatprep.subr.mxu0 0.0
    %1266 = vmatpush1.msra.mxu0 0.0
    %1267 = vmatprep.subr.mxu0 0.0
    %1268 = vmatpush1.msra.mxu0 0.0
    %1269 = vmatprep.subr.mxu0 0.0
    %1270 = vmatpush1.msra.mxu0 0.0
    %1271 = vmatprep.subr.mxu0 0.0
    %1272 = vmatpush1.msra.mxu0 0.0
    %1273 = vmatprep.mubr.f32.mxu0 0.0
    %1274 = vmatmul.mubr.f32.gmra.mrb[0].mxu0 %v1204
    %v1275 = vpop.f32.mrb[0].mxu0
    %v1276 = vadd.f32 0.0, %v1275
    %v1277 = vpop.f32.mrb[0].mxu0
    %1278 = vmatprep.mubr.f32.mxu0 0.0
    %1279 = vmatmul.mubr.f32.gmra.mrb[0].mxu0 %v1207
    %v1280 = vpop.f32.mrb[0].mxu0
    %v1281 = vadd.f32 0.0, %v1280
    %v1282 = vpop.f32.mrb[0].mxu0
    %1283 = vdwg.mxu0
    %v1284 = vadd.f32 %v1185, %v1276
    %v1285 = vadd.f32 %v1186, %v1281
    %s1286 = scalar_lea.vmem %s2, 480
    %v1287 = vld [vmem:[%s1286] sm:$0xff]
    %v1288 = vld [vmem:[%s1286 + $0x8] sm:$0xff]
    %v1289 = vld [vmem:[%s1286 + $0x10] sm:$0xff]
    %v1290 = vld [vmem:[%s1286 + $0x18] sm:$0xff]
    %v1291 = vld [vmem:[%s1286 + $0x20] sm:$0xff]
    %v1292 = vld [vmem:[%s1286 + $0x28] sm:$0xff]
    %v1293 = vld [vmem:[%s1286 + $0x30] sm:$0xff]
    %v1294 = vld [vmem:[%s1286 + $0x38] sm:$0xff]
    %v1295 = vld [vmem:[%s1286 + $0x40] sm:$0xff]
    %v1296 = vld [vmem:[%s1286 + $0x48] sm:$0xff]
    %v1297 = vld [vmem:[%s1286 + $0x50] sm:$0xff]
    %v1298 = vld [vmem:[%s1286 + $0x58] sm:$0xff]
    %v1299 = vld [vmem:[%s1286 + $0x60] sm:$0xff]
    %v1300 = vld [vmem:[%s1286 + $0x68] sm:$0xff]
    %v1301 = vld [vmem:[%s1286 + $0x70] sm:$0xff]
    %v1303 = vsel %vm925, %v592, 0
    %v1306 = vsel %vm925, %v593, 0
    %1308 = vmatprep.subr.mxu0 0.0
    %1309 = vmatpush1.msra.mxu0 %v1287
    %1310 = vmatprep.subr.mxu0 0.0
    %1311 = vmatpush1.msra.mxu0 %v1288
    %1312 = vmatprep.subr.mxu0 0.0
    %1313 = vmatpush1.msra.mxu0 %v1289
    %1314 = vmatprep.subr.mxu0 0.0
    %1315 = vmatpush1.msra.mxu0 %v1290
    %1316 = vmatprep.subr.mxu0 0.0
    %1317 = vmatpush1.msra.mxu0 %v1291
    %1318 = vmatprep.subr.mxu0 0.0
    %1319 = vmatpush1.msra.mxu0 %v1292
    %1320 = vmatprep.subr.mxu0 0.0
    %1321 = vmatpush1.msra.mxu0 %v1293
    %1322 = vmatprep.subr.mxu0 0.0
    %1323 = vmatpush1.msra.mxu0 %v1294
    %1324 = vmatprep.subr.mxu0 0.0
    %1325 = vmatpush1.msra.mxu0 %v1295
    %1326 = vmatprep.subr.mxu0 0.0
    %1327 = vmatpush1.msra.mxu0 %v1296
    %1328 = vmatprep.subr.mxu0 0.0
    %1329 = vmatpush1.msra.mxu0 %v1297
    %1330 = vmatprep.subr.mxu0 0.0
    %1331 = vmatpush1.msra.mxu0 %v1298
    %1332 = vmatprep.subr.mxu0 0.0
    %1333 = vmatpush1.msra.mxu0 %v1299
    %1334 = vmatprep.subr.mxu0 0.0
    %1335 = vmatpush1.msra.mxu0 %v1300
    %1336 = vmatprep.subr.mxu0 0.0
    %1337 = vmatpush1.msra.mxu0 %v1301
    %1338 = vmatprep.subr.mxu0 0.0
    %1339 = vmatpush1.msra.mxu0 0.0
    %1340 = vmatprep.subr.mxu0 0.0
    %1341 = vmatpush1.msra.mxu0 0.0
    %1342 = vmatprep.subr.mxu0 0.0
    %1343 = vmatpush1.msra.mxu0 0.0
    %1344 = vmatprep.subr.mxu0 0.0
    %1345 = vmatpush1.msra.mxu0 0.0
    %1346 = vmatprep.subr.mxu0 0.0
    %1347 = vmatpush1.msra.mxu0 0.0
    %1348 = vmatprep.subr.mxu0 0.0
    %1349 = vmatpush1.msra.mxu0 0.0
    %1350 = vmatprep.subr.mxu0 0.0
    %1351 = vmatpush1.msra.mxu0 0.0
    %1352 = vmatprep.subr.mxu0 0.0
    %1353 = vmatpush1.msra.mxu0 0.0
    %1354 = vmatprep.subr.mxu0 0.0
    %1355 = vmatpush1.msra.mxu0 0.0
    %1356 = vmatprep.subr.mxu0 0.0
    %1357 = vmatpush1.msra.mxu0 0.0
    %1358 = vmatprep.subr.mxu0 0.0
    %1359 = vmatpush1.msra.mxu0 0.0
    %1360 = vmatprep.subr.mxu0 0.0
    %1361 = vmatpush1.msra.mxu0 0.0
    %1362 = vmatprep.subr.mxu0 0.0
    %1363 = vmatpush1.msra.mxu0 0.0
    %1364 = vmatprep.subr.mxu0 0.0
    %1365 = vmatpush1.msra.mxu0 0.0
    %1366 = vmatprep.subr.mxu0 0.0
    %1367 = vmatpush1.msra.mxu0 0.0
    %1368 = vmatprep.subr.mxu0 0.0
    %1369 = vmatpush1.msra.mxu0 0.0
    %1370 = vmatprep.subr.mxu0 0.0
    %1371 = vmatpush1.msra.mxu0 0.0
    %1372 = vmatprep.mubr.f32.mxu0 0.0
    %1373 = vmatmul.mubr.f32.gmra.mrb[0].mxu0 %v1303
    %v1374 = vpop.f32.mrb[0].mxu0
    %v1375 = vadd.f32 0.0, %v1374
    %v1376 = vpop.f32.mrb[0].mxu0
    %1377 = vmatprep.mubr.f32.mxu0 0.0
    %1378 = vmatmul.mubr.f32.gmra.mrb[0].mxu0 %v1306
    %v1379 = vpop.f32.mrb[0].mxu0
    %v1380 = vadd.f32 0.0, %v1379
    %v1381 = vpop.f32.mrb[0].mxu0
    %1382 = vdwg.mxu0
    %v1383 = vadd.f32 %v1284, %v1375
    %v1384 = vadd.f32 %v1285, %v1380
    %s1385 = scalar_lea.vmem %s2, 600
    %v1386 = vld [vmem:[%s1385] sm:$0xff]
    %v1387 = vld [vmem:[%s1385 + $0x8] sm:$0xff]
    %v1388 = vld [vmem:[%s1385 + $0x10] sm:$0xff]
    %v1389 = vld [vmem:[%s1385 + $0x18] sm:$0xff]
    %v1390 = vld [vmem:[%s1385 + $0x20] sm:$0xff]
    %v1391 = vld [vmem:[%s1385 + $0x28] sm:$0xff]
    %v1392 = vld [vmem:[%s1385 + $0x30] sm:$0xff]
    %v1393 = vld [vmem:[%s1385 + $0x38] sm:$0xff]
    %v1394 = vld [vmem:[%s1385 + $0x40] sm:$0xff]
    %v1395 = vld [vmem:[%s1385 + $0x48] sm:$0xff]
    %v1396 = vld [vmem:[%s1385 + $0x50] sm:$0xff]
    %v1397 = vld [vmem:[%s1385 + $0x58] sm:$0xff]
    %v1398 = vld [vmem:[%s1385 + $0x60] sm:$0xff]
    %v1399 = vld [vmem:[%s1385 + $0x68] sm:$0xff]
    %v1400 = vld [vmem:[%s1385 + $0x70] sm:$0xff]
    %v1402 = vsel %vm925, %v886, 0
    %v1405 = vsel %vm925, %v891, 0
    %1407 = vmatprep.subr.mxu0 0.0
    %1408 = vmatpush1.msra.mxu0 %v1386
    %1409 = vmatprep.subr.mxu0 0.0
    %1410 = vmatpush1.msra.mxu0 %v1387
    %1411 = vmatprep.subr.mxu0 0.0
    %1412 = vmatpush1.msra.mxu0 %v1388
    %1413 = vmatprep.subr.mxu0 0.0
    %1414 = vmatpush1.msra.mxu0 %v1389
    %1415 = vmatprep.subr.mxu0 0.0
    %1416 = vmatpush1.msra.mxu0 %v1390
    %1417 = vmatprep.subr.mxu0 0.0
    %1418 = vmatpush1.msra.mxu0 %v1391
    %1419 = vmatprep.subr.mxu0 0.0
    %1420 = vmatpush1.msra.mxu0 %v1392
    %1421 = vmatprep.subr.mxu0 0.0
    %1422 = vmatpush1.msra.mxu0 %v1393
    %1423 = vmatprep.subr.mxu0 0.0
    %1424 = vmatpush1.msra.mxu0 %v1394
    %1425 = vmatprep.subr.mxu0 0.0
    %1426 = vmatpush1.msra.mxu0 %v1395
    %1427 = vmatprep.subr.mxu0 0.0
    %1428 = vmatpush1.msra.mxu0 %v1396
    %1429 = vmatprep.subr.mxu0 0.0
    %1430 = vmatpush1.msra.mxu0 %v1397
    %1431 = vmatprep.subr.mxu0 0.0
    %1432 = vmatpush1.msra.mxu0 %v1398
    %1433 = vmatprep.subr.mxu0 0.0
    %1434 = vmatpush1.msra.mxu0 %v1399
    %1435 = vmatprep.subr.mxu0 0.0
    %1436 = vmatpush1.msra.mxu0 %v1400
    %1437 = vmatprep.subr.mxu0 0.0
    %1438 = vmatpush1.msra.mxu0 0.0
    %1439 = vmatprep.subr.mxu0 0.0
    %1440 = vmatpush1.msra.mxu0 0.0
    %1441 = vmatprep.subr.mxu0 0.0
    %1442 = vmatpush1.msra.mxu0 0.0
    %1443 = vmatprep.subr.mxu0 0.0
    %1444 = vmatpush1.msra.mxu0 0.0
    %1445 = vmatprep.subr.mxu0 0.0
    %1446 = vmatpush1.msra.mxu0 0.0
    %1447 = vmatprep.subr.mxu0 0.0
    %1448 = vmatpush1.msra.mxu0 0.0
    %1449 = vmatprep.subr.mxu0 0.0
    %1450 = vmatpush1.msra.mxu0 0.0
    %1451 = vmatprep.subr.mxu0 0.0
    %1452 = vmatpush1.msra.mxu0 0.0
    %1453 = vmatprep.subr.mxu0 0.0
    %1454 = vmatpush1.msra.mxu0 0.0
    %1455 = vmatprep.subr.mxu0 0.0
    %1456 = vmatpush1.msra.mxu0 0.0
    %1457 = vmatprep.subr.mxu0 0.0
    %1458 = vmatpush1.msra.mxu0 0.0
    %1459 = vmatprep.subr.mxu0 0.0
    %1460 = vmatpush1.msra.mxu0 0.0
    %1461 = vmatprep.subr.mxu0 0.0
    %1462 = vmatpush1.msra.mxu0 0.0
    %1463 = vmatprep.subr.mxu0 0.0
    %1464 = vmatpush1.msra.mxu0 0.0
    %1465 = vmatprep.subr.mxu0 0.0
    %1466 = vmatpush1.msra.mxu0 0.0
    %1467 = vmatprep.subr.mxu0 0.0
    %1468 = vmatpush1.msra.mxu0 0.0
    %1469 = vmatprep.subr.mxu0 0.0
    %1470 = vmatpush1.msra.mxu0 0.0
    %1471 = vmatprep.mubr.f32.mxu0 0.0
    %1472 = vmatmul.mubr.f32.gmra.mrb[0].mxu0 %v1402
    %v1473 = vpop.f32.mrb[0].mxu0
    %v1474 = vadd.f32 0.0, %v1473
    %v1475 = vpop.f32.mrb[0].mxu0
    %1476 = vmatprep.mubr.f32.mxu0 0.0
    %1477 = vmatmul.mubr.f32.gmra.mrb[0].mxu0 %v1405
    %v1478 = vpop.f32.mrb[0].mxu0
    %v1479 = vadd.f32 0.0, %v1478
    %v1480 = vpop.f32.mrb[0].mxu0
    %1481 = vdwg.mxu0
    %v1482 = vadd.f32 %v1383, %v1474
    %v1483 = vadd.f32 %v1384, %v1479
    %v1484 = vld [vmem:[%s6 + $0x2] sm:$0x1]
    %v1485 = vlaneseq
    %v1486 = vshrl.u32 %v1485, 7
    %v1487 = vsub.s32 0, %v1486
    %v1488 = vrot.slane %v1484, %v1487
    %v1489 = vadd.f32 %v1482, %v1488
    %v1490 = vadd.f32 %v1483, %v1488
    %v1491 = vld [vmem:[%s3] sm:$0xff]
    %v1492 = vld [vmem:[%s3 + $0x8] sm:$0xff]
    %v1493 = vld [vmem:[%s3 + $0x10] sm:$0xff]
    %v1494 = vld [vmem:[%s3 + $0x18] sm:$0xff]
    %v1495 = vld [vmem:[%s3 + $0x20] sm:$0xff]
    %v1496 = vld [vmem:[%s3 + $0x28] sm:$0xff]
    %v1497 = vld [vmem:[%s3 + $0x30] sm:$0xff]
    %v1498 = vld [vmem:[%s3 + $0x38] sm:$0xff]
    %v1499 = vld [vmem:[%s3 + $0x40] sm:$0xff]
    %v1500 = vld [vmem:[%s3 + $0x48] sm:$0xff]
    %v1501 = vld [vmem:[%s3 + $0x50] sm:$0xff]
    %v1502 = vld [vmem:[%s3 + $0x58] sm:$0xff]
    %v1503 = vld [vmem:[%s3 + $0x60] sm:$0xff]
    %v1504 = vld [vmem:[%s3 + $0x68] sm:$0xff]
    %v1505 = vld [vmem:[%s3 + $0x70] sm:$0xff]
    %v1506 = vld [vmem:[%s3 + $0x78] sm:$0xff]
    %v1507 = vld [vmem:[%s3 + $0x80] sm:$0xff]
    %v1508 = vld [vmem:[%s3 + $0x88] sm:$0xff]
    %v1509 = vld [vmem:[%s3 + $0x90] sm:$0xff]
    %v1510 = vld [vmem:[%s3 + $0x98] sm:$0xff]
    %v1511 = vld [vmem:[%s3 + $0xa0] sm:$0xff]
    %v1512 = vld [vmem:[%s3 + $0xa8] sm:$0xff]
    %v1513 = vld [vmem:[%s3 + $0xb0] sm:$0xff]
    %v1514 = vld [vmem:[%s3 + $0xb8] sm:$0xff]
    %vm1515 = vcmask 523264
    %v1517 = vsel %vm1515, 0.0, 0
    %1519 = vmatprep.subr.mxu0 0.0
    %1520 = vmatpush1.msra.mxu0 %v1507
    %1521 = vmatprep.subr.mxu0 0.0
    %1522 = vmatpush1.msra.mxu0 %v1508
    %1523 = vmatprep.subr.mxu0 0.0
    %1524 = vmatpush1.msra.mxu0 %v1509
    %1525 = vmatprep.subr.mxu0 0.0
    %1526 = vmatpush1.msra.mxu0 %v1510
    %1527 = vmatprep.subr.mxu0 0.0
    %1528 = vmatpush1.msra.mxu0 %v1511
    %1529 = vmatprep.subr.mxu0 0.0
    %1530 = vmatpush1.msra.mxu0 %v1512
    %1531 = vmatprep.subr.mxu0 0.0
    %1532 = vmatpush1.msra.mxu0 %v1513
    %1533 = vmatprep.subr.mxu0 0.0
    %1534 = vmatpush1.msra.mxu0 %v1514
    %1535 = vmatprep.subr.mxu0 0.0
    %1536 = vmatpush1.msra.mxu0 0.0
    %1537 = vmatprep.subr.mxu0 0.0
    %1538 = vmatpush1.msra.mxu0 0.0
    %1539 = vmatprep.subr.mxu0 0.0
    %1540 = vmatpush1.msra.mxu0 0.0
    %1541 = vmatprep.subr.mxu0 0.0
    %1542 = vmatpush1.msra.mxu0 0.0
    %1543 = vmatprep.subr.mxu0 0.0
    %1544 = vmatpush1.msra.mxu0 0.0
    %1545 = vmatprep.subr.mxu0 0.0
    %1546 = vmatpush1.msra.mxu0 0.0
    %1547 = vmatprep.subr.mxu0 0.0
    %1548 = vmatpush1.msra.mxu0 0.0
    %1549 = vmatprep.subr.mxu0 0.0
    %1550 = vmatpush1.msra.mxu0 0.0
    %1551 = vmatprep.subr.mxu0 0.0
    %1552 = vmatpush1.msra.mxu0 0.0
    %1553 = vmatprep.subr.mxu0 0.0
    %1554 = vmatpush1.msra.mxu0 0.0
    %1555 = vmatprep.subr.mxu0 0.0
    %1556 = vmatpush1.msra.mxu0 0.0
    %1557 = vmatprep.subr.mxu0 0.0
    %1558 = vmatpush1.msra.mxu0 0.0
    %1559 = vmatprep.subr.mxu0 0.0
    %1560 = vmatpush1.msra.mxu0 0.0
    %1561 = vmatprep.subr.mxu0 0.0
    %1562 = vmatpush1.msra.mxu0 0.0
    %1563 = vmatprep.subr.mxu0 0.0
    %1564 = vmatpush1.msra.mxu0 0.0
    %1565 = vmatprep.subr.mxu0 0.0
    %1566 = vmatpush1.msra.mxu0 0.0
    %1567 = vmatprep.subr.mxu0 0.0
    %1568 = vmatpush1.msra.mxu0 0.0
    %1569 = vmatprep.subr.mxu0 0.0
    %1570 = vmatpush1.msra.mxu0 0.0
    %1571 = vmatprep.subr.mxu0 0.0
    %1572 = vmatpush1.msra.mxu0 0.0
    %1573 = vmatprep.subr.mxu0 0.0
    %1574 = vmatpush1.msra.mxu0 0.0
    %1575 = vmatprep.subr.mxu0 0.0
    %1576 = vmatpush1.msra.mxu0 0.0
    %1577 = vmatprep.subr.mxu0 0.0
    %1578 = vmatpush1.msra.mxu0 0.0
    %1579 = vmatprep.subr.mxu0 0.0
    %1580 = vmatpush1.msra.mxu0 0.0
    %1581 = vmatprep.subr.mxu0 0.0
    %1582 = vmatpush1.msra.mxu0 0.0
    %1583 = vmatprep.mubr.f32.mxu0 0.0
    %1584 = vmatmul.mubr.f32.gmra.mrb[0].mxu0 %v1517
    %v1585 = vpop.f32.mrb[0].mxu0
    %v1586 = vadd.f32 0.0, %v1585
    %v1587 = vpop.f32.mrb[0].mxu0
    %1588 = vdwg.mxu0
    %1589 = vmatprep.subr.mxu0 0.0
    %1590 = vmatpush1.msra.mxu0 %v1491
    %1591 = vmatprep.subr.mxu0 0.0
    %1592 = vmatpush1.msra.mxu0 %v1492
    %1593 = vmatprep.subr.mxu0 0.0
    %1594 = vmatpush1.msra.mxu0 %v1493
    %1595 = vmatprep.subr.mxu0 0.0
    %1596 = vmatpush1.msra.mxu0 %v1494
    %1597 = vmatprep.subr.mxu0 0.0
    %1598 = vmatpush1.msra.mxu0 %v1495
    %1599 = vmatprep.subr.mxu0 0.0
    %1600 = vmatpush1.msra.mxu0 %v1496
    %1601 = vmatprep.subr.mxu0 0.0
    %1602 = vmatpush1.msra.mxu0 %v1497
    %1603 = vmatprep.subr.mxu0 0.0
    %1604 = vmatpush1.msra.mxu0 %v1498
    %1605 = vmatprep.subr.mxu0 0.0
    %1606 = vmatpush1.msra.mxu0 %v1499
    %1607 = vmatprep.subr.mxu0 0.0
    %1608 = vmatpush1.msra.mxu0 %v1500
    %1609 = vmatprep.subr.mxu0 0.0
    %1610 = vmatpush1.msra.mxu0 %v1501
    %1611 = vmatprep.subr.mxu0 0.0
    %1612 = vmatpush1.msra.mxu0 %v1502
    %1613 = vmatprep.subr.mxu0 0.0
    %1614 = vmatpush1.msra.mxu0 %v1503
    %1615 = vmatprep.subr.mxu0 0.0
    %1616 = vmatpush1.msra.mxu0 %v1504
    %1617 = vmatprep.subr.mxu0 0.0
    %1618 = vmatpush1.msra.mxu0 %v1505
    %1619 = vmatprep.subr.mxu0 0.0
    %1620 = vmatpush1.msra.mxu0 %v1506
    %1621 = vmatprep.subr.mxu0 0.0
    %1622 = vmatpush1.msra.mxu0 0.0
    %1623 = vmatprep.subr.mxu0 0.0
    %1624 = vmatpush1.msra.mxu0 0.0
    %1625 = vmatprep.subr.mxu0 0.0
    %1626 = vmatpush1.msra.mxu0 0.0
    %1627 = vmatprep.subr.mxu0 0.0
    %1628 = vmatpush1.msra.mxu0 0.0
    %1629 = vmatprep.subr.mxu0 0.0
    %1630 = vmatpush1.msra.mxu0 0.0
    %1631 = vmatprep.subr.mxu0 0.0
    %1632 = vmatpush1.msra.mxu0 0.0
    %1633 = vmatprep.subr.mxu0 0.0
    %1634 = vmatpush1.msra.mxu0 0.0
    %1635 = vmatprep.subr.mxu0 0.0
    %1636 = vmatpush1.msra.mxu0 0.0
    %1637 = vmatprep.subr.mxu0 0.0
    %1638 = vmatpush1.msra.mxu0 0.0
    %1639 = vmatprep.subr.mxu0 0.0
    %1640 = vmatpush1.msra.mxu0 0.0
    %1641 = vmatprep.subr.mxu0 0.0
    %1642 = vmatpush1.msra.mxu0 0.0
    %1643 = vmatprep.subr.mxu0 0.0
    %1644 = vmatpush1.msra.mxu0 0.0
    %1645 = vmatprep.subr.mxu0 0.0
    %1646 = vmatpush1.msra.mxu0 0.0
    %1647 = vmatprep.subr.mxu0 0.0
    %1648 = vmatpush1.msra.mxu0 0.0
    %1649 = vmatprep.subr.mxu0 0.0
    %1650 = vmatpush1.msra.mxu0 0.0
    %1651 = vmatprep.subr.mxu0 0.0
    %1652 = vmatpush1.msra.mxu0 0.0
    %1653 = vmatprep.mubr.f32.mxu0 0.0
    %1654 = vmatmul.mubr.f32.gmra.mrb[0].mxu0 %v1489
    %v1655 = vpop.f32.mrb[0].mxu0
    %v1656 = vadd.f32 %v1586, %v1655
    %v1657 = vpop.f32.mrb[0].mxu0
    %1658 = vdwg.mxu0
    %v1659 = vld [vmem:[%s6 + $0x3] sm:$0x1]
    %v1660 = vlaneseq
    %v1661 = vshrl.u32 %v1660, 7
    %v1662 = vsub.s32 0, %v1661
    %v1663 = vrot.slane %v1659, %v1662
    %v1664 = vadd.f32 %v1656, %v1663
    %s1665 = scalar_lea.vmem %s3, 192
    %v1666 = vld [vmem:[%s1665] sm:$0xff]
    %v1667 = vld [vmem:[%s1665 + $0x8] sm:$0xff]
    %v1668 = vld [vmem:[%s1665 + $0x10] sm:$0xff]
    %v1669 = vld [vmem:[%s1665 + $0x18] sm:$0xff]
    %v1670 = vld [vmem:[%s1665 + $0x20] sm:$0xff]
    %v1671 = vld [vmem:[%s1665 + $0x28] sm:$0xff]
    %v1672 = vld [vmem:[%s1665 + $0x30] sm:$0xff]
    %v1673 = vld [vmem:[%s1665 + $0x38] sm:$0xff]
    %v1674 = vld [vmem:[%s1665 + $0x40] sm:$0xff]
    %v1675 = vld [vmem:[%s1665 + $0x48] sm:$0xff]
    %v1676 = vld [vmem:[%s1665 + $0x50] sm:$0xff]
    %v1677 = vld [vmem:[%s1665 + $0x58] sm:$0xff]
    %v1678 = vld [vmem:[%s1665 + $0x60] sm:$0xff]
    %v1679 = vld [vmem:[%s1665 + $0x68] sm:$0xff]
    %v1680 = vld [vmem:[%s1665 + $0x70] sm:$0xff]
    %v1681 = vld [vmem:[%s1665 + $0x78] sm:$0xff]
    %v1682 = vld [vmem:[%s1665 + $0x80] sm:$0xff]
    %v1683 = vld [vmem:[%s1665 + $0x88] sm:$0xff]
    %v1684 = vld [vmem:[%s1665 + $0x90] sm:$0xff]
    %v1685 = vld [vmem:[%s1665 + $0x98] sm:$0xff]
    %v1686 = vld [vmem:[%s1665 + $0xa0] sm:$0xff]
    %v1687 = vld [vmem:[%s1665 + $0xa8] sm:$0xff]
    %v1688 = vld [vmem:[%s1665 + $0xb0] sm:$0xff]
    %v1689 = vld [vmem:[%s1665 + $0xb8] sm:$0xff]
    %1690 = vmatprep.subr.mxu0 0.0
    %1691 = vmatpush1.msra.mxu0 %v1682
    %1692 = vmatprep.subr.mxu0 0.0
    %1693 = vmatpush1.msra.mxu0 %v1683
    %1694 = vmatprep.subr.mxu0 0.0
    %1695 = vmatpush1.msra.mxu0 %v1684
    %1696 = vmatprep.subr.mxu0 0.0
    %1697 = vmatpush1.msra.mxu0 %v1685
    %1698 = vmatprep.subr.mxu0 0.0
    %1699 = vmatpush1.msra.mxu0 %v1686
    %1700 = vmatprep.subr.mxu0 0.0
    %1701 = vmatpush1.msra.mxu0 %v1687
    %1702 = vmatprep.subr.mxu0 0.0
    %1703 = vmatpush1.msra.mxu0 %v1688
    %1704 = vmatprep.subr.mxu0 0.0
    %1705 = vmatpush1.msra.mxu0 %v1689
    %1706 = vmatprep.subr.mxu0 0.0
    %1707 = vmatpush1.msra.mxu0 0.0
    %1708 = vmatprep.subr.mxu0 0.0
    %1709 = vmatpush1.msra.mxu0 0.0
    %1710 = vmatprep.subr.mxu0 0.0
    %1711 = vmatpush1.msra.mxu0 0.0
    %1712 = vmatprep.subr.mxu0 0.0
    %1713 = vmatpush1.msra.mxu0 0.0
    %1714 = vmatprep.subr.mxu0 0.0
    %1715 = vmatpush1.msra.mxu0 0.0
    %1716 = vmatprep.subr.mxu0 0.0
    %1717 = vmatpush1.msra.mxu0 0.0
    %1718 = vmatprep.subr.mxu0 0.0
    %1719 = vmatpush1.msra.mxu0 0.0
    %1720 = vmatprep.subr.mxu0 0.0
    %1721 = vmatpush1.msra.mxu0 0.0
    %1722 = vmatprep.subr.mxu0 0.0
    %1723 = vmatpush1.msra.mxu0 0.0
    %1724 = vmatprep.subr.mxu0 0.0
    %1725 = vmatpush1.msra.mxu0 0.0
    %1726 = vmatprep.subr.mxu0 0.0
    %1727 = vmatpush1.msra.mxu0 0.0
    %1728 = vmatprep.subr.mxu0 0.0
    %1729 = vmatpush1.msra.mxu0 0.0
    %1730 = vmatprep.subr.mxu0 0.0
    %1731 = vmatpush1.msra.mxu0 0.0
    %1732 = vmatprep.subr.mxu0 0.0
    %1733 = vmatpush1.msra.mxu0 0.0
    %1734 = vmatprep.subr.mxu0 0.0
    %1735 = vmatpush1.msra.mxu0 0.0
    %1736 = vmatprep.subr.mxu0 0.0
    %1737 = vmatpush1.msra.mxu0 0.0
    %1738 = vmatprep.subr.mxu0 0.0
    %1739 = vmatpush1.msra.mxu0 0.0
    %1740 = vmatprep.subr.mxu0 0.0
    %1741 = vmatpush1.msra.mxu0 0.0
    %1742 = vmatprep.subr.mxu0 0.0
    %1743 = vmatpush1.msra.mxu0 0.0
    %1744 = vmatprep.subr.mxu0 0.0
    %1745 = vmatpush1.msra.mxu0 0.0
    %1746 = vmatprep.subr.mxu0 0.0
    %1747 = vmatpush1.msra.mxu0 0.0
    %1748 = vmatprep.subr.mxu0 0.0
    %1749 = vmatpush1.msra.mxu0 0.0
    %1750 = vmatprep.subr.mxu0 0.0
    %1751 = vmatpush1.msra.mxu0 0.0
    %1752 = vmatprep.subr.mxu0 0.0
    %1753 = vmatpush1.msra.mxu0 0.0
    %1754 = vmatprep.mubr.f32.mxu0 0.0
    %1755 = vmatmul.mubr.f32.gmra.mrb[0].mxu0 %v1517
    %v1756 = vpop.f32.mrb[0].mxu0
    %v1757 = vadd.f32 0.0, %v1756
    %v1758 = vpop.f32.mrb[0].mxu0
    %1759 = vdwg.mxu0
    %1760 = vmatprep.subr.mxu0 0.0
    %1761 = vmatpush1.msra.mxu0 %v1666
    %1762 = vmatprep.subr.mxu0 0.0
    %1763 = vmatpush1.msra.mxu0 %v1667
    %1764 = vmatprep.subr.mxu0 0.0
    %1765 = vmatpush1.msra.mxu0 %v1668
    %1766 = vmatprep.subr.mxu0 0.0
    %1767 = vmatpush1.msra.mxu0 %v1669
    %1768 = vmatprep.subr.mxu0 0.0
    %1769 = vmatpush1.msra.mxu0 %v1670
    %1770 = vmatprep.subr.mxu0 0.0
    %1771 = vmatpush1.msra.mxu0 %v1671
    %1772 = vmatprep.subr.mxu0 0.0
    %1773 = vmatpush1.msra.mxu0 %v1672
    %1774 = vmatprep.subr.mxu0 0.0
    %1775 = vmatpush1.msra.mxu0 %v1673
    %1776 = vmatprep.subr.mxu0 0.0
    %1777 = vmatpush1.msra.mxu0 %v1674
    %1778 = vmatprep.subr.mxu0 0.0
    %1779 = vmatpush1.msra.mxu0 %v1675
    %1780 = vmatprep.subr.mxu0 0.0
    %1781 = vmatpush1.msra.mxu0 %v1676
    %1782 = vmatprep.subr.mxu0 0.0
    %1783 = vmatpush1.msra.mxu0 %v1677
    %1784 = vmatprep.subr.mxu0 0.0
    %1785 = vmatpush1.msra.mxu0 %v1678
    %1786 = vmatprep.subr.mxu0 0.0
    %1787 = vmatpush1.msra.mxu0 %v1679
    %1788 = vmatprep.subr.mxu0 0.0
    %1789 = vmatpush1.msra.mxu0 %v1680
    %1790 = vmatprep.subr.mxu0 0.0
    %1791 = vmatpush1.msra.mxu0 %v1681
    %1792 = vmatprep.subr.mxu0 0.0
    %1793 = vmatpush1.msra.mxu0 0.0
    %1794 = vmatprep.subr.mxu0 0.0
    %1795 = vmatpush1.msra.mxu0 0.0
    %1796 = vmatprep.subr.mxu0 0.0
    %1797 = vmatpush1.msra.mxu0 0.0
    %1798 = vmatprep.subr.mxu0 0.0
    %1799 = vmatpush1.msra.mxu0 0.0
    %1800 = vmatprep.subr.mxu0 0.0
    %1801 = vmatpush1.msra.mxu0 0.0
    %1802 = vmatprep.subr.mxu0 0.0
    %1803 = vmatpush1.msra.mxu0 0.0
    %1804 = vmatprep.subr.mxu0 0.0
    %1805 = vmatpush1.msra.mxu0 0.0
    %1806 = vmatprep.subr.mxu0 0.0
    %1807 = vmatpush1.msra.mxu0 0.0
    %1808 = vmatprep.subr.mxu0 0.0
    %1809 = vmatpush1.msra.mxu0 0.0
    %1810 = vmatprep.subr.mxu0 0.0
    %1811 = vmatpush1.msra.mxu0 0.0
    %1812 = vmatprep.subr.mxu0 0.0
    %1813 = vmatpush1.msra.mxu0 0.0
    %1814 = vmatprep.subr.mxu0 0.0
    %1815 = vmatpush1.msra.mxu0 0.0
    %1816 = vmatprep.subr.mxu0 0.0
    %1817 = vmatpush1.msra.mxu0 0.0
    %1818 = vmatprep.subr.mxu0 0.0
    %1819 = vmatpush1.msra.mxu0 0.0
    %1820 = vmatprep.subr.mxu0 0.0
    %1821 = vmatpush1.msra.mxu0 0.0
    %1822 = vmatprep.subr.mxu0 0.0
    %1823 = vmatpush1.msra.mxu0 0.0
    %1824 = vmatprep.mubr.f32.mxu0 0.0
    %1825 = vmatmul.mubr.f32.gmra.mrb[0].mxu0 %v1489
    %v1826 = vpop.f32.mrb[0].mxu0
    %v1827 = vadd.f32 %v1757, %v1826
    %v1828 = vpop.f32.mrb[0].mxu0
    %1829 = vdwg.mxu0
    %v1830 = vld [vmem:[%s6 + $0x4] sm:$0x1]
    %v1831 = vlaneseq
    %v1832 = vshrl.u32 %v1831, 7
    %v1833 = vsub.s32 0, %v1832
    %v1834 = vrot.slane %v1830, %v1833
    %v1835 = vadd.f32 %v1827, %v1834
    %s1836 = scalar_lea.vmem %s3, 384
    %v1837 = vld [vmem:[%s1836] sm:$0xff]
    %v1838 = vld [vmem:[%s1836 + $0x8] sm:$0xff]
    %v1839 = vld [vmem:[%s1836 + $0x10] sm:$0xff]
    %v1840 = vld [vmem:[%s1836 + $0x18] sm:$0xff]
    %v1841 = vld [vmem:[%s1836 + $0x20] sm:$0xff]
    %v1842 = vld [vmem:[%s1836 + $0x28] sm:$0xff]
    %v1843 = vld [vmem:[%s1836 + $0x30] sm:$0xff]
    %v1844 = vld [vmem:[%s1836 + $0x38] sm:$0xff]
    %v1845 = vld [vmem:[%s1836 + $0x40] sm:$0xff]
    %v1846 = vld [vmem:[%s1836 + $0x48] sm:$0xff]
    %v1847 = vld [vmem:[%s1836 + $0x50] sm:$0xff]
    %v1848 = vld [vmem:[%s1836 + $0x58] sm:$0xff]
    %v1849 = vld [vmem:[%s1836 + $0x60] sm:$0xff]
    %v1850 = vld [vmem:[%s1836 + $0x68] sm:$0xff]
    %v1851 = vld [vmem:[%s1836 + $0x70] sm:$0xff]
    %v1852 = vld [vmem:[%s1836 + $0x78] sm:$0xff]
    %v1853 = vld [vmem:[%s1836 + $0x80] sm:$0xff]
    %v1854 = vld [vmem:[%s1836 + $0x88] sm:$0xff]
    %v1855 = vld [vmem:[%s1836 + $0x90] sm:$0xff]
    %v1856 = vld [vmem:[%s1836 + $0x98] sm:$0xff]
    %v1857 = vld [vmem:[%s1836 + $0xa0] sm:$0xff]
    %v1858 = vld [vmem:[%s1836 + $0xa8] sm:$0xff]
    %v1859 = vld [vmem:[%s1836 + $0xb0] sm:$0xff]
    %v1860 = vld [vmem:[%s1836 + $0xb8] sm:$0xff]
    %1861 = vmatprep.subr.mxu0 0.0
    %1862 = vmatpush1.msra.mxu0 %v1853
    %1863 = vmatprep.subr.mxu0 0.0
    %1864 = vmatpush1.msra.mxu0 %v1854
    %1865 = vmatprep.subr.mxu0 0.0
    %1866 = vmatpush1.msra.mxu0 %v1855
    %1867 = vmatprep.subr.mxu0 0.0
    %1868 = vmatpush1.msra.mxu0 %v1856
    %1869 = vmatprep.subr.mxu0 0.0
    %1870 = vmatpush1.msra.mxu0 %v1857
    %1871 = vmatprep.subr.mxu0 0.0
    %1872 = vmatpush1.msra.mxu0 %v1858
    %1873 = vmatprep.subr.mxu0 0.0
    %1874 = vmatpush1.msra.mxu0 %v1859
    %1875 = vmatprep.subr.mxu0 0.0
    %1876 = vmatpush1.msra.mxu0 %v1860
    %1877 = vmatprep.subr.mxu0 0.0
    %1878 = vmatpush1.msra.mxu0 0.0
    %1879 = vmatprep.subr.mxu0 0.0
    %1880 = vmatpush1.msra.mxu0 0.0
    %1881 = vmatprep.subr.mxu0 0.0
    %1882 = vmatpush1.msra.mxu0 0.0
    %1883 = vmatprep.subr.mxu0 0.0
    %1884 = vmatpush1.msra.mxu0 0.0
    %1885 = vmatprep.subr.mxu0 0.0
    %1886 = vmatpush1.msra.mxu0 0.0
    %1887 = vmatprep.subr.mxu0 0.0
    %1888 = vmatpush1.msra.mxu0 0.0
    %1889 = vmatprep.subr.mxu0 0.0
    %1890 = vmatpush1.msra.mxu0 0.0
    %1891 = vmatprep.subr.mxu0 0.0
    %1892 = vmatpush1.msra.mxu0 0.0
    %1893 = vmatprep.subr.mxu0 0.0
    %1894 = vmatpush1.msra.mxu0 0.0
    %1895 = vmatprep.subr.mxu0 0.0
    %1896 = vmatpush1.msra.mxu0 0.0
    %1897 = vmatprep.subr.mxu0 0.0
    %1898 = vmatpush1.msra.mxu0 0.0
    %1899 = vmatprep.subr.mxu0 0.0
    %1900 = vmatpush1.msra.mxu0 0.0
    %1901 = vmatprep.subr.mxu0 0.0
    %1902 = vmatpush1.msra.mxu0 0.0
    %1903 = vmatprep.subr.mxu0 0.0
    %1904 = vmatpush1.msra.mxu0 0.0
    %1905 = vmatprep.subr.mxu0 0.0
    %1906 = vmatpush1.msra.mxu0 0.0
    %1907 = vmatprep.subr.mxu0 0.0
    %1908 = vmatpush1.msra.mxu0 0.0
    %1909 = vmatprep.subr.mxu0 0.0
    %1910 = vmatpush1.msra.mxu0 0.0
    %1911 = vmatprep.subr.mxu0 0.0
    %1912 = vmatpush1.msra.mxu0 0.0
    %1913 = vmatprep.subr.mxu0 0.0
    %1914 = vmatpush1.msra.mxu0 0.0
    %1915 = vmatprep.subr.mxu0 0.0
    %1916 = vmatpush1.msra.mxu0 0.0
    %1917 = vmatprep.subr.mxu0 0.0
    %1918 = vmatpush1.msra.mxu0 0.0
    %1919 = vmatprep.subr.mxu0 0.0
    %1920 = vmatpush1.msra.mxu0 0.0
    %1921 = vmatprep.subr.mxu0 0.0
    %1922 = vmatpush1.msra.mxu0 0.0
    %1923 = vmatprep.subr.mxu0 0.0
    %1924 = vmatpush1.msra.mxu0 0.0
    %1925 = vmatprep.mubr.f32.mxu0 0.0
    %1926 = vmatmul.mubr.f32.gmra.mrb[0].mxu0 %v1517
    %v1927 = vpop.f32.mrb[0].mxu0
    %v1928 = vadd.f32 0.0, %v1927
    %v1929 = vpop.f32.mrb[0].mxu0
    %1930 = vdwg.mxu0
    %1931 = vmatprep.subr.mxu0 0.0
    %1932 = vmatpush1.msra.mxu0 %v1837
    %1933 = vmatprep.subr.mxu0 0.0
    %1934 = vmatpush1.msra.mxu0 %v1838
    %1935 = vmatprep.subr.mxu0 0.0
    %1936 = vmatpush1.msra.mxu0 %v1839
    %1937 = vmatprep.subr.mxu0 0.0
    %1938 = vmatpush1.msra.mxu0 %v1840
    %1939 = vmatprep.subr.mxu0 0.0
    %1940 = vmatpush1.msra.mxu0 %v1841
    %1941 = vmatprep.subr.mxu0 0.0
    %1942 = vmatpush1.msra.mxu0 %v1842
    %1943 = vmatprep.subr.mxu0 0.0
    %1944 = vmatpush1.msra.mxu0 %v1843
    %1945 = vmatprep.subr.mxu0 0.0
    %1946 = vmatpush1.msra.mxu0 %v1844
    %1947 = vmatprep.subr.mxu0 0.0
    %1948 = vmatpush1.msra.mxu0 %v1845
    %1949 = vmatprep.subr.mxu0 0.0
    %1950 = vmatpush1.msra.mxu0 %v1846
    %1951 = vmatprep.subr.mxu0 0.0
    %1952 = vmatpush1.msra.mxu0 %v1847
    %1953 = vmatprep.subr.mxu0 0.0
    %1954 = vmatpush1.msra.mxu0 %v1848
    %1955 = vmatprep.subr.mxu0 0.0
    %1956 = vmatpush1.msra.mxu0 %v1849
    %1957 = vmatprep.subr.mxu0 0.0
    %1958 = vmatpush1.msra.mxu0 %v1850
    %1959 = vmatprep.subr.mxu0 0.0
    %1960 = vmatpush1.msra.mxu0 %v1851
    %1961 = vmatprep.subr.mxu0 0.0
    %1962 = vmatpush1.msra.mxu0 %v1852
    %1963 = vmatprep.subr.mxu0 0.0
    %1964 = vmatpush1.msra.mxu0 0.0
    %1965 = vmatprep.subr.mxu0 0.0
    %1966 = vmatpush1.msra.mxu0 0.0
    %1967 = vmatprep.subr.mxu0 0.0
    %1968 = vmatpush1.msra.mxu0 0.0
    %1969 = vmatprep.subr.mxu0 0.0
    %1970 = vmatpush1.msra.mxu0 0.0
    %1971 = vmatprep.subr.mxu0 0.0
    %1972 = vmatpush1.msra.mxu0 0.0
    %1973 = vmatprep.subr.mxu0 0.0
    %1974 = vmatpush1.msra.mxu0 0.0
    %1975 = vmatprep.subr.mxu0 0.0
    %1976 = vmatpush1.msra.mxu0 0.0
    %1977 = vmatprep.subr.mxu0 0.0
    %1978 = vmatpush1.msra.mxu0 0.0
    %1979 = vmatprep.subr.mxu0 0.0
    %1980 = vmatpush1.msra.mxu0 0.0
    %1981 = vmatprep.subr.mxu0 0.0
    %1982 = vmatpush1.msra.mxu0 0.0
    %1983 = vmatprep.subr.mxu0 0.0
    %1984 = vmatpush1.msra.mxu0 0.0
    %1985 = vmatprep.subr.mxu0 0.0
    %1986 = vmatpush1.msra.mxu0 0.0
    %1987 = vmatprep.subr.mxu0 0.0
    %1988 = vmatpush1.msra.mxu0 0.0
    %1989 = vmatprep.subr.mxu0 0.0
    %1990 = vmatpush1.msra.mxu0 0.0
    %1991 = vmatprep.subr.mxu0 0.0
    %1992 = vmatpush1.msra.mxu0 0.0
    %1993 = vmatprep.subr.mxu0 0.0
    %1994 = vmatpush1.msra.mxu0 0.0
    %1995 = vmatprep.mubr.f32.mxu0 0.0
    %1996 = vmatmul.mubr.f32.gmra.mrb[0].mxu0 %v1489
    %v1997 = vpop.f32.mrb[0].mxu0
    %v1998 = vadd.f32 %v1928, %v1997
    %v1999 = vpop.f32.mrb[0].mxu0
    %2000 = vdwg.mxu0
    %v2001 = vld [vmem:[%s6 + $0x5] sm:$0x1]
    %v2002 = vlaneseq
    %v2003 = vshrl.u32 %v2002, 7
    %v2004 = vsub.s32 0, %v2003
    %v2005 = vrot.slane %v2001, %v2004
    %v2006 = vadd.f32 %v1998, %v2005
    %s2007 = scalar_lea.vmem %s3, 576
    %v2008 = vld [vmem:[%s2007] sm:$0xff]
    %v2009 = vld [vmem:[%s2007 + $0x8] sm:$0xff]
    %v2010 = vld [vmem:[%s2007 + $0x10] sm:$0xff]
    %v2011 = vld [vmem:[%s2007 + $0x18] sm:$0xff]
    %v2012 = vld [vmem:[%s2007 + $0x20] sm:$0xff]
    %v2013 = vld [vmem:[%s2007 + $0x28] sm:$0xff]
    %v2014 = vld [vmem:[%s2007 + $0x30] sm:$0xff]
    %v2015 = vld [vmem:[%s2007 + $0x38] sm:$0xff]
    %v2016 = vld [vmem:[%s2007 + $0x40] sm:$0xff]
    %v2017 = vld [vmem:[%s2007 + $0x48] sm:$0xff]
    %v2018 = vld [vmem:[%s2007 + $0x50] sm:$0xff]
    %v2019 = vld [vmem:[%s2007 + $0x58] sm:$0xff]
    %v2020 = vld [vmem:[%s2007 + $0x60] sm:$0xff]
    %v2021 = vld [vmem:[%s2007 + $0x68] sm:$0xff]
    %v2022 = vld [vmem:[%s2007 + $0x70] sm:$0xff]
    %v2023 = vld [vmem:[%s2007 + $0x78] sm:$0xff]
    %v2024 = vld [vmem:[%s2007 + $0x80] sm:$0xff]
    %v2025 = vld [vmem:[%s2007 + $0x88] sm:$0xff]
    %v2026 = vld [vmem:[%s2007 + $0x90] sm:$0xff]
    %v2027 = vld [vmem:[%s2007 + $0x98] sm:$0xff]
    %v2028 = vld [vmem:[%s2007 + $0xa0] sm:$0xff]
    %v2029 = vld [vmem:[%s2007 + $0xa8] sm:$0xff]
    %v2030 = vld [vmem:[%s2007 + $0xb0] sm:$0xff]
    %v2031 = vld [vmem:[%s2007 + $0xb8] sm:$0xff]
    %2032 = vmatprep.subr.mxu0 0.0
    %2033 = vmatpush1.msra.mxu0 %v2024
    %2034 = vmatprep.subr.mxu0 0.0
    %2035 = vmatpush1.msra.mxu0 %v2025
    %2036 = vmatprep.subr.mxu0 0.0
    %2037 = vmatpush1.msra.mxu0 %v2026
    %2038 = vmatprep.subr.mxu0 0.0
    %2039 = vmatpush1.msra.mxu0 %v2027
    %2040 = vmatprep.subr.mxu0 0.0
    %2041 = vmatpush1.msra.mxu0 %v2028
    %2042 = vmatprep.subr.mxu0 0.0
    %2043 = vmatpush1.msra.mxu0 %v2029
    %2044 = vmatprep.subr.mxu0 0.0
    %2045 = vmatpush1.msra.mxu0 %v2030
    %2046 = vmatprep.subr.mxu0 0.0
    %2047 = vmatpush1.msra.mxu0 %v2031
    %2048 = vmatprep.subr.mxu0 0.0
    %2049 = vmatpush1.msra.mxu0 0.0
    %2050 = vmatprep.subr.mxu0 0.0
    %2051 = vmatpush1.msra.mxu0 0.0
    %2052 = vmatprep.subr.mxu0 0.0
    %2053 = vmatpush1.msra.mxu0 0.0
    %2054 = vmatprep.subr.mxu0 0.0
    %2055 = vmatpush1.msra.mxu0 0.0
    %2056 = vmatprep.subr.mxu0 0.0
    %2057 = vmatpush1.msra.mxu0 0.0
    %2058 = vmatprep.subr.mxu0 0.0
    %2059 = vmatpush1.msra.mxu0 0.0
    %2060 = vmatprep.subr.mxu0 0.0
    %2061 = vmatpush1.msra.mxu0 0.0
    %2062 = vmatprep.subr.mxu0 0.0
    %2063 = vmatpush1.msra.mxu0 0.0
    %2064 = vmatprep.subr.mxu0 0.0
    %2065 = vmatpush1.msra.mxu0 0.0
    %2066 = vmatprep.subr.mxu0 0.0
    %2067 = vmatpush1.msra.mxu0 0.0
    %2068 = vmatprep.subr.mxu0 0.0
    %2069 = vmatpush1.msra.mxu0 0.0
    %2070 = vmatprep.subr.mxu0 0.0
    %2071 = vmatpush1.msra.mxu0 0.0
    %2072 = vmatprep.subr.mxu0 0.0
    %2073 = vmatpush1.msra.mxu0 0.0
    %2074 = vmatprep.subr.mxu0 0.0
    %2075 = vmatpush1.msra.mxu0 0.0
    %2076 = vmatprep.subr.mxu0 0.0
    %2077 = vmatpush1.msra.mxu0 0.0
    %2078 = vmatprep.subr.mxu0 0.0
    %2079 = vmatpush1.msra.mxu0 0.0
    %2080 = vmatprep.subr.mxu0 0.0
    %2081 = vmatpush1.msra.mxu0 0.0
    %2082 = vmatprep.subr.mxu0 0.0
    %2083 = vmatpush1.msra.mxu0 0.0
    %2084 = vmatprep.subr.mxu0 0.0
    %2085 = vmatpush1.msra.mxu0 0.0
    %2086 = vmatprep.subr.mxu0 0.0
    %2087 = vmatpush1.msra.mxu0 0.0
    %2088 = vmatprep.subr.mxu0 0.0
    %2089 = vmatpush1.msra.mxu0 0.0
    %2090 = vmatprep.subr.mxu0 0.0
    %2091 = vmatpush1.msra.mxu0 0.0
    %2092 = vmatprep.subr.mxu0 0.0
    %2093 = vmatpush1.msra.mxu0 0.0
    %2094 = vmatprep.subr.mxu0 0.0
    %2095 = vmatpush1.msra.mxu0 0.0
    %2096 = vmatprep.mubr.f32.mxu0 0.0
    %2097 = vmatmul.mubr.f32.gmra.mrb[0].mxu0 %v1517
    %v2098 = vpop.f32.mrb[0].mxu0
    %v2099 = vadd.f32 0.0, %v2098
    %v2100 = vpop.f32.mrb[0].mxu0
    %2101 = vdwg.mxu0
    %2102 = vmatprep.subr.mxu0 0.0
    %2103 = vmatpush1.msra.mxu0 %v2008
    %2104 = vmatprep.subr.mxu0 0.0
    %2105 = vmatpush1.msra.mxu0 %v2009
    %2106 = vmatprep.subr.mxu0 0.0
    %2107 = vmatpush1.msra.mxu0 %v2010
    %2108 = vmatprep.subr.mxu0 0.0
    %2109 = vmatpush1.msra.mxu0 %v2011
    %2110 = vmatprep.subr.mxu0 0.0
    %2111 = vmatpush1.msra.mxu0 %v2012
    %2112 = vmatprep.subr.mxu0 0.0
    %2113 = vmatpush1.msra.mxu0 %v2013
    %2114 = vmatprep.subr.mxu0 0.0
    %2115 = vmatpush1.msra.mxu0 %v2014
    %2116 = vmatprep.subr.mxu0 0.0
    %2117 = vmatpush1.msra.mxu0 %v2015
    %2118 = vmatprep.subr.mxu0 0.0
    %2119 = vmatpush1.msra.mxu0 %v2016
    %2120 = vmatprep.subr.mxu0 0.0
    %2121 = vmatpush1.msra.mxu0 %v2017
    %2122 = vmatprep.subr.mxu0 0.0
    %2123 = vmatpush1.msra.mxu0 %v2018
    %2124 = vmatprep.subr.mxu0 0.0
    %2125 = vmatpush1.msra.mxu0 %v2019
    %2126 = vmatprep.subr.mxu0 0.0
    %2127 = vmatpush1.msra.mxu0 %v2020
    %2128 = vmatprep.subr.mxu0 0.0
    %2129 = vmatpush1.msra.mxu0 %v2021
    %2130 = vmatprep.subr.mxu0 0.0
    %2131 = vmatpush1.msra.mxu0 %v2022
    %2132 = vmatprep.subr.mxu0 0.0
    %2133 = vmatpush1.msra.mxu0 %v2023
    %2134 = vmatprep.subr.mxu0 0.0
    %2135 = vmatpush1.msra.mxu0 0.0
    %2136 = vmatprep.subr.mxu0 0.0
    %2137 = vmatpush1.msra.mxu0 0.0
    %2138 = vmatprep.subr.mxu0 0.0
    %2139 = vmatpush1.msra.mxu0 0.0
    %2140 = vmatprep.subr.mxu0 0.0
    %2141 = vmatpush1.msra.mxu0 0.0
    %2142 = vmatprep.subr.mxu0 0.0
    %2143 = vmatpush1.msra.mxu0 0.0
    %2144 = vmatprep.subr.mxu0 0.0
    %2145 = vmatpush1.msra.mxu0 0.0
    %2146 = vmatprep.subr.mxu0 0.0
    %2147 = vmatpush1.msra.mxu0 0.0
    %2148 = vmatprep.subr.mxu0 0.0
    %2149 = vmatpush1.msra.mxu0 0.0
    %2150 = vmatprep.subr.mxu0 0.0
    %2151 = vmatpush1.msra.mxu0 0.0
    %2152 = vmatprep.subr.mxu0 0.0
    %2153 = vmatpush1.msra.mxu0 0.0
    %2154 = vmatprep.subr.mxu0 0.0
    %2155 = vmatpush1.msra.mxu0 0.0
    %2156 = vmatprep.subr.mxu0 0.0
    %2157 = vmatpush1.msra.mxu0 0.0
    %2158 = vmatprep.subr.mxu0 0.0
    %2159 = vmatpush1.msra.mxu0 0.0
    %2160 = vmatprep.subr.mxu0 0.0
    %2161 = vmatpush1.msra.mxu0 0.0
    %2162 = vmatprep.subr.mxu0 0.0
    %2163 = vmatpush1.msra.mxu0 0.0
    %2164 = vmatprep.subr.mxu0 0.0
    %2165 = vmatpush1.msra.mxu0 0.0
    %2166 = vmatprep.mubr.f32.mxu0 0.0
    %2167 = vmatmul.mubr.f32.gmra.mrb[0].mxu0 %v1489
    %v2168 = vpop.f32.mrb[0].mxu0
    %v2169 = vadd.f32 %v2099, %v2168
    %v2170 = vpop.f32.mrb[0].mxu0
    %2171 = vdwg.mxu0
    %v2172 = vld [vmem:[%s6 + $0x6] sm:$0x1]
    %v2173 = vlaneseq
    %v2174 = vshrl.u32 %v2173, 7
    %v2175 = vsub.s32 0, %v2174
    %v2176 = vrot.slane %v2172, %v2175
    %v2177 = vadd.f32 %v2169, %v2176
    %v2178 = vxor.u32 %v1664, 2147483648
    %v2179 = vmul.f32 %v2178, 1.442695
    %v2180 = vpow.pop %v2179
    %v2181 = vadd.f32 %v2180, 1.0
    %v2182 = vrcp.pop %v2181
    %v2183 = vmul.f32 1.0, %v2182
    %v2184 = vxor.u32 %v1835, 2147483648
    %v2185 = vmul.f32 %v2184, 1.442695
    %v2186 = vpow.pop %v2185
    %v2187 = vadd.f32 %v2186, 1.0
    %v2188 = vrcp.pop %v2187
    %v2189 = vmul.f32 1.0, %v2188
    %v2190 = vtanh.pop %v2006
    %v2191 = vxor.u32 %v2177, 2147483648
    %v2192 = vmul.f32 %v2191, 1.442695
    %v2193 = vpow.pop %v2192
    %v2194 = vadd.f32 %v2193, 1.0
    %v2195 = vrcp.pop %v2194
    %v2196 = vmul.f32 1.0, %v2195
    %v2197 = vmul.f32 %v2189, 0.0
    %v2198 = vmul.f32 %v2183, %v2190
    %v2199 = vadd.f32 %v2197, %v2198
    %v2200 = vtanh.pop %v2199
    %v2201 = vmul.f32 %v2196, %v2200
    %v2203 = vsel %vm1515, %v2201, 0
    %2205 = vmatprep.subr.mxu0 0.0
    %2206 = vmatpush1.msra.mxu0 %v1507
    %2207 = vmatprep.subr.mxu0 0.0
    %2208 = vmatpush1.msra.mxu0 %v1508
    %2209 = vmatprep.subr.mxu0 0.0
    %2210 = vmatpush1.msra.mxu0 %v1509
    %2211 = vmatprep.subr.mxu0 0.0
    %2212 = vmatpush1.msra.mxu0 %v1510
    %2213 = vmatprep.subr.mxu0 0.0
    %2214 = vmatpush1.msra.mxu0 %v1511
    %2215 = vmatprep.subr.mxu0 0.0
    %2216 = vmatpush1.msra.mxu0 %v1512
    %2217 = vmatprep.subr.mxu0 0.0
    %2218 = vmatpush1.msra.mxu0 %v1513
    %2219 = vmatprep.subr.mxu0 0.0
    %2220 = vmatpush1.msra.mxu0 %v1514
    %2221 = vmatprep.subr.mxu0 0.0
    %2222 = vmatpush1.msra.mxu0 0.0
    %2223 = vmatprep.subr.mxu0 0.0
    %2224 = vmatpush1.msra.mxu0 0.0
    %2225 = vmatprep.subr.mxu0 0.0
    %2226 = vmatpush1.msra.mxu0 0.0
    %2227 = vmatprep.subr.mxu0 0.0
    %2228 = vmatpush1.msra.mxu0 0.0
    %2229 = vmatprep.subr.mxu0 0.0
    %2230 = vmatpush1.msra.mxu0 0.0
    %2231 = vmatprep.subr.mxu0 0.0
    %2232 = vmatpush1.msra.mxu0 0.0
    %2233 = vmatprep.subr.mxu0 0.0
    %2234 = vmatpush1.msra.mxu0 0.0
    %2235 = vmatprep.subr.mxu0 0.0
    %2236 = vmatpush1.msra.mxu0 0.0
    %2237 = vmatprep.subr.mxu0 0.0
    %2238 = vmatpush1.msra.mxu0 0.0
    %2239 = vmatprep.subr.mxu0 0.0
    %2240 = vmatpush1.msra.mxu0 0.0
    %2241 = vmatprep.subr.mxu0 0.0
    %2242 = vmatpush1.msra.mxu0 0.0
    %2243 = vmatprep.subr.mxu0 0.0
    %2244 = vmatpush1.msra.mxu0 0.0
    %2245 = vmatprep.subr.mxu0 0.0
    %2246 = vmatpush1.msra.mxu0 0.0
    %2247 = vmatprep.subr.mxu0 0.0
    %2248 = vmatpush1.msra.mxu0 0.0
    %2249 = vmatprep.subr.mxu0 0.0
    %2250 = vmatpush1.msra.mxu0 0.0
    %2251 = vmatprep.subr.mxu0 0.0
    %2252 = vmatpush1.msra.mxu0 0.0
    %2253 = vmatprep.subr.mxu0 0.0
    %2254 = vmatpush1.msra.mxu0 0.0
    %2255 = vmatprep.subr.mxu0 0.0
    %2256 = vmatpush1.msra.mxu0 0.0
    %2257 = vmatprep.subr.mxu0 0.0
    %2258 = vmatpush1.msra.mxu0 0.0
    %2259 = vmatprep.subr.mxu0 0.0
    %2260 = vmatpush1.msra.mxu0 0.0
    %2261 = vmatprep.subr.mxu0 0.0
    %2262 = vmatpush1.msra.mxu0 0.0
    %2263 = vmatprep.subr.mxu0 0.0
    %2264 = vmatpush1.msra.mxu0 0.0
    %2265 = vmatprep.subr.mxu0 0.0
    %2266 = vmatpush1.msra.mxu0 0.0
    %2267 = vmatprep.subr.mxu0 0.0
    %2268 = vmatpush1.msra.mxu0 0.0
    %2269 = vmatprep.mubr.f32.mxu0 0.0
    %2270 = vmatmul.mubr.f32.gmra.mrb[0].mxu0 %v2203
    %v2271 = vpop.f32.mrb[0].mxu0
    %v2272 = vadd.f32 0.0, %v2271
    %v2273 = vpop.f32.mrb[0].mxu0
    %2274 = vdwg.mxu0
    %2275 = vmatprep.subr.mxu0 0.0
    %2276 = vmatpush1.msra.mxu0 %v1491
    %2277 = vmatprep.subr.mxu0 0.0
    %2278 = vmatpush1.msra.mxu0 %v1492
    %2279 = vmatprep.subr.mxu0 0.0
    %2280 = vmatpush1.msra.mxu0 %v1493
    %2281 = vmatprep.subr.mxu0 0.0
    %2282 = vmatpush1.msra.mxu0 %v1494
    %2283 = vmatprep.subr.mxu0 0.0
    %2284 = vmatpush1.msra.mxu0 %v1495
    %2285 = vmatprep.subr.mxu0 0.0
    %2286 = vmatpush1.msra.mxu0 %v1496
    %2287 = vmatprep.subr.mxu0 0.0
    %2288 = vmatpush1.msra.mxu0 %v1497
    %2289 = vmatprep.subr.mxu0 0.0
    %2290 = vmatpush1.msra.mxu0 %v1498
    %2291 = vmatprep.subr.mxu0 0.0
    %2292 = vmatpush1.msra.mxu0 %v1499
    %2293 = vmatprep.subr.mxu0 0.0
    %2294 = vmatpush1.msra.mxu0 %v1500
    %2295 = vmatprep.subr.mxu0 0.0
    %2296 = vmatpush1.msra.mxu0 %v1501
    %2297 = vmatprep.subr.mxu0 0.0
    %2298 = vmatpush1.msra.mxu0 %v1502
    %2299 = vmatprep.subr.mxu0 0.0
    %2300 = vmatpush1.msra.mxu0 %v1503
    %2301 = vmatprep.subr.mxu0 0.0
    %2302 = vmatpush1.msra.mxu0 %v1504
    %2303 = vmatprep.subr.mxu0 0.0
    %2304 = vmatpush1.msra.mxu0 %v1505
    %2305 = vmatprep.subr.mxu0 0.0
    %2306 = vmatpush1.msra.mxu0 %v1506
    %2307 = vmatprep.subr.mxu0 0.0
    %2308 = vmatpush1.msra.mxu0 0.0
    %2309 = vmatprep.subr.mxu0 0.0
    %2310 = vmatpush1.msra.mxu0 0.0
    %2311 = vmatprep.subr.mxu0 0.0
    %2312 = vmatpush1.msra.mxu0 0.0
    %2313 = vmatprep.subr.mxu0 0.0
    %2314 = vmatpush1.msra.mxu0 0.0
    %2315 = vmatprep.subr.mxu0 0.0
    %2316 = vmatpush1.msra.mxu0 0.0
    %2317 = vmatprep.subr.mxu0 0.0
    %2318 = vmatpush1.msra.mxu0 0.0
    %2319 = vmatprep.subr.mxu0 0.0
    %2320 = vmatpush1.msra.mxu0 0.0
    %2321 = vmatprep.subr.mxu0 0.0
    %2322 = vmatpush1.msra.mxu0 0.0
    %2323 = vmatprep.subr.mxu0 0.0
    %2324 = vmatpush1.msra.mxu0 0.0
    %2325 = vmatprep.subr.mxu0 0.0
    %2326 = vmatpush1.msra.mxu0 0.0
    %2327 = vmatprep.subr.mxu0 0.0
    %2328 = vmatpush1.msra.mxu0 0.0
    %2329 = vmatprep.subr.mxu0 0.0
    %2330 = vmatpush1.msra.mxu0 0.0
    %2331 = vmatprep.subr.mxu0 0.0
    %2332 = vmatpush1.msra.mxu0 0.0
    %2333 = vmatprep.subr.mxu0 0.0
    %2334 = vmatpush1.msra.mxu0 0.0
    %2335 = vmatprep.subr.mxu0 0.0
    %2336 = vmatpush1.msra.mxu0 0.0
    %2337 = vmatprep.subr.mxu0 0.0
    %2338 = vmatpush1.msra.mxu0 0.0
    %2339 = vmatprep.mubr.f32.mxu0 0.0
    %2340 = vmatmul.mubr.f32.gmra.mrb[0].mxu0 %v1490
    %v2341 = vpop.f32.mrb[0].mxu0
    %v2342 = vadd.f32 %v2272, %v2341
    %v2343 = vpop.f32.mrb[0].mxu0
    %2344 = vdwg.mxu0
    %v2345 = vadd.f32 %v2342, %v1663
    %2346 = vmatprep.subr.mxu0 0.0
    %2347 = vmatpush1.msra.mxu0 %v1682
    %2348 = vmatprep.subr.mxu0 0.0
    %2349 = vmatpush1.msra.mxu0 %v1683
    %2350 = vmatprep.subr.mxu0 0.0
    %2351 = vmatpush1.msra.mxu0 %v1684
    %2352 = vmatprep.subr.mxu0 0.0
    %2353 = vmatpush1.msra.mxu0 %v1685
    %2354 = vmatprep.subr.mxu0 0.0
    %2355 = vmatpush1.msra.mxu0 %v1686
    %2356 = vmatprep.subr.mxu0 0.0
    %2357 = vmatpush1.msra.mxu0 %v1687
    %2358 = vmatprep.subr.mxu0 0.0
    %2359 = vmatpush1.msra.mxu0 %v1688
    %2360 = vmatprep.subr.mxu0 0.0
    %2361 = vmatpush1.msra.mxu0 %v1689
    %2362 = vmatprep.subr.mxu0 0.0
    %2363 = vmatpush1.msra.mxu0 0.0
    %2364 = vmatprep.subr.mxu0 0.0
    %2365 = vmatpush1.msra.mxu0 0.0
    %2366 = vmatprep.subr.mxu0 0.0
    %2367 = vmatpush1.msra.mxu0 0.0
    %2368 = vmatprep.subr.mxu0 0.0
    %2369 = vmatpush1.msra.mxu0 0.0
    %2370 = vmatprep.subr.mxu0 0.0
    %2371 = vmatpush1.msra.mxu0 0.0
    %2372 = vmatprep.subr.mxu0 0.0
    %2373 = vmatpush1.msra.mxu0 0.0
    %2374 = vmatprep.subr.mxu0 0.0
    %2375 = vmatpush1.msra.mxu0 0.0
    %2376 = vmatprep.subr.mxu0 0.0
    %2377 = vmatpush1.msra.mxu0 0.0
    %2378 = vmatprep.subr.mxu0 0.0
    %2379 = vmatpush1.msra.mxu0 0.0
    %2380 = vmatprep.subr.mxu0 0.0
    %2381 = vmatpush1.msra.mxu0 0.0
    %2382 = vmatprep.subr.mxu0 0.0
    %2383 = vmatpush1.msra.mxu0 0.0
    %2384 = vmatprep.subr.mxu0 0.0
    %2385 = vmatpush1.msra.mxu0 0.0
    %2386 = vmatprep.subr.mxu0 0.0
    %2387 = vmatpush1.msra.mxu0 0.0
    %2388 = vmatprep.subr.mxu0 0.0
    %2389 = vmatpush1.msra.mxu0 0.0
    %2390 = vmatprep.subr.mxu0 0.0
    %2391 = vmatpush1.msra.mxu0 0.0
    %2392 = vmatprep.subr.mxu0 0.0
    %2393 = vmatpush1.msra.mxu0 0.0
    %2394 = vmatprep.subr.mxu0 0.0
    %2395 = vmatpush1.msra.mxu0 0.0
    %2396 = vmatprep.subr.mxu0 0.0
    %2397 = vmatpush1.msra.mxu0 0.0
    %2398 = vmatprep.subr.mxu0 0.0
    %2399 = vmatpush1.msra.mxu0 0.0
    %2400 = vmatprep.subr.mxu0 0.0
    %2401 = vmatpush1.msra.mxu0 0.0
    %2402 = vmatprep.subr.mxu0 0.0
    %2403 = vmatpush1.msra.mxu0 0.0
    %2404 = vmatprep.subr.mxu0 0.0
    %2405 = vmatpush1.msra.mxu0 0.0
    %2406 = vmatprep.subr.mxu0 0.0
    %2407 = vmatpush1.msra.mxu0 0.0
    %2408 = vmatprep.subr.mxu0 0.0
    %2409 = vmatpush1.msra.mxu0 0.0
    %2410 = vmatprep.mubr.f32.mxu0 0.0
    %2411 = vmatmul.mubr.f32.gmra.mrb[0].mxu0 %v2203
    %v2412 = vpop.f32.mrb[0].mxu0
    %v2413 = vadd.f32 0.0, %v2412
    %v2414 = vpop.f32.mrb[0].mxu0
    %2415 = vdwg.mxu0
    %2416 = vmatprep.subr.mxu0 0.0
    %2417 = vmatpush1.msra.mxu0 %v1666
    %2418 = vmatprep.subr.mxu0 0.0
    %2419 = vmatpush1.msra.mxu0 %v1667
    %2420 = vmatprep.subr.mxu0 0.0
    %2421 = vmatpush1.msra.mxu0 %v1668
    %2422 = vmatprep.subr.mxu0 0.0
    %2423 = vmatpush1.msra.mxu0 %v1669
    %2424 = vmatprep.subr.mxu0 0.0
    %2425 = vmatpush1.msra.mxu0 %v1670
    %2426 = vmatprep.subr.mxu0 0.0
    %2427 = vmatpush1.msra.mxu0 %v1671
    %2428 = vmatprep.subr.mxu0 0.0
    %2429 = vmatpush1.msra.mxu0 %v1672
    %2430 = vmatprep.subr.mxu0 0.0
    %2431 = vmatpush1.msra.mxu0 %v1673
    %2432 = vmatprep.subr.mxu0 0.0
    %2433 = vmatpush1.msra.mxu0 %v1674
    %2434 = vmatprep.subr.mxu0 0.0
    %2435 = vmatpush1.msra.mxu0 %v1675
    %2436 = vmatprep.subr.mxu0 0.0
    %2437 = vmatpush1.msra.mxu0 %v1676
    %2438 = vmatprep.subr.mxu0 0.0
    %2439 = vmatpush1.msra.mxu0 %v1677
    %2440 = vmatprep.subr.mxu0 0.0
    %2441 = vmatpush1.msra.mxu0 %v1678
    %2442 = vmatprep.subr.mxu0 0.0
    %2443 = vmatpush1.msra.mxu0 %v1679
    %2444 = vmatprep.subr.mxu0 0.0
    %2445 = vmatpush1.msra.mxu0 %v1680
    %2446 = vmatprep.subr.mxu0 0.0
    %2447 = vmatpush1.msra.mxu0 %v1681
    %2448 = vmatprep.subr.mxu0 0.0
    %2449 = vmatpush1.msra.mxu0 0.0
    %2450 = vmatprep.subr.mxu0 0.0
    %2451 = vmatpush1.msra.mxu0 0.0
    %2452 = vmatprep.subr.mxu0 0.0
    %2453 = vmatpush1.msra.mxu0 0.0
    %2454 = vmatprep.subr.mxu0 0.0
    %2455 = vmatpush1.msra.mxu0 0.0
    %2456 = vmatprep.subr.mxu0 0.0
    %2457 = vmatpush1.msra.mxu0 0.0
    %2458 = vmatprep.subr.mxu0 0.0
    %2459 = vmatpush1.msra.mxu0 0.0
    %2460 = vmatprep.subr.mxu0 0.0
    %2461 = vmatpush1.msra.mxu0 0.0
    %2462 = vmatprep.subr.mxu0 0.0
    %2463 = vmatpush1.msra.mxu0 0.0
    %2464 = vmatprep.subr.mxu0 0.0
    %2465 = vmatpush1.msra.mxu0 0.0
    %2466 = vmatprep.subr.mxu0 0.0
    %2467 = vmatpush1.msra.mxu0 0.0
    %2468 = vmatprep.subr.mxu0 0.0
    %2469 = vmatpush1.msra.mxu0 0.0
    %2470 = vmatprep.subr.mxu0 0.0
    %2471 = vmatpush1.msra.mxu0 0.0
    %2472 = vmatprep.subr.mxu0 0.0
    %2473 = vmatpush1.msra.mxu0 0.0
    %2474 = vmatprep.subr.mxu0 0.0
    %2475 = vmatpush1.msra.mxu0 0.0
    %2476 = vmatprep.subr.mxu0 0.0
    %2477 = vmatpush1.msra.mxu0 0.0
    %2478 = vmatprep.subr.mxu0 0.0
    %2479 = vmatpush1.msra.mxu0 0.0
    %2480 = vmatprep.mubr.f32.mxu0 0.0
    %2481 = vmatmul.mubr.f32.gmra.mrb[0].mxu0 %v1490
    %v2482 = vpop.f32.mrb[0].mxu0
    %v2483 = vadd.f32 %v2413, %v2482
    %v2484 = vpop.f32.mrb[0].mxu0
    %2485 = vdwg.mxu0
    %v2486 = vadd.f32 %v2483, %v1834
    %2487 = vmatprep.subr.mxu0 0.0
    %2488 = vmatpush1.msra.mxu0 %v1853
    %2489 = vmatprep.subr.mxu0 0.0
    %2490 = vmatpush1.msra.mxu0 %v1854
    %2491 = vmatprep.subr.mxu0 0.0
    %2492 = vmatpush1.msra.mxu0 %v1855
    %2493 = vmatprep.subr.mxu0 0.0
    %2494 = vmatpush1.msra.mxu0 %v1856
    %2495 = vmatprep.subr.mxu0 0.0
    %2496 = vmatpush1.msra.mxu0 %v1857
    %2497 = vmatprep.subr.mxu0 0.0
    %2498 = vmatpush1.msra.mxu0 %v1858
    %2499 = vmatprep.subr.mxu0 0.0
    %2500 = vmatpush1.msra.mxu0 %v1859
    %2501 = vmatprep.subr.mxu0 0.0
    %2502 = vmatpush1.msra.mxu0 %v1860
    %2503 = vmatprep.subr.mxu0 0.0
    %2504 = vmatpush1.msra.mxu0 0.0
    %2505 = vmatprep.subr.mxu0 0.0
    %2506 = vmatpush1.msra.mxu0 0.0
    %2507 = vmatprep.subr.mxu0 0.0
    %2508 = vmatpush1.msra.mxu0 0.0
    %2509 = vmatprep.subr.mxu0 0.0
    %2510 = vmatpush1.msra.mxu0 0.0
    %2511 = vmatprep.subr.mxu0 0.0
    %2512 = vmatpush1.msra.mxu0 0.0
    %2513 = vmatprep.subr.mxu0 0.0
    %2514 = vmatpush1.msra.mxu0 0.0
    %2515 = vmatprep.subr.mxu0 0.0
    %2516 = vmatpush1.msra.mxu0 0.0
    %2517 = vmatprep.subr.mxu0 0.0
    %2518 = vmatpush1.msra.mxu0 0.0
    %2519 = vmatprep.subr.mxu0 0.0
    %2520 = vmatpush1.msra.mxu0 0.0
    %2521 = vmatprep.subr.mxu0 0.0
    %2522 = vmatpush1.msra.mxu0 0.0
    %2523 = vmatprep.subr.mxu0 0.0
    %2524 = vmatpush1.msra.mxu0 0.0
    %2525 = vmatprep.subr.mxu0 0.0
    %2526 = vmatpush1.msra.mxu0 0.0
    %2527 = vmatprep.subr.mxu0 0.0
    %2528 = vmatpush1.msra.mxu0 0.0
    %2529 = vmatprep.subr.mxu0 0.0
    %2530 = vmatpush1.msra.mxu0 0.0
    %2531 = vmatprep.subr.mxu0 0.0
    %2532 = vmatpush1.msra.mxu0 0.0
    %2533 = vmatprep.subr.mxu0 0.0
    %2534 = vmatpush1.msra.mxu0 0.0
    %2535 = vmatprep.subr.mxu0 0.0
    %2536 = vmatpush1.msra.mxu0 0.0
    %2537 = vmatprep.subr.mxu0 0.0
    %2538 = vmatpush1.msra.mxu0 0.0
    %2539 = vmatprep.subr.mxu0 0.0
    %2540 = vmatpush1.msra.mxu0 0.0
    %2541 = vmatprep.subr.mxu0 0.0
    %2542 = vmatpush1.msra.mxu0 0.0
    %2543 = vmatprep.subr.mxu0 0.0
    %2544 = vmatpush1.msra.mxu0 0.0
    %2545 = vmatprep.subr.mxu0 0.0
    %2546 = vmatpush1.msra.mxu0 0.0
    %2547 = vmatprep.subr.mxu0 0.0
    %2548 = vmatpush1.msra.mxu0 0.0
    %2549 = vmatprep.subr.mxu0 0.0
    %2550 = vmatpush1.msra.mxu0 0.0
    %2551 = vmatprep.mubr.f32.mxu0 0.0
    %2552 = vmatmul.mubr.f32.gmra.mrb[0].mxu0 %v2203
    %v2553 = vpop.f32.mrb[0].mxu0
    %v2554 = vadd.f32 0.0, %v2553
    %v2555 = vpop.f32.mrb[0].mxu0
    %2556 = vdwg.mxu0
    %2557 = vmatprep.subr.mxu0 0.0
    %2558 = vmatpush1.msra.mxu0 %v1837
    %2559 = vmatprep.subr.mxu0 0.0
    %2560 = vmatpush1.msra.mxu0 %v1838
    %2561 = vmatprep.subr.mxu0 0.0
    %2562 = vmatpush1.msra.mxu0 %v1839
    %2563 = vmatprep.subr.mxu0 0.0
    %2564 = vmatpush1.msra.mxu0 %v1840
    %2565 = vmatprep.subr.mxu0 0.0
    %2566 = vmatpush1.msra.mxu0 %v1841
    %2567 = vmatprep.subr.mxu0 0.0
    %2568 = vmatpush1.msra.mxu0 %v1842
    %2569 = vmatprep.subr.mxu0 0.0
    %2570 = vmatpush1.msra.mxu0 %v1843
    %2571 = vmatprep.subr.mxu0 0.0
    %2572 = vmatpush1.msra.mxu0 %v1844
    %2573 = vmatprep.subr.mxu0 0.0
    %2574 = vmatpush1.msra.mxu0 %v1845
    %2575 = vmatprep.subr.mxu0 0.0
    %2576 = vmatpush1.msra.mxu0 %v1846
    %2577 = vmatprep.subr.mxu0 0.0
    %2578 = vmatpush1.msra.mxu0 %v1847
    %2579 = vmatprep.subr.mxu0 0.0
    %2580 = vmatpush1.msra.mxu0 %v1848
    %2581 = vmatprep.subr.mxu0 0.0
    %2582 = vmatpush1.msra.mxu0 %v1849
    %2583 = vmatprep.subr.mxu0 0.0
    %2584 = vmatpush1.msra.mxu0 %v1850
    %2585 = vmatprep.subr.mxu0 0.0
    %2586 = vmatpush1.msra.mxu0 %v1851
    %2587 = vmatprep.subr.mxu0 0.0
    %2588 = vmatpush1.msra.mxu0 %v1852
    %2589 = vmatprep.subr.mxu0 0.0
    %2590 = vmatpush1.msra.mxu0 0.0
    %2591 = vmatprep.subr.mxu0 0.0
    %2592 = vmatpush1.msra.mxu0 0.0
    %2593 = vmatprep.subr.mxu0 0.0
    %2594 = vmatpush1.msra.mxu0 0.0
    %2595 = vmatprep.subr.mxu0 0.0
    %2596 = vmatpush1.msra.mxu0 0.0
    %2597 = vmatprep.subr.mxu0 0.0
    %2598 = vmatpush1.msra.mxu0 0.0
    %2599 = vmatprep.subr.mxu0 0.0
    %2600 = vmatpush1.msra.mxu0 0.0
    %2601 = vmatprep.subr.mxu0 0.0
    %2602 = vmatpush1.msra.mxu0 0.0
    %2603 = vmatprep.subr.mxu0 0.0
    %2604 = vmatpush1.msra.mxu0 0.0
    %2605 = vmatprep.subr.mxu0 0.0
    %2606 = vmatpush1.msra.mxu0 0.0
    %2607 = vmatprep.subr.mxu0 0.0
    %2608 = vmatpush1.msra.mxu0 0.0
    %2609 = vmatprep.subr.mxu0 0.0
    %2610 = vmatpush1.msra.mxu0 0.0
    %2611 = vmatprep.subr.mxu0 0.0
    %2612 = vmatpush1.msra.mxu0 0.0
    %2613 = vmatprep.subr.mxu0 0.0
    %2614 = vmatpush1.msra.mxu0 0.0
    %2615 = vmatprep.subr.mxu0 0.0
    %2616 = vmatpush1.msra.mxu0 0.0
    %2617 = vmatprep.subr.mxu0 0.0
    %2618 = vmatpush1.msra.mxu0 0.0
    %2619 = vmatprep.subr.mxu0 0.0
    %2620 = vmatpush1.msra.mxu0 0.0
    %2621 = vmatprep.mubr.f32.mxu0 0.0
    %2622 = vmatmul.mubr.f32.gmra.mrb[0].mxu0 %v1490
    %v2623 = vpop.f32.mrb[0].mxu0
    %v2624 = vadd.f32 %v2554, %v2623
    %v2625 = vpop.f32.mrb[0].mxu0
    %2626 = vdwg.mxu0
    %v2627 = vadd.f32 %v2624, %v2005
    %2628 = vmatprep.subr.mxu0 0.0
    %2629 = vmatpush1.msra.mxu0 %v2024
    %2630 = vmatprep.subr.mxu0 0.0
    %2631 = vmatpush1.msra.mxu0 %v2025
    %2632 = vmatprep.subr.mxu0 0.0
    %2633 = vmatpush1.msra.mxu0 %v2026
    %2634 = vmatprep.subr.mxu0 0.0
    %2635 = vmatpush1.msra.mxu0 %v2027
    %2636 = vmatprep.subr.mxu0 0.0
    %2637 = vmatpush1.msra.mxu0 %v2028
    %2638 = vmatprep.subr.mxu0 0.0
    %2639 = vmatpush1.msra.mxu0 %v2029
    %2640 = vmatprep.subr.mxu0 0.0
    %2641 = vmatpush1.msra.mxu0 %v2030
    %2642 = vmatprep.subr.mxu0 0.0
    %2643 = vmatpush1.msra.mxu0 %v2031
    %2644 = vmatprep.subr.mxu0 0.0
    %2645 = vmatpush1.msra.mxu0 0.0
    %2646 = vmatprep.subr.mxu0 0.0
    %2647 = vmatpush1.msra.mxu0 0.0
    %2648 = vmatprep.subr.mxu0 0.0
    %2649 = vmatpush1.msra.mxu0 0.0
    %2650 = vmatprep.subr.mxu0 0.0
    %2651 = vmatpush1.msra.mxu0 0.0
    %2652 = vmatprep.subr.mxu0 0.0
    %2653 = vmatpush1.msra.mxu0 0.0
    %2654 = vmatprep.subr.mxu0 0.0
    %2655 = vmatpush1.msra.mxu0 0.0
    %2656 = vmatprep.subr.mxu0 0.0
    %2657 = vmatpush1.msra.mxu0 0.0
    %2658 = vmatprep.subr.mxu0 0.0
    %2659 = vmatpush1.msra.mxu0 0.0
    %2660 = vmatprep.subr.mxu0 0.0
    %2661 = vmatpush1.msra.mxu0 0.0
    %2662 = vmatprep.subr.mxu0 0.0
    %2663 = vmatpush1.msra.mxu0 0.0
    %2664 = vmatprep.subr.mxu0 0.0
    %2665 = vmatpush1.msra.mxu0 0.0
    %2666 = vmatprep.subr.mxu0 0.0
    %2667 = vmatpush1.msra.mxu0 0.0
    %2668 = vmatprep.subr.mxu0 0.0
    %2669 = vmatpush1.msra.mxu0 0.0
    %2670 = vmatprep.subr.mxu0 0.0
    %2671 = vmatpush1.msra.mxu0 0.0
    %2672 = vmatprep.subr.mxu0 0.0
    %2673 = vmatpush1.msra.mxu0 0.0
    %2674 = vmatprep.subr.mxu0 0.0
    %2675 = vmatpush1.msra.mxu0 0.0
    %2676 = vmatprep.subr.mxu0 0.0
    %2677 = vmatpush1.msra.mxu0 0.0
    %2678 = vmatprep.subr.mxu0 0.0
    %2679 = vmatpush1.msra.mxu0 0.0
    %2680 = vmatprep.subr.mxu0 0.0
    %2681 = vmatpush1.msra.mxu0 0.0
    %2682 = vmatprep.subr.mxu0 0.0
    %2683 = vmatpush1.msra.mxu0 0.0
    %2684 = vmatprep.subr.mxu0 0.0
    %2685 = vmatpush1.msra.mxu0 0.0
    %2686 = vmatprep.subr.mxu0 0.0
    %2687 = vmatpush1.msra.mxu0 0.0
    %2688 = vmatprep.subr.mxu0 0.0
    %2689 = vmatpush1.msra.mxu0 0.0
    %2690 = vmatprep.subr.mxu0 0.0
    %2691 = vmatpush1.msra.mxu0 0.0
    %2692 = vmatprep.mubr.f32.mxu0 0.0
    %2693 = vmatmul.mubr.f32.gmra.mrb[0].mxu0 %v2203
    %v2694 = vpop.f32.mrb[0].mxu0
    %v2695 = vadd.f32 0.0, %v2694
    %v2696 = vpop.f32.mrb[0].mxu0
    %2697 = vdwg.mxu0
    %2698 = vmatprep.subr.mxu0 0.0
    %2699 = vmatpush1.msra.mxu0 %v2008
    %2700 = vmatprep.subr.mxu0 0.0
    %2701 = vmatpush1.msra.mxu0 %v2009
    %2702 = vmatprep.subr.mxu0 0.0
    %2703 = vmatpush1.msra.mxu0 %v2010
    %2704 = vmatprep.subr.mxu0 0.0
    %2705 = vmatpush1.msra.mxu0 %v2011
    %2706 = vmatprep.subr.mxu0 0.0
    %2707 = vmatpush1.msra.mxu0 %v2012
    %2708 = vmatprep.subr.mxu0 0.0
    %2709 = vmatpush1.msra.mxu0 %v2013
    %2710 = vmatprep.subr.mxu0 0.0
    %2711 = vmatpush1.msra.mxu0 %v2014
    %2712 = vmatprep.subr.mxu0 0.0
    %2713 = vmatpush1.msra.mxu0 %v2015
    %2714 = vmatprep.subr.mxu0 0.0
    %2715 = vmatpush1.msra.mxu0 %v2016
    %2716 = vmatprep.subr.mxu0 0.0
    %2717 = vmatpush1.msra.mxu0 %v2017
    %2718 = vmatprep.subr.mxu0 0.0
    %2719 = vmatpush1.msra.mxu0 %v2018
    %2720 = vmatprep.subr.mxu0 0.0
    %2721 = vmatpush1.msra.mxu0 %v2019
    %2722 = vmatprep.subr.mxu0 0.0
    %2723 = vmatpush1.msra.mxu0 %v2020
    %2724 = vmatprep.subr.mxu0 0.0
    %2725 = vmatpush1.msra.mxu0 %v2021
    %2726 = vmatprep.subr.mxu0 0.0
    %2727 = vmatpush1.msra.mxu0 %v2022
    %2728 = vmatprep.subr.mxu0 0.0
    %2729 = vmatpush1.msra.mxu0 %v2023
    %2730 = vmatprep.subr.mxu0 0.0
    %2731 = vmatpush1.msra.mxu0 0.0
    %2732 = vmatprep.subr.mxu0 0.0
    %2733 = vmatpush1.msra.mxu0 0.0
    %2734 = vmatprep.subr.mxu0 0.0
    %2735 = vmatpush1.msra.mxu0 0.0
    %2736 = vmatprep.subr.mxu0 0.0
    %2737 = vmatpush1.msra.mxu0 0.0
    %2738 = vmatprep.subr.mxu0 0.0
    %2739 = vmatpush1.msra.mxu0 0.0
    %2740 = vmatprep.subr.mxu0 0.0
    %2741 = vmatpush1.msra.mxu0 0.0
    %2742 = vmatprep.subr.mxu0 0.0
    %2743 = vmatpush1.msra.mxu0 0.0
    %2744 = vmatprep.subr.mxu0 0.0
    %2745 = vmatpush1.msra.mxu0 0.0
    %2746 = vmatprep.subr.mxu0 0.0
    %2747 = vmatpush1.msra.mxu0 0.0
    %2748 = vmatprep.subr.mxu0 0.0
    %2749 = vmatpush1.msra.mxu0 0.0
    %2750 = vmatprep.subr.mxu0 0.0
    %2751 = vmatpush1.msra.mxu0 0.0
    %2752 = vmatprep.subr.mxu0 0.0
    %2753 = vmatpush1.msra.mxu0 0.0
    %2754 = vmatprep.subr.mxu0 0.0
    %2755 = vmatpush1.msra.mxu0 0.0
    %2756 = vmatprep.subr.mxu0 0.0
    %2757 = vmatpush1.msra.mxu0 0.0
    %2758 = vmatprep.subr.mxu0 0.0
    %2759 = vmatpush1.msra.mxu0 0.0
    %2760 = vmatprep.subr.mxu0 0.0
    %2761 = vmatpush1.msra.mxu0 0.0
    %2762 = vmatprep.mubr.f32.mxu0 0.0
    %2763 = vmatmul.mubr.f32.gmra.mrb[0].mxu0 %v1490
    %v2764 = vpop.f32.mrb[0].mxu0
    %v2765 = vadd.f32 %v2695, %v2764
    %v2766 = vpop.f32.mrb[0].mxu0
    %2767 = vdwg.mxu0
    %v2768 = vadd.f32 %v2765, %v2176
    %v2769 = vxor.u32 %v2345, 2147483648
    %v2770 = vmul.f32 %v2769, 1.442695
    %v2771 = vpow.pop %v2770
    %v2772 = vadd.f32 %v2771, 1.0
    %v2773 = vrcp.pop %v2772
    %v2774 = vmul.f32 1.0, %v2773
    %v2775 = vxor.u32 %v2486, 2147483648
    %v2776 = vmul.f32 %v2775, 1.442695
    %v2777 = vpow.pop %v2776
    %v2778 = vadd.f32 %v2777, 1.0
    %v2779 = vrcp.pop %v2778
    %v2780 = vmul.f32 1.0, %v2779
    %v2781 = vtanh.pop %v2627
    %v2782 = vxor.u32 %v2768, 2147483648
    %v2783 = vmul.f32 %v2782, 1.442695
    %v2784 = vpow.pop %v2783
    %v2785 = vadd.f32 %v2784, 1.0
    %v2786 = vrcp.pop %v2785
    %v2787 = vmul.f32 1.0, %v2786
    %v2788 = vmul.f32 %v2780, %v2199
    %v2789 = vmul.f32 %v2774, %v2781
    %v2790 = vadd.f32 %v2788, %v2789
    %v2791 = vtanh.pop %v2790
    %v2792 = vmul.f32 %v2787, %v2791
    %v2793 = vld [vmem:[%s4] sm:$0xff]
    %v2794 = vld [vmem:[%s4 + $0x8] sm:$0xff]
    %v2795 = vld [vmem:[%s4 + $0x10] sm:$0xff]
    %v2796 = vld [vmem:[%s4 + $0x18] sm:$0xff]
    %v2797 = vld [vmem:[%s4 + $0x20] sm:$0xff]
    %v2798 = vld [vmem:[%s4 + $0x28] sm:$0xff]
    %v2799 = vld [vmem:[%s4 + $0x30] sm:$0xff]
    %v2800 = vld [vmem:[%s4 + $0x38] sm:$0xff]
    %s2801 = scalar_lea.vmem %s4, 64
    %v2802 = vld [vmem:[%s2801] sm:$0xff]
    %v2803 = vld [vmem:[%s2801 + $0x8] sm:$0xff]
    %v2804 = vld [vmem:[%s2801 + $0x10] sm:$0xff]
    %v2805 = vld [vmem:[%s2801 + $0x18] sm:$0xff]
    %v2806 = vld [vmem:[%s2801 + $0x20] sm:$0xff]
    %v2807 = vld [vmem:[%s2801 + $0x28] sm:$0xff]
    %v2808 = vld [vmem:[%s2801 + $0x30] sm:$0xff]
    %v2809 = vld [vmem:[%s2801 + $0x38] sm:$0xff]
    %v2811 = vrot.slane %v2201, 1
    %vm2812 = vcmask 1041409
    %v2813 = vsel %vm2812, %v2792, %v2811
    %v2814 = vsel %vm1515, %v2813, 0
    %2816 = vmatprep.subr.mxu0 0.0
    %2817 = vmatpush1.msra.mxu0 %v2802
    %2818 = vmatprep.subr.mxu0 0.0
    %2819 = vmatpush1.msra.mxu0 %v2803
    %2820 = vmatprep.subr.mxu0 0.0
    %2821 = vmatpush1.msra.mxu0 %v2804
    %2822 = vmatprep.subr.mxu0 0.0
    %2823 = vmatpush1.msra.mxu0 %v2805
    %2824 = vmatprep.subr.mxu0 0.0
    %2825 = vmatpush1.msra.mxu0 %v2806
    %2826 = vmatprep.subr.mxu0 0.0
    %2827 = vmatpush1.msra.mxu0 %v2807
    %2828 = vmatprep.subr.mxu0 0.0
    %2829 = vmatpush1.msra.mxu0 %v2808
    %2830 = vmatprep.subr.mxu0 0.0
    %2831 = vmatpush1.msra.mxu0 %v2809
    %2832 = vmatprep.subr.mxu0 0.0
    %2833 = vmatpush1.msra.mxu0 0.0
    %2834 = vmatprep.subr.mxu0 0.0
    %2835 = vmatpush1.msra.mxu0 0.0
    %2836 = vmatprep.subr.mxu0 0.0
    %2837 = vmatpush1.msra.mxu0 0.0
    %2838 = vmatprep.subr.mxu0 0.0
    %2839 = vmatpush1.msra.mxu0 0.0
    %2840 = vmatprep.subr.mxu0 0.0
    %2841 = vmatpush1.msra.mxu0 0.0
    %2842 = vmatprep.subr.mxu0 0.0
    %2843 = vmatpush1.msra.mxu0 0.0
    %2844 = vmatprep.subr.mxu0 0.0
    %2845 = vmatpush1.msra.mxu0 0.0
    %2846 = vmatprep.subr.mxu0 0.0
    %2847 = vmatpush1.msra.mxu0 0.0
    %2848 = vmatprep.subr.mxu0 0.0
    %2849 = vmatpush1.msra.mxu0 0.0
    %2850 = vmatprep.subr.mxu0 0.0
    %2851 = vmatpush1.msra.mxu0 0.0
    %2852 = vmatprep.subr.mxu0 0.0
    %2853 = vmatpush1.msra.mxu0 0.0
    %2854 = vmatprep.subr.mxu0 0.0
    %2855 = vmatpush1.msra.mxu0 0.0
    %2856 = vmatprep.subr.mxu0 0.0
    %2857 = vmatpush1.msra.mxu0 0.0
    %2858 = vmatprep.subr.mxu0 0.0
    %2859 = vmatpush1.msra.mxu0 0.0
    %2860 = vmatprep.subr.mxu0 0.0
    %2861 = vmatpush1.msra.mxu0 0.0
    %2862 = vmatprep.subr.mxu0 0.0
    %2863 = vmatpush1.msra.mxu0 0.0
    %2864 = vmatprep.subr.mxu0 0.0
    %2865 = vmatpush1.msra.mxu0 0.0
    %2866 = vmatprep.subr.mxu0 0.0
    %2867 = vmatpush1.msra.mxu0 0.0
    %2868 = vmatprep.subr.mxu0 0.0
    %2869 = vmatpush1.msra.mxu0 0.0
    %2870 = vmatprep.subr.mxu0 0.0
    %2871 = vmatpush1.msra.mxu0 0.0
    %2872 = vmatprep.subr.mxu0 0.0
    %2873 = vmatpush1.msra.mxu0 0.0
    %2874 = vmatprep.subr.mxu0 0.0
    %2875 = vmatpush1.msra.mxu0 0.0
    %2876 = vmatprep.subr.mxu0 0.0
    %2877 = vmatpush1.msra.mxu0 0.0
    %2878 = vmatprep.subr.mxu0 0.0
    %2879 = vmatpush1.msra.mxu0 0.0
    %2880 = vmatprep.mubr.f32.mxu0 0.0
    %2881 = vmatmul.mubr.f32.gmra.mrb[0].mxu0 %v2814
    %v2882 = vpop.f32.mrb[0].mxu0
    %v2883 = vadd.f32 0.0, %v2882
    %v2884 = vpop.f32.mrb[0].mxu0
    %2885 = vdwg.mxu0
    %v2886 = vrot.slane %v2792, 7
    %v2887 = vsel %vm2812, %v2886, %v2201
    %v2888 = vsel %vm1515, %v2887, 0
    %2890 = vmatprep.subr.mxu0 0.0
    %2891 = vmatpush1.msra.mxu0 %v2793
    %2892 = vmatprep.subr.mxu0 0.0
    %2893 = vmatpush1.msra.mxu0 %v2794
    %2894 = vmatprep.subr.mxu0 0.0
    %2895 = vmatpush1.msra.mxu0 %v2795
    %2896 = vmatprep.subr.mxu0 0.0
    %2897 = vmatpush1.msra.mxu0 %v2796
    %2898 = vmatprep.subr.mxu0 0.0
    %2899 = vmatpush1.msra.mxu0 %v2797
    %2900 = vmatprep.subr.mxu0 0.0
    %2901 = vmatpush1.msra.mxu0 %v2798
    %2902 = vmatprep.subr.mxu0 0.0
    %2903 = vmatpush1.msra.mxu0 %v2799
    %2904 = vmatprep.subr.mxu0 0.0
    %2905 = vmatpush1.msra.mxu0 %v2800
    %2906 = vmatprep.subr.mxu0 0.0
    %2907 = vmatpush1.msra.mxu0 0.0
    %2908 = vmatprep.subr.mxu0 0.0
    %2909 = vmatpush1.msra.mxu0 0.0
    %2910 = vmatprep.subr.mxu0 0.0
    %2911 = vmatpush1.msra.mxu0 0.0
    %2912 = vmatprep.subr.mxu0 0.0
    %2913 = vmatpush1.msra.mxu0 0.0
    %2914 = vmatprep.subr.mxu0 0.0
    %2915 = vmatpush1.msra.mxu0 0.0
    %2916 = vmatprep.subr.mxu0 0.0
    %2917 = vmatpush1.msra.mxu0 0.0
    %2918 = vmatprep.subr.mxu0 0.0
    %2919 = vmatpush1.msra.mxu0 0.0
    %2920 = vmatprep.subr.mxu0 0.0
    %2921 = vmatpush1.msra.mxu0 0.0
    %2922 = vmatprep.subr.mxu0 0.0
    %2923 = vmatpush1.msra.mxu0 0.0
    %2924 = vmatprep.subr.mxu0 0.0
    %2925 = vmatpush1.msra.mxu0 0.0
    %2926 = vmatprep.subr.mxu0 0.0
    %2927 = vmatpush1.msra.mxu0 0.0
    %2928 = vmatprep.subr.mxu0 0.0
    %2929 = vmatpush1.msra.mxu0 0.0
    %2930 = vmatprep.subr.mxu0 0.0
    %2931 = vmatpush1.msra.mxu0 0.0
    %2932 = vmatprep.subr.mxu0 0.0
    %2933 = vmatpush1.msra.mxu0 0.0
    %2934 = vmatprep.subr.mxu0 0.0
    %2935 = vmatpush1.msra.mxu0 0.0
    %2936 = vmatprep.subr.mxu0 0.0
    %2937 = vmatpush1.msra.mxu0 0.0
    %2938 = vmatprep.subr.mxu0 0.0
    %2939 = vmatpush1.msra.mxu0 0.0
    %2940 = vmatprep.subr.mxu0 0.0
    %2941 = vmatpush1.msra.mxu0 0.0
    %2942 = vmatprep.subr.mxu0 0.0
    %2943 = vmatpush1.msra.mxu0 0.0
    %2944 = vmatprep.subr.mxu0 0.0
    %2945 = vmatpush1.msra.mxu0 0.0
    %2946 = vmatprep.subr.mxu0 0.0
    %2947 = vmatpush1.msra.mxu0 0.0
    %2948 = vmatprep.subr.mxu0 0.0
    %2949 = vmatpush1.msra.mxu0 0.0
    %2950 = vmatprep.subr.mxu0 0.0
    %2951 = vmatpush1.msra.mxu0 0.0
    %2952 = vmatprep.subr.mxu0 0.0
    %2953 = vmatpush1.msra.mxu0 0.0
    %2954 = vmatprep.mubr.f32.mxu0 0.0
    %2955 = vmatmul.mubr.f32.gmra.mrb[0].mxu0 %v2888
    %v2956 = vpop.f32.mrb[0].mxu0
    %v2957 = vadd.f32 %v2883, %v2956
    %v2958 = vpop.f32.mrb[0].mxu0
    %2959 = vdwg.mxu0
    %s2960 = scalar_lea.vmem %s4, 128
    %v2961 = vld [vmem:[%s2960] sm:$0xff]
    %v2962 = vld [vmem:[%s2960 + $0x8] sm:$0xff]
    %v2963 = vld [vmem:[%s2960 + $0x10] sm:$0xff]
    %v2964 = vld [vmem:[%s2960 + $0x18] sm:$0xff]
    %v2965 = vld [vmem:[%s2960 + $0x20] sm:$0xff]
    %v2966 = vld [vmem:[%s2960 + $0x28] sm:$0xff]
    %v2967 = vld [vmem:[%s2960 + $0x30] sm:$0xff]
    %v2968 = vld [vmem:[%s2960 + $0x38] sm:$0xff]
    %v2969 = vrot.slane %v2201, 2
    %v2970 = vrot.slane %v2792, 1
    %v2971 = vsel %vm2812, %v2970, %v2969
    %v2972 = vsel %vm1515, %v2971, 0
    %2974 = vmatprep.subr.mxu0 0.0
    %2975 = vmatpush1.msra.mxu0 %v2961
    %2976 = vmatprep.subr.mxu0 0.0
    %2977 = vmatpush1.msra.mxu0 %v2962
    %2978 = vmatprep.subr.mxu0 0.0
    %2979 = vmatpush1.msra.mxu0 %v2963
    %2980 = vmatprep.subr.mxu0 0.0
    %2981 = vmatpush1.msra.mxu0 %v2964
    %2982 = vmatprep.subr.mxu0 0.0
    %2983 = vmatpush1.msra.mxu0 %v2965
    %2984 = vmatprep.subr.mxu0 0.0
    %2985 = vmatpush1.msra.mxu0 %v2966
    %2986 = vmatprep.subr.mxu0 0.0
    %2987 = vmatpush1.msra.mxu0 %v2967
    %2988 = vmatprep.subr.mxu0 0.0
    %2989 = vmatpush1.msra.mxu0 %v2968
    %2990 = vmatprep.subr.mxu0 0.0
    %2991 = vmatpush1.msra.mxu0 0.0
    %2992 = vmatprep.subr.mxu0 0.0
    %2993 = vmatpush1.msra.mxu0 0.0
    %2994 = vmatprep.subr.mxu0 0.0
    %2995 = vmatpush1.msra.mxu0 0.0
    %2996 = vmatprep.subr.mxu0 0.0
    %2997 = vmatpush1.msra.mxu0 0.0
    %2998 = vmatprep.subr.mxu0 0.0
    %2999 = vmatpush1.msra.mxu0 0.0
    %3000 = vmatprep.subr.mxu0 0.0
    %3001 = vmatpush1.msra.mxu0 0.0
    %3002 = vmatprep.subr.mxu0 0.0
    %3003 = vmatpush1.msra.mxu0 0.0
    %3004 = vmatprep.subr.mxu0 0.0
    %3005 = vmatpush1.msra.mxu0 0.0
    %3006 = vmatprep.subr.mxu0 0.0
    %3007 = vmatpush1.msra.mxu0 0.0
    %3008 = vmatprep.subr.mxu0 0.0
    %3009 = vmatpush1.msra.mxu0 0.0
    %3010 = vmatprep.subr.mxu0 0.0
    %3011 = vmatpush1.msra.mxu0 0.0
    %3012 = vmatprep.subr.mxu0 0.0
    %3013 = vmatpush1.msra.mxu0 0.0
    %3014 = vmatprep.subr.mxu0 0.0
    %3015 = vmatpush1.msra.mxu0 0.0
    %3016 = vmatprep.subr.mxu0 0.0
    %3017 = vmatpush1.msra.mxu0 0.0
    %3018 = vmatprep.subr.mxu0 0.0
    %3019 = vmatpush1.msra.mxu0 0.0
    %3020 = vmatprep.subr.mxu0 0.0
    %3021 = vmatpush1.msra.mxu0 0.0
    %3022 = vmatprep.subr.mxu0 0.0
    %3023 = vmatpush1.msra.mxu0 0.0
    %3024 = vmatprep.subr.mxu0 0.0
    %3025 = vmatpush1.msra.mxu0 0.0
    %3026 = vmatprep.subr.mxu0 0.0
    %3027 = vmatpush1.msra.mxu0 0.0
    %3028 = vmatprep.subr.mxu0 0.0
    %3029 = vmatpush1.msra.mxu0 0.0
    %3030 = vmatprep.subr.mxu0 0.0
    %3031 = vmatpush1.msra.mxu0 0.0
    %3032 = vmatprep.subr.mxu0 0.0
    %3033 = vmatpush1.msra.mxu0 0.0
    %3034 = vmatprep.subr.mxu0 0.0
    %3035 = vmatpush1.msra.mxu0 0.0
    %3036 = vmatprep.subr.mxu0 0.0
    %3037 = vmatpush1.msra.mxu0 0.0
    %3038 = vmatprep.mubr.f32.mxu0 0.0
    %3039 = vmatmul.mubr.f32.gmra.mrb[0].mxu0 %v2972
    %v3040 = vpop.f32.mrb[0].mxu0
    %v3041 = vadd.f32 0.0, %v3040
    %v3042 = vpop.f32.mrb[0].mxu0
    %3043 = vdwg.mxu0
    %v3044 = vadd.f32 %v2957, %v3041
    %s3045 = scalar_lea.vmem %s4, 192
    %v3046 = vld [vmem:[%s3045] sm:$0xff]
    %v3047 = vld [vmem:[%s3045 + $0x8] sm:$0xff]
    %v3048 = vld [vmem:[%s3045 + $0x10] sm:$0xff]
    %v3049 = vld [vmem:[%s3045 + $0x18] sm:$0xff]
    %v3050 = vld [vmem:[%s3045 + $0x20] sm:$0xff]
    %v3051 = vld [vmem:[%s3045 + $0x28] sm:$0xff]
    %v3052 = vld [vmem:[%s3045 + $0x30] sm:$0xff]
    %v3053 = vld [vmem:[%s3045 + $0x38] sm:$0xff]
    %v3054 = vrot.slane %v2201, 3
    %v3055 = vrot.slane %v2792, 2
    %v3056 = vsel %vm2812, %v3055, %v3054
    %v3057 = vsel %vm1515, %v3056, 0
    %3059 = vmatprep.subr.mxu0 0.0
    %3060 = vmatpush1.msra.mxu0 %v3046
    %3061 = vmatprep.subr.mxu0 0.0
    %3062 = vmatpush1.msra.mxu0 %v3047
    %3063 = vmatprep.subr.mxu0 0.0
    %3064 = vmatpush1.msra.mxu0 %v3048
    %3065 = vmatprep.subr.mxu0 0.0
    %3066 = vmatpush1.msra.mxu0 %v3049
    %3067 = vmatprep.subr.mxu0 0.0
    %3068 = vmatpush1.msra.mxu0 %v3050
    %3069 = vmatprep.subr.mxu0 0.0
    %3070 = vmatpush1.msra.mxu0 %v3051
    %3071 = vmatprep.subr.mxu0 0.0
    %3072 = vmatpush1.msra.mxu0 %v3052
    %3073 = vmatprep.subr.mxu0 0.0
    %3074 = vmatpush1.msra.mxu0 %v3053
    %3075 = vmatprep.subr.mxu0 0.0
    %3076 = vmatpush1.msra.mxu0 0.0
    %3077 = vmatprep.subr.mxu0 0.0
    %3078 = vmatpush1.msra.mxu0 0.0
    %3079 = vmatprep.subr.mxu0 0.0
    %3080 = vmatpush1.msra.mxu0 0.0
    %3081 = vmatprep.subr.mxu0 0.0
    %3082 = vmatpush1.msra.mxu0 0.0
    %3083 = vmatprep.subr.mxu0 0.0
    %3084 = vmatpush1.msra.mxu0 0.0
    %3085 = vmatprep.subr.mxu0 0.0
    %3086 = vmatpush1.msra.mxu0 0.0
    %3087 = vmatprep.subr.mxu0 0.0
    %3088 = vmatpush1.msra.mxu0 0.0
    %3089 = vmatprep.subr.mxu0 0.0
    %3090 = vmatpush1.msra.mxu0 0.0
    %3091 = vmatprep.subr.mxu0 0.0
    %3092 = vmatpush1.msra.mxu0 0.0
    %3093 = vmatprep.subr.mxu0 0.0
    %3094 = vmatpush1.msra.mxu0 0.0
    %3095 = vmatprep.subr.mxu0 0.0
    %3096 = vmatpush1.msra.mxu0 0.0
    %3097 = vmatprep.subr.mxu0 0.0
    %3098 = vmatpush1.msra.mxu0 0.0
    %3099 = vmatprep.subr.mxu0 0.0
    %3100 = vmatpush1.msra.mxu0 0.0
    %3101 = vmatprep.subr.mxu0 0.0
    %3102 = vmatpush1.msra.mxu0 0.0
    %3103 = vmatprep.subr.mxu0 0.0
    %3104 = vmatpush1.msra.mxu0 0.0
    %3105 = vmatprep.subr.mxu0 0.0
    %3106 = vmatpush1.msra.mxu0 0.0
    %3107 = vmatprep.subr.mxu0 0.0
    %3108 = vmatpush1.msra.mxu0 0.0
    %3109 = vmatprep.subr.mxu0 0.0
    %3110 = vmatpush1.msra.mxu0 0.0
    %3111 = vmatprep.subr.mxu0 0.0
    %3112 = vmatpush1.msra.mxu0 0.0
    %3113 = vmatprep.subr.mxu0 0.0
    %3114 = vmatpush1.msra.mxu0 0.0
    %3115 = vmatprep.subr.mxu0 0.0
    %3116 = vmatpush1.msra.mxu0 0.0
    %3117 = vmatprep.subr.mxu0 0.0
    %3118 = vmatpush1.msra.mxu0 0.0
    %3119 = vmatprep.subr.mxu0 0.0
    %3120 = vmatpush1.msra.mxu0 0.0
    %3121 = vmatprep.subr.mxu0 0.0
    %3122 = vmatpush1.msra.mxu0 0.0
    %3123 = vmatprep.mubr.f32.mxu0 0.0
    %3124 = vmatmul.mubr.f32.gmra.mrb[0].mxu0 %v3057
    %v3125 = vpop.f32.mrb[0].mxu0
    %v3126 = vadd.f32 0.0, %v3125
    %v3127 = vpop.f32.mrb[0].mxu0
    %3128 = vdwg.mxu0
    %v3129 = vadd.f32 %v3044, %v3126
    %s3130 = scalar_lea.vmem %s4, 256
    %v3131 = vld [vmem:[%s3130] sm:$0xff]
    %v3132 = vld [vmem:[%s3130 + $0x8] sm:$0xff]
    %v3133 = vld [vmem:[%s3130 + $0x10] sm:$0xff]
    %v3134 = vld [vmem:[%s3130 + $0x18] sm:$0xff]
    %v3135 = vld [vmem:[%s3130 + $0x20] sm:$0xff]
    %v3136 = vld [vmem:[%s3130 + $0x28] sm:$0xff]
    %v3137 = vld [vmem:[%s3130 + $0x30] sm:$0xff]
    %v3138 = vld [vmem:[%s3130 + $0x38] sm:$0xff]
    %v3139 = vrot.slane %v2201, 4
    %v3140 = vrot.slane %v2792, 3
    %v3141 = vsel %vm2812, %v3140, %v3139
    %v3142 = vsel %vm1515, %v3141, 0
    %3144 = vmatprep.subr.mxu0 0.0
    %3145 = vmatpush1.msra.mxu0 %v3131
    %3146 = vmatprep.subr.mxu0 0.0
    %3147 = vmatpush1.msra.mxu0 %v3132
    %3148 = vmatprep.subr.mxu0 0.0
    %3149 = vmatpush1.msra.mxu0 %v3133
    %3150 = vmatprep.subr.mxu0 0.0
    %3151 = vmatpush1.msra.mxu0 %v3134
    %3152 = vmatprep.subr.mxu0 0.0
    %3153 = vmatpush1.msra.mxu0 %v3135
    %3154 = vmatprep.subr.mxu0 0.0
    %3155 = vmatpush1.msra.mxu0 %v3136
    %3156 = vmatprep.subr.mxu0 0.0
    %3157 = vmatpush1.msra.mxu0 %v3137
    %3158 = vmatprep.subr.mxu0 0.0
    %3159 = vmatpush1.msra.mxu0 %v3138
    %3160 = vmatprep.subr.mxu0 0.0
    %3161 = vmatpush1.msra.mxu0 0.0
    %3162 = vmatprep.subr.mxu0 0.0
    %3163 = vmatpush1.msra.mxu0 0.0
    %3164 = vmatprep.subr.mxu0 0.0
    %3165 = vmatpush1.msra.mxu0 0.0
    %3166 = vmatprep.subr.mxu0 0.0
    %3167 = vmatpush1.msra.mxu0 0.0
    %3168 = vmatprep.subr.mxu0 0.0
    %3169 = vmatpush1.msra.mxu0 0.0
    %3170 = vmatprep.subr.mxu0 0.0
    %3171 = vmatpush1.msra.mxu0 0.0
    %3172 = vmatprep.subr.mxu0 0.0
    %3173 = vmatpush1.msra.mxu0 0.0
    %3174 = vmatprep.subr.mxu0 0.0
    %3175 = vmatpush1.msra.mxu0 0.0
    %3176 = vmatprep.subr.mxu0 0.0
    %3177 = vmatpush1.msra.mxu0 0.0
    %3178 = vmatprep.subr.mxu0 0.0
    %3179 = vmatpush1.msra.mxu0 0.0
    %3180 = vmatprep.subr.mxu0 0.0
    %3181 = vmatpush1.msra.mxu0 0.0
    %3182 = vmatprep.subr.mxu0 0.0
    %3183 = vmatpush1.msra.mxu0 0.0
    %3184 = vmatprep.subr.mxu0 0.0
    %3185 = vmatpush1.msra.mxu0 0.0
    %3186 = vmatprep.subr.mxu0 0.0
    %3187 = vmatpush1.msra.mxu0 0.0
    %3188 = vmatprep.subr.mxu0 0.0
    %3189 = vmatpush1.msra.mxu0 0.0
    %3190 = vmatprep.subr.mxu0 0.0
    %3191 = vmatpush1.msra.mxu0 0.0
    %3192 = vmatprep.subr.mxu0 0.0
    %3193 = vmatpush1.msra.mxu0 0.0
    %3194 = vmatprep.subr.mxu0 0.0
    %3195 = vmatpush1.msra.mxu0 0.0
    %3196 = vmatprep.subr.mxu0 0.0
    %3197 = vmatpush1.msra.mxu0 0.0
    %3198 = vmatprep.subr.mxu0 0.0
    %3199 = vmatpush1.msra.mxu0 0.0
    %3200 = vmatprep.subr.mxu0 0.0
    %3201 = vmatpush1.msra.mxu0 0.0
    %3202 = vmatprep.subr.mxu0 0.0
    %3203 = vmatpush1.msra.mxu0 0.0
    %3204 = vmatprep.subr.mxu0 0.0
    %3205 = vmatpush1.msra.mxu0 0.0
    %3206 = vmatprep.subr.mxu0 0.0
    %3207 = vmatpush1.msra.mxu0 0.0
    %3208 = vmatprep.mubr.f32.mxu0 0.0
    %3209 = vmatmul.mubr.f32.gmra.mrb[0].mxu0 %v3142
    %v3210 = vpop.f32.mrb[0].mxu0
    %v3211 = vadd.f32 0.0, %v3210
    %v3212 = vpop.f32.mrb[0].mxu0
    %3213 = vdwg.mxu0
    %v3214 = vadd.f32 %v3129, %v3211
    %s3215 = scalar_lea.vmem %s4, 320
    %v3216 = vld [vmem:[%s3215] sm:$0xff]
    %v3217 = vld [vmem:[%s3215 + $0x8] sm:$0xff]
    %v3218 = vld [vmem:[%s3215 + $0x10] sm:$0xff]
    %v3219 = vld [vmem:[%s3215 + $0x18] sm:$0xff]
    %v3220 = vld [vmem:[%s3215 + $0x20] sm:$0xff]
    %v3221 = vld [vmem:[%s3215 + $0x28] sm:$0xff]
    %v3222 = vld [vmem:[%s3215 + $0x30] sm:$0xff]
    %v3223 = vld [vmem:[%s3215 + $0x38] sm:$0xff]
    %v3224 = vrot.slane %v2201, 5
    %v3225 = vrot.slane %v2792, 4
    %v3226 = vsel %vm2812, %v3225, %v3224
    %v3227 = vsel %vm1515, %v3226, 0
    %3229 = vmatprep.subr.mxu0 0.0
    %3230 = vmatpush1.msra.mxu0 %v3216
    %3231 = vmatprep.subr.mxu0 0.0
    %3232 = vmatpush1.msra.mxu0 %v3217
    %3233 = vmatprep.subr.mxu0 0.0
    %3234 = vmatpush1.msra.mxu0 %v3218
    %3235 = vmatprep.subr.mxu0 0.0
    %3236 = vmatpush1.msra.mxu0 %v3219
    %3237 = vmatprep.subr.mxu0 0.0
    %3238 = vmatpush1.msra.mxu0 %v3220
    %3239 = vmatprep.subr.mxu0 0.0
    %3240 = vmatpush1.msra.mxu0 %v3221
    %3241 = vmatprep.subr.mxu0 0.0
    %3242 = vmatpush1.msra.mxu0 %v3222
    %3243 = vmatprep.subr.mxu0 0.0
    %3244 = vmatpush1.msra.mxu0 %v3223
    %3245 = vmatprep.subr.mxu0 0.0
    %3246 = vmatpush1.msra.mxu0 0.0
    %3247 = vmatprep.subr.mxu0 0.0
    %3248 = vmatpush1.msra.mxu0 0.0
    %3249 = vmatprep.subr.mxu0 0.0
    %3250 = vmatpush1.msra.mxu0 0.0
    %3251 = vmatprep.subr.mxu0 0.0
    %3252 = vmatpush1.msra.mxu0 0.0
    %3253 = vmatprep.subr.mxu0 0.0
    %3254 = vmatpush1.msra.mxu0 0.0
    %3255 = vmatprep.subr.mxu0 0.0
    %3256 = vmatpush1.msra.mxu0 0.0
    %3257 = vmatprep.subr.mxu0 0.0
    %3258 = vmatpush1.msra.mxu0 0.0
    %3259 = vmatprep.subr.mxu0 0.0
    %3260 = vmatpush1.msra.mxu0 0.0
    %3261 = vmatprep.subr.mxu0 0.0
    %3262 = vmatpush1.msra.mxu0 0.0
    %3263 = vmatprep.subr.mxu0 0.0
    %3264 = vmatpush1.msra.mxu0 0.0
    %3265 = vmatprep.subr.mxu0 0.0
    %3266 = vmatpush1.msra.mxu0 0.0
    %3267 = vmatprep.subr.mxu0 0.0
    %3268 = vmatpush1.msra.mxu0 0.0
    %3269 = vmatprep.subr.mxu0 0.0
    %3270 = vmatpush1.msra.mxu0 0.0
    %3271 = vmatprep.subr.mxu0 0.0
    %3272 = vmatpush1.msra.mxu0 0.0
    %3273 = vmatprep.subr.mxu0 0.0
    %3274 = vmatpush1.msra.mxu0 0.0
    %3275 = vmatprep.subr.mxu0 0.0
    %3276 = vmatpush1.msra.mxu0 0.0
    %3277 = vmatprep.subr.mxu0 0.0
    %3278 = vmatpush1.msra.mxu0 0.0
    %3279 = vmatprep.subr.mxu0 0.0
    %3280 = vmatpush1.msra.mxu0 0.0
    %3281 = vmatprep.subr.mxu0 0.0
    %3282 = vmatpush1.msra.mxu0 0.0
    %3283 = vmatprep.subr.mxu0 0.0
    %3284 = vmatpush1.msra.mxu0 0.0
    %3285 = vmatprep.subr.mxu0 0.0
    %3286 = vmatpush1.msra.mxu0 0.0
    %3287 = vmatprep.subr.mxu0 0.0
    %3288 = vmatpush1.msra.mxu0 0.0
    %3289 = vmatprep.subr.mxu0 0.0
    %3290 = vmatpush1.msra.mxu0 0.0
    %3291 = vmatprep.subr.mxu0 0.0
    %3292 = vmatpush1.msra.mxu0 0.0
    %3293 = vmatprep.mubr.f32.mxu0 0.0
    %3294 = vmatmul.mubr.f32.gmra.mrb[0].mxu0 %v3227
    %v3295 = vpop.f32.mrb[0].mxu0
    %v3296 = vadd.f32 0.0, %v3295
    %v3297 = vpop.f32.mrb[0].mxu0
    %3298 = vdwg.mxu0
    %v3299 = vadd.f32 %v3214, %v3296
    %s3300 = scalar_lea.vmem %s4, 384
    %v3301 = vld [vmem:[%s3300] sm:$0xff]
    %v3302 = vld [vmem:[%s3300 + $0x8] sm:$0xff]
    %v3303 = vld [vmem:[%s3300 + $0x10] sm:$0xff]
    %v3304 = vld [vmem:[%s3300 + $0x18] sm:$0xff]
    %v3305 = vld [vmem:[%s3300 + $0x20] sm:$0xff]
    %v3306 = vld [vmem:[%s3300 + $0x28] sm:$0xff]
    %v3307 = vld [vmem:[%s3300 + $0x30] sm:$0xff]
    %v3308 = vld [vmem:[%s3300 + $0x38] sm:$0xff]
    %v3309 = vrot.slane %v2201, 6
    %v3310 = vrot.slane %v2792, 5
    %v3311 = vsel %vm2812, %v3310, %v3309
    %v3312 = vsel %vm1515, %v3311, 0
    %3314 = vmatprep.subr.mxu0 0.0
    %3315 = vmatpush1.msra.mxu0 %v3301
    %3316 = vmatprep.subr.mxu0 0.0
    %3317 = vmatpush1.msra.mxu0 %v3302
    %3318 = vmatprep.subr.mxu0 0.0
    %3319 = vmatpush1.msra.mxu0 %v3303
    %3320 = vmatprep.subr.mxu0 0.0
    %3321 = vmatpush1.msra.mxu0 %v3304
    %3322 = vmatprep.subr.mxu0 0.0
    %3323 = vmatpush1.msra.mxu0 %v3305
    %3324 = vmatprep.subr.mxu0 0.0
    %3325 = vmatpush1.msra.mxu0 %v3306
    %3326 = vmatprep.subr.mxu0 0.0
    %3327 = vmatpush1.msra.mxu0 %v3307
    %3328 = vmatprep.subr.mxu0 0.0
    %3329 = vmatpush1.msra.mxu0 %v3308
    %3330 = vmatprep.subr.mxu0 0.0
    %3331 = vmatpush1.msra.mxu0 0.0
    %3332 = vmatprep.subr.mxu0 0.0
    %3333 = vmatpush1.msra.mxu0 0.0
    %3334 = vmatprep.subr.mxu0 0.0
    %3335 = vmatpush1.msra.mxu0 0.0
    %3336 = vmatprep.subr.mxu0 0.0
    %3337 = vmatpush1.msra.mxu0 0.0
    %3338 = vmatprep.subr.mxu0 0.0
    %3339 = vmatpush1.msra.mxu0 0.0
    %3340 = vmatprep.subr.mxu0 0.0
    %3341 = vmatpush1.msra.mxu0 0.0
    %3342 = vmatprep.subr.mxu0 0.0
    %3343 = vmatpush1.msra.mxu0 0.0
    %3344 = vmatprep.subr.mxu0 0.0
    %3345 = vmatpush1.msra.mxu0 0.0
    %3346 = vmatprep.subr.mxu0 0.0
    %3347 = vmatpush1.msra.mxu0 0.0
    %3348 = vmatprep.subr.mxu0 0.0
    %3349 = vmatpush1.msra.mxu0 0.0
    %3350 = vmatprep.subr.mxu0 0.0
    %3351 = vmatpush1.msra.mxu0 0.0
    %3352 = vmatprep.subr.mxu0 0.0
    %3353 = vmatpush1.msra.mxu0 0.0
    %3354 = vmatprep.subr.mxu0 0.0
    %3355 = vmatpush1.msra.mxu0 0.0
    %3356 = vmatprep.subr.mxu0 0.0
    %3357 = vmatpush1.msra.mxu0 0.0
    %3358 = vmatprep.subr.mxu0 0.0
    %3359 = vmatpush1.msra.mxu0 0.0
    %3360 = vmatprep.subr.mxu0 0.0
    %3361 = vmatpush1.msra.mxu0 0.0
    %3362 = vmatprep.subr.mxu0 0.0
    %3363 = vmatpush1.msra.mxu0 0.0
    %3364 = vmatprep.subr.mxu0 0.0
    %3365 = vmatpush1.msra.mxu0 0.0
    %3366 = vmatprep.subr.mxu0 0.0
    %3367 = vmatpush1.msra.mxu0 0.0
    %3368 = vmatprep.subr.mxu0 0.0
    %3369 = vmatpush1.msra.mxu0 0.0
    %3370 = vmatprep.subr.mxu0 0.0
    %3371 = vmatpush1.msra.mxu0 0.0
    %3372 = vmatprep.subr.mxu0 0.0
    %3373 = vmatpush1.msra.mxu0 0.0
    %3374 = vmatprep.subr.mxu0 0.0
    %3375 = vmatpush1.msra.mxu0 0.0
    %3376 = vmatprep.subr.mxu0 0.0
    %3377 = vmatpush1.msra.mxu0 0.0
    %3378 = vmatprep.mubr.f32.mxu0 0.0
    %3379 = vmatmul.mubr.f32.gmra.mrb[0].mxu0 %v3312
    %v3380 = vpop.f32.mrb[0].mxu0
    %v3381 = vadd.f32 0.0, %v3380
    %v3382 = vpop.f32.mrb[0].mxu0
    %3383 = vdwg.mxu0
    %v3384 = vadd.f32 %v3299, %v3381
    %s3385 = scalar_lea.vmem %s4, 448
    %v3386 = vld [vmem:[%s3385] sm:$0xff]
    %v3387 = vld [vmem:[%s3385 + $0x8] sm:$0xff]
    %v3388 = vld [vmem:[%s3385 + $0x10] sm:$0xff]
    %v3389 = vld [vmem:[%s3385 + $0x18] sm:$0xff]
    %v3390 = vld [vmem:[%s3385 + $0x20] sm:$0xff]
    %v3391 = vld [vmem:[%s3385 + $0x28] sm:$0xff]
    %v3392 = vld [vmem:[%s3385 + $0x30] sm:$0xff]
    %v3393 = vld [vmem:[%s3385 + $0x38] sm:$0xff]
    %v3394 = vrot.slane %v2201, 7
    %v3395 = vrot.slane %v2792, 6
    %v3396 = vsel %vm2812, %v3395, %v3394
    %v3397 = vsel %vm1515, %v3396, 0
    %3399 = vmatprep.subr.mxu0 0.0
    %3400 = vmatpush1.msra.mxu0 %v3386
    %3401 = vmatprep.subr.mxu0 0.0
    %3402 = vmatpush1.msra.mxu0 %v3387
    %3403 = vmatprep.subr.mxu0 0.0
    %3404 = vmatpush1.msra.mxu0 %v3388
    %3405 = vmatprep.subr.mxu0 0.0
    %3406 = vmatpush1.msra.mxu0 %v3389
    %3407 = vmatprep.subr.mxu0 0.0
    %3408 = vmatpush1.msra.mxu0 %v3390
    %3409 = vmatprep.subr.mxu0 0.0
    %3410 = vmatpush1.msra.mxu0 %v3391
    %3411 = vmatprep.subr.mxu0 0.0
    %3412 = vmatpush1.msra.mxu0 %v3392
    %3413 = vmatprep.subr.mxu0 0.0
    %3414 = vmatpush1.msra.mxu0 %v3393
    %3415 = vmatprep.subr.mxu0 0.0
    %3416 = vmatpush1.msra.mxu0 0.0
    %3417 = vmatprep.subr.mxu0 0.0
    %3418 = vmatpush1.msra.mxu0 0.0
    %3419 = vmatprep.subr.mxu0 0.0
    %3420 = vmatpush1.msra.mxu0 0.0
    %3421 = vmatprep.subr.mxu0 0.0
    %3422 = vmatpush1.msra.mxu0 0.0
    %3423 = vmatprep.subr.mxu0 0.0
    %3424 = vmatpush1.msra.mxu0 0.0
    %3425 = vmatprep.subr.mxu0 0.0
    %3426 = vmatpush1.msra.mxu0 0.0
    %3427 = vmatprep.subr.mxu0 0.0
    %3428 = vmatpush1.msra.mxu0 0.0
    %3429 = vmatprep.subr.mxu0 0.0
    %3430 = vmatpush1.msra.mxu0 0.0
    %3431 = vmatprep.subr.mxu0 0.0
    %3432 = vmatpush1.msra.mxu0 0.0
    %3433 = vmatprep.subr.mxu0 0.0
    %3434 = vmatpush1.msra.mxu0 0.0
    %3435 = vmatprep.subr.mxu0 0.0
    %3436 = vmatpush1.msra.mxu0 0.0
    %3437 = vmatprep.subr.mxu0 0.0
    %3438 = vmatpush1.msra.mxu0 0.0
    %3439 = vmatprep.subr.mxu0 0.0
    %3440 = vmatpush1.msra.mxu0 0.0
    %3441 = vmatprep.subr.mxu0 0.0
    %3442 = vmatpush1.msra.mxu0 0.0
    %3443 = vmatprep.subr.mxu0 0.0
    %3444 = vmatpush1.msra.mxu0 0.0
    %3445 = vmatprep.subr.mxu0 0.0
    %3446 = vmatpush1.msra.mxu0 0.0
    %3447 = vmatprep.subr.mxu0 0.0
    %3448 = vmatpush1.msra.mxu0 0.0
    %3449 = vmatprep.subr.mxu0 0.0
    %3450 = vmatpush1.msra.mxu0 0.0
    %3451 = vmatprep.subr.mxu0 0.0
    %3452 = vmatpush1.msra.mxu0 0.0
    %3453 = vmatprep.subr.mxu0 0.0
    %3454 = vmatpush1.msra.mxu0 0.0
    %3455 = vmatprep.subr.mxu0 0.0
    %3456 = vmatpush1.msra.mxu0 0.0
    %3457 = vmatprep.subr.mxu0 0.0
    %3458 = vmatpush1.msra.mxu0 0.0
    %3459 = vmatprep.subr.mxu0 0.0
    %3460 = vmatpush1.msra.mxu0 0.0
    %3461 = vmatprep.subr.mxu0 0.0
    %3462 = vmatpush1.msra.mxu0 0.0
    %3463 = vmatprep.mubr.f32.mxu0 0.0
    %3464 = vmatmul.mubr.f32.gmra.mrb[0].mxu0 %v3397
    %v3465 = vpop.f32.mrb[0].mxu0
    %v3466 = vadd.f32 0.0, %v3465
    %v3467 = vpop.f32.mrb[0].mxu0
    %3468 = vdwg.mxu0
    %v3469 = vadd.f32 %v3384, %v3466
    %v3470 = vld [vmem:[%s6 + $0x7] sm:$0x1]
    %v3471 = vlaneseq
    %v3472 = vshrl.u32 %v3471, 7
    %v3473 = vsub.s32 0, %v3472
    %v3474 = vrot.slane %v3470, %v3473
    %v3475 = vadd.f32 %v3469, %v3474
    %v3476 = vld [vmem:[%s5] sm:$0xff]
    %v3477 = vld [vmem:[%s5 + $0x8] sm:$0xff]
    %v3478 = vld [vmem:[%s5 + $0x10] sm:$0xff]
    %v3479 = vld [vmem:[%s5 + $0x18] sm:$0xff]
    %v3480 = vld [vmem:[%s6 + $0x8] sm:$0x1]
    %v3481 = vlaneseq
    %v3482 = vshrl.u32 %v3481, 7
    %v3483 = vsub.s32 0, %v3482
    %v3484 = vrot.slane %v3480, %v3483
    %vm3485 = vcmask 261120
    %v3487 = vsel %vm3485, %v3475, 0
    %3489 = vmatprep.subr.mxu0 0.0
    %3490 = vmatpush1.msra.mxu0 %v3476
    %3491 = vmatprep.subr.mxu0 0.0
    %3492 = vmatpush1.msra.mxu0 %v3477
    %3493 = vmatprep.subr.mxu0 0.0
    %3494 = vmatpush1.msra.mxu0 %v3478
    %3495 = vmatprep.subr.mxu0 0.0
    %3496 = vmatpush1.msra.mxu0 %v3479
    %3497 = vmatprep.subr.mxu0 0.0
    %3498 = vmatpush1.msra.mxu0 0.0
    %3499 = vmatprep.subr.mxu0 0.0
    %3500 = vmatpush1.msra.mxu0 0.0
    %3501 = vmatprep.subr.mxu0 0.0
    %3502 = vmatpush1.msra.mxu0 0.0
    %3503 = vmatprep.subr.mxu0 0.0
    %3504 = vmatpush1.msra.mxu0 0.0
    %3505 = vmatprep.subr.mxu0 0.0
    %3506 = vmatpush1.msra.mxu0 0.0
    %3507 = vmatprep.subr.mxu0 0.0
    %3508 = vmatpush1.msra.mxu0 0.0
    %3509 = vmatprep.subr.mxu0 0.0
    %3510 = vmatpush1.msra.mxu0 0.0
    %3511 = vmatprep.subr.mxu0 0.0
    %3512 = vmatpush1.msra.mxu0 0.0
    %3513 = vmatprep.subr.mxu0 0.0
    %3514 = vmatpush1.msra.mxu0 0.0
    %3515 = vmatprep.subr.mxu0 0.0
    %3516 = vmatpush1.msra.mxu0 0.0
    %3517 = vmatprep.subr.mxu0 0.0
    %3518 = vmatpush1.msra.mxu0 0.0
    %3519 = vmatprep.subr.mxu0 0.0
    %3520 = vmatpush1.msra.mxu0 0.0
    %3521 = vmatprep.subr.mxu0 0.0
    %3522 = vmatpush1.msra.mxu0 0.0
    %3523 = vmatprep.subr.mxu0 0.0
    %3524 = vmatpush1.msra.mxu0 0.0
    %3525 = vmatprep.subr.mxu0 0.0
    %3526 = vmatpush1.msra.mxu0 0.0
    %3527 = vmatprep.subr.mxu0 0.0
    %3528 = vmatpush1.msra.mxu0 0.0
    %3529 = vmatprep.subr.mxu0 0.0
    %3530 = vmatpush1.msra.mxu0 0.0
    %3531 = vmatprep.subr.mxu0 0.0
    %3532 = vmatpush1.msra.mxu0 0.0
    %3533 = vmatprep.subr.mxu0 0.0
    %3534 = vmatpush1.msra.mxu0 0.0
    %3535 = vmatprep.subr.mxu0 0.0
    %3536 = vmatpush1.msra.mxu0 0.0
    %3537 = vmatprep.subr.mxu0 0.0
    %3538 = vmatpush1.msra.mxu0 0.0
    %3539 = vmatprep.subr.mxu0 0.0
    %3540 = vmatpush1.msra.mxu0 0.0
    %3541 = vmatprep.subr.mxu0 0.0
    %3542 = vmatpush1.msra.mxu0 0.0
    %3543 = vmatprep.subr.mxu0 0.0
    %3544 = vmatpush1.msra.mxu0 0.0
    %3545 = vmatprep.subr.mxu0 0.0
    %3546 = vmatpush1.msra.mxu0 0.0
    %3547 = vmatprep.subr.mxu0 0.0
    %3548 = vmatpush1.msra.mxu0 0.0
    %3549 = vmatprep.subr.mxu0 0.0
    %3550 = vmatpush1.msra.mxu0 0.0
    %3551 = vmatprep.subr.mxu0 0.0
    %3552 = vmatpush1.msra.mxu0 0.0
    %3553 = vmatprep.mubr.f32.mxu0 0.0
    %3554 = vmatmul.mubr.f32.gmra.mrb[0].mxu0 %v3487
    %v3555 = vpop.f32.mrb[0].mxu0
    %v3556 = vadd.f32 %v3484, %v3555
    %v3557 = vpop.f32.mrb[0].mxu0
    %3558 = vdwg.mxu0
    %vm3559 = vcmask 9216
    %v3560 = vsel %vm3559, %v3556, -inf
    %3561 = vmax.xlane.f32.xlu0 %v3560
    %v3562 = vpop.xlane.xlu0 %3561
    %v3563 = vsub.f32 %v3556, %v3562
    %v3564 = vmul.f32 %v3563, 1.442695
    %v3565 = vpow.pop %v3564
    %v3566 = vsel %vm3559, %v3565, 0.0
    %3567 = vadd.xlane.f32.xlu0 %v3566
    %v3568 = vpop.xlane.xlu0 %3567
    %v3569 = vrcp.pop %v3568
    %v3570 = vmul.f32 %v3565, %v3569
    %3571 = vst.msk [vmem:[#allocation2] sm:$0x3] %vm3559, %v3570
    // Predicated region
    $region30: #{lstm1_forward.1} parent=1 // pred_check
      _
    $region31: #{lstm1_forward.1} parent=1 // pred_check_branch
      %3573 = sbr.rel (0) target = $region33
    $region32: #{lstm1_forward.1} parent=1 // pred_region
      %s3575 = ssub.s32 32, 32
      %3576 = vsyncadd [#allocation3], %s3575
      %s3578 = sshll.u32 [#allocation2], 4
      %s3579 = int_to_ptr.vmem [resolvable:$true] %s3578
      %3581 = dma.vmem_to_hbm [thread:$0]  %s3579, 32, %s7, [#allocation3]
    $region33: #{lstm1_forward.1} parent=1 // pred_fallthru
      _
    // Predicated region
    $region34: #{lstm1_forward.1} parent=1 // pred_check
      _
    $region35: #{lstm1_forward.1} parent=1 // pred_check_branch
      %3583 = sbr.rel (0) target = $region37
    $region36: #{lstm1_forward.1} parent=1 // pred_region
      %3584 = dma.done [#allocation3], 32
    $region37: #{lstm1_forward.1} parent=1 // pred_fallthru
      _
    %3585 = vsyncpa [#allocation3], 1

</llo_original>
